<compile_context>
chip_gen: v7x
topology: tpu7x:2x2x1
jax: 0.10.0
libtpu: 0.0.40
codegen_flags: <defaults>
</compile_context>

<pallas_src>
import functools

import jax
import jax.numpy as jnp
from jax.experimental import pallas as pl
from jax.experimental.pallas import tpu as pltpu


# ----------------------------- in-kernel helpers -----------------------------

def _layernorm(x, g, b, eps=1e-5):
    """torch.nn.LayerNorm over the last dim (biased variance, eps=1e-5)."""
    m = jnp.mean(x, axis=-1, keepdims=True)
    v = jnp.mean((x - m) ** 2, axis=-1, keepdims=True)
    return (x - m) * jax.lax.rsqrt(v + eps) * g + b


def _erf_f32(x):
    # Abramowitz & Stegun 7.1.26 rational approximation, |err| <= 1.5e-7.
    a1, a2, a3, a4, a5 = 0.254829592, -0.284496736, 1.421413741, -1.453152027, 1.061405429
    p = 0.3275911
    s = jnp.where(x >= 0.0, 1.0, -1.0)
    ax = jnp.abs(x)
    t = pl.reciprocal(1.0 + p * ax, approx=True)
    poly = ((((a5 * t + a4) * t + a3) * t + a2) * t + a1) * t
    return s * (1.0 - poly * jnp.exp(-ax * ax))


def _gelu_exact(x):
    """Exact (erf-based) GELU, matching torch.nn.GELU() default."""
    return 0.5 * x * (1.0 + _erf_f32(x * (2.0 ** -0.5)))


def _mm(a, w):
    """bf16 x bf16 MXU matmul with f32 accumulation (weights already bf16)."""
    return jnp.dot(a.astype(jnp.bfloat16), w, preferred_element_type=jnp.float32)


# --------------------------------- kernel ------------------------------------

def vit_kernel(
    patches_ref,                       # (Bg, S_pad, P)  row 0 / tail rows are zero pads
    ln0_g, ln0_b,                      # (1, P)          patch-embedding LayerNorm
    w_pe, b_pe,                        # (P, dim) bf16, (1, dim)
    ln1_g, ln1_b,                      # (1, dim)
    cls_ref,                           # (1, dim)
    pos_ref,                           # (S_pad, dim)    zero-padded positional embedding
    a_ln_g, a_ln_b,                    # (depth, dim)
    w_qkv,                             # (depth, dim, 3*inner) bf16  [Q*scale | K | V], head-major
    w_o,                               # (depth, inner, dim) bf16
    b_ao,                              # (depth, dim)
    f_ln_g, f_ln_b,                    # (depth, dim)
    w_f1, b_f1,                        # (depth, dim, mlp) bf16, (depth, mlp)
    w_f2, b_f2,                        # (depth, mlp, dim) bf16, (depth, dim)
    lnf_g, lnf_b,                      # (1, dim)
    w_head, b_head,                    # (dim, NC_pad) bf16, (1, NC_pad)
    out_ref,                           # (Bg, S_pad, NC_pad)
    o_scr,                             # VMEM scratch (Bg, S_pad, inner) f32
    *, depth, heads, dim_head, seq_len,
):
    bg, s_pad, p_dim = patches_ref.shape
    dim = pos_ref.shape[-1]
    inner = heads * dim_head
    m_rows = bg * s_pad

    # ---- patch embedding: LayerNorm -> Linear -> LayerNorm, batch folded into M ----
    # Padded/dummy rows produce harmless finite garbage (masked / never pooled).
    x = patches_ref[...].reshape(m_rows, p_dim)
    x = _layernorm(x, ln0_g[...], ln0_b[...])
    x = _mm(x, w_pe[...]) + b_pe[...]
    x = _layernorm(x, ln1_g[...], ln1_b[...])                       # (M, dim)

    # ---- cls token into row 0 of every image (no concat), add positional emb ----
    x3 = x.reshape(bg, s_pad, dim)
    row_idx = jax.lax.broadcasted_iota(jnp.int32, x3.shape, 1)
    x3 = jnp.where(row_idx == 0, cls_ref[...], x3) + pos_ref[...][None]
    x = x3.reshape(m_rows, dim)
    # TODO(synk): nn.Dropout layers are identity here (p = 0.0 / eval semantics).

    # key-padding mask (columns >= seq_len are zero-pad rows); hoisted out of the loop.
    # Scores are accumulated in f32 so the -1e30 mask constant is safe.
    key_valid = jax.lax.broadcasted_iota(jnp.int32, (bg, s_pad, s_pad), 2) < seq_len

    # ---- transformer blocks (statically unrolled) ----
    for l in range(depth):
        # --- multi-head self-attention (pre-norm, residual) ---
        h = _layernorm(x, a_ln_g[pl.ds(l, 1), :], a_ln_b[pl.ds(l, 1), :])
        # single fused QKV projection (1/sqrt(dim_head) folded into Q columns)
        qkv = _mm(h, w_qkv[l])                                      # (M, 3*inner) f32
        qkv3 = qkv.reshape(bg, s_pad, 3 * inner)
        for hh in range(heads):
            q = qkv3[:, :, hh * dim_head:(hh + 1) * dim_head]
            k = qkv3[:, :, inner + hh * dim_head: inner + (hh + 1) * dim_head]
            v = qkv3[:, :, 2 * inner + hh * dim_head: 2 * inner + (hh + 1) * dim_head]
            dots = jnp.einsum('bnd,bmd->bnm', q.astype(jnp.bfloat16),
                              k.astype(jnp.bfloat16),
                              preferred_element_type=jnp.float32)   # (Bg, S_pad, S_pad)
            dots = jnp.where(key_valid, dots, -1e30)
            dots = dots - jnp.max(dots, axis=-1, keepdims=True)
            e = jnp.exp(dots)
            attn = e / jnp.sum(e, axis=-1, keepdims=True)           # exact denominator
            oh = jnp.einsum('bnm,bmd->bnd', attn.astype(jnp.bfloat16),
                            v.astype(jnp.bfloat16),
                            preferred_element_type=jnp.float32)     # (Bg, S_pad, dh)
            # head output written at a static lane offset (no concat relayout)
            o_scr[:, :, hh * dim_head:(hh + 1) * dim_head] = oh
        o = _mm(o_scr[...].reshape(m_rows, inner), w_o[l]) + b_ao[pl.ds(l, 1), :]
        x = x + o

        # --- feed-forward (pre-norm, residual) ---
        h = _layernorm(x, f_ln_g[pl.ds(l, 1), :], f_ln_b[pl.ds(l, 1), :])
        h = _mm(h, w_f1[l]) + b_f1[pl.ds(l, 1), :]
        h = _gelu_exact(h)
        h = _mm(h, w_f2[l]) + b_f2[pl.ds(l, 1), :]
        x = x + h

    # ---- final norm + classification head on every row (lane-dense full store).
    # The wrapper does the cls pooling (row 0) and strips the lane padding.
    x = _layernorm(x, lnf_g[...], lnf_b[...])
    logits = _mm(x, w_head[...]) + b_head[...]                      # (M, NC_pad)
    out_ref[...] = logits.reshape(bg, s_pad, out_ref.shape[-1])


# --------------------------------- wrapper -----------------------------------

def prepare_params(p, *, dim, depth, heads, dim_head, num_classes, seq_len, s_pad, nc_pad):
    """One-time weight preprocessing, hoisted out of the per-call path."""
    inner = heads * dim_head
    scale = dim_head ** -0.5
    bf16 = jnp.bfloat16

    # Fused QKV weights (head-major columns), 1/sqrt(dim_head) folded into Q.
    w_q = jnp.transpose(p['w_q'], (0, 2, 1, 3)).reshape(depth, dim, inner) * scale
    w_k = jnp.transpose(p['w_k'], (0, 2, 1, 3)).reshape(depth, dim, inner)
    w_v = jnp.transpose(p['w_v'], (0, 2, 1, 3)).reshape(depth, dim, inner)
    w_qkv = jnp.concatenate([w_q, w_k, w_v], axis=-1).astype(bf16)  # (depth, dim, 3*inner)
    w_o = p['w_o'].reshape(depth, inner, dim).astype(bf16)          # concat-then-project

    pos_pad = jnp.zeros((s_pad, dim), jnp.float32).at[:seq_len, :].set(p['pos'])

    # Lane-dense classification head: pad num_classes -> nc_pad (multiple of 128).
    w_head = jnp.zeros((dim, nc_pad), jnp.float32).at[:, :num_classes].set(p['w_head'])
    b_head = jnp.zeros((1, nc_pad), jnp.float32).at[:, :num_classes].set(p['b_head'])

    return dict(
        ln0_g=p['ln0_g'], ln0_b=p['ln0_b'],
        w_pe=p['w_pe'].astype(bf16), b_pe=p['b_pe'],
        ln1_g=p['ln1_g'], ln1_b=p['ln1_b'],
        cls=p['cls'], pos=pos_pad,
        a_ln_g=p['a_ln_g'], a_ln_b=p['a_ln_b'],
        w_qkv=w_qkv, w_o=w_o, b_ao=p['b_ao'],
        f_ln_g=p['f_ln_g'], f_ln_b=p['f_ln_b'],
        w_f1=p['w_f1'].astype(bf16), b_f1=p['b_f1'],
        w_f2=p['w_f2'].astype(bf16), b_f2=p['b_f2'],
        lnf_g=p['lnf_g'], lnf_b=p['lnf_b'],
        w_head=w_head.astype(bf16), b_head=b_head,
    )


def _rep_spec(arr):
    n = arr.ndim
    return pl.BlockSpec(arr.shape, lambda b, _n=n: (0,) * _n)


def vit_forward(img, prep, *, patch, dim, depth, heads, dim_head, num_classes,
                s_pad, nc_pad, batch_block=None):
    B, C, H, W = img.shape
    gh, gw = H // patch, W // patch
    N = gh * gw
    P = C * patch * patch
    S = N + 1
    inner = heads * dim_head

    # Block several images per grid step so every MXU call has M = Bg*S_pad rows
    # instead of S_pad (amortizes per-step overhead, fills sublanes).
    Bg = B if batch_block is None else batch_block
    assert B % Bg == 0, "batch must be divisible by the batch block"

    # einops: 'b c (h p1) (w p2) -> b (h w) (p1 p2 c)'; row 0 is reserved for the
    # cls token (filled in-kernel), tail rows are zero pads up to S_pad.
    patches = img.reshape(B, C, gh, patch, gw, patch)
    patches = patches.transpose(0, 2, 4, 3, 5, 1).reshape(B, N, P)
    patches_pad = jnp.zeros((B, s_pad, P), patches.dtype).at[:, 1:N + 1, :].set(patches)

    args = [
        patches_pad,
        prep['ln0_g'], prep['ln0_b'], prep['w_pe'], prep['b_pe'],
        prep['ln1_g'], prep['ln1_b'], prep['cls'], prep['pos'],
        prep['a_ln_g'], prep['a_ln_b'], prep['w_qkv'], prep['w_o'], prep['b_ao'],
        prep['f_ln_g'], prep['f_ln_b'], prep['w_f1'], prep['b_f1'],
        prep['w_f2'], prep['b_f2'], prep['lnf_g'], prep['lnf_b'],
        prep['w_head'], prep['b_head'],
    ]

    kernel = functools.partial(vit_kernel, depth=depth, heads=heads,
                               dim_head=dim_head, seq_len=S)

    in_specs = [pl.BlockSpec((Bg, s_pad, P), lambda b: (b, 0, 0))]
    in_specs += [_rep_spec(a) for a in args[1:]]
    # TODO(synk): at real ViT sizes (dim=768, depth=12) the replicated weights
    # should be streamed per layer (depth grid axis, bf16 blocks sized for
    # v7x's 64 MiB VMEM) and not double-buffered, instead of being fully resident.

    out = pl.pallas_call(
        kernel,
        out_shape=jax.ShapeDtypeStruct((B, s_pad, nc_pad), jnp.float32),
        grid=(B // Bg,),
        in_specs=in_specs,
        out_specs=pl.BlockSpec((Bg, s_pad, nc_pad), lambda b: (b, 0, 0)),
        scratch_shapes=[pltpu.VMEM((Bg, s_pad, inner), jnp.float32)],
        compiler_params=pltpu.CompilerParams(
            # TODO(synk): on v7x with more than one batch block, switch this axis
            # to pltpu.CORE_PARALLEL (or pl.core_map) to guarantee cross-TC sharding.
            dimension_semantics=("parallel",),
            vmem_limit_bytes=32 * 1024 * 1024,
        ),
    )(*args)

    # cls pooling (row 0) + strip the lane padding of the classification head.
    return out[:, 0, :num_classes]


# ---------------------------- pure-JAX reference ------------------------------

def _ln_ref(x, g, b, eps=1e-5):
    m = jnp.mean(x, axis=-1, keepdims=True)
    v = jnp.mean((x - m) ** 2, axis=-1, keepdims=True)
    return (x - m) / jnp.sqrt(v + eps) * g + b


def vit_reference(img, p, *, patch, dim, depth, heads, dim_head, num_classes):
    B, C, H, W = img.shape
    gh, gw = H // patch, W // patch
    N = gh * gw
    P = C * patch * patch
    scale = dim_head ** -0.5

    x = img.reshape(B, C, gh, patch, gw, patch).transpose(0, 2, 4, 3, 5, 1).reshape(B, N, P)
    x = _ln_ref(x, p['ln0_g'][0], p['ln0_b'][0])
    x = x @ p['w_pe'] + p['b_pe'][0]
    x = _ln_ref(x, p['ln1_g'][0], p['ln1_b'][0])
    cls = jnp.broadcast_to(p['cls'][None], (B, 1, dim))
    x = jnp.concatenate([cls, x], axis=1) + p['pos'][None]

    for l in range(depth):
        h = _ln_ref(x, p['a_ln_g'][l], p['a_ln_b'][l])
        q = jnp.einsum('bnd,hdk->bhnk', h, p['w_q'][l])
        k = jnp.einsum('bnd,hdk->bhnk', h, p['w_k'][l])
        v = jnp.einsum('bnd,hdk->bhnk', h, p['w_v'][l])
        dots = jnp.einsum('bhnk,bhmk->bhnm', q, k) * scale
        attn = jax.nn.softmax(dots, axis=-1)
        o = jnp.einsum('bhnm,bhmk->bhnk', attn, v)
        o = jnp.einsum('bhnk,hkd->bnd', o, p['w_o'][l]) + p['b_ao'][l]
        x = x + o

        h = _ln_ref(x, p['f_ln_g'][l], p['f_ln_b'][l])
        h = h @ p['w_f1'][l] + p['b_f1'][l]
        h = jax.nn.gelu(h, approximate=False)
        h = h @ p['w_f2'][l] + p['b_f2'][l]
        x = x + h

    x = _ln_ref(x, p['lnf_g'][0], p['lnf_b'][0])
    return x[:, 0] @ p['w_head'] + p['b_head'][0]


# ------------------------------ parameter init --------------------------------

def init_params(key, *, C, patch, dim, depth, heads, dim_head, mlp_dim,
                num_classes, num_patches):
    P = C * patch * patch
    S = num_patches + 1
    ks = iter(jax.random.split(key, 32))

    def nrm(shape, s=0.02):
        return (jax.random.normal(next(ks), shape) * s).astype(jnp.float32)

    def ln_gb(shape):
        return (jnp.ones(shape, jnp.float32) + nrm(shape, 0.1), nrm(shape, 0.1))

    ln0_g, ln0_b = ln_gb((1, P))
    ln1_g, ln1_b = ln_gb((1, dim))
    a_ln_g, a_ln_b = ln_gb((depth, dim))
    f_ln_g, f_ln_b = ln_gb((depth, dim))
    lnf_g, lnf_b = ln_gb((1, dim))

    return dict(
        ln0_g=ln0_g, ln0_b=ln0_b,
        w_pe=nrm((P, dim)), b_pe=nrm((1, dim)),
        ln1_g=ln1_g, ln1_b=ln1_b,
        cls=nrm((1, dim), 1.0), pos=nrm((S, dim), 1.0),
        a_ln_g=a_ln_g, a_ln_b=a_ln_b,
        w_q=nrm((depth, heads, dim, dim_head)),
        w_k=nrm((depth, heads, dim, dim_head)),
        w_v=nrm((depth, heads, dim, dim_head)),
        w_o=nrm((depth, heads, dim_head, dim)),
        b_ao=nrm((depth, dim)),
        f_ln_g=f_ln_g, f_ln_b=f_ln_b,
        w_f1=nrm((depth, dim, mlp_dim)), b_f1=nrm((depth, mlp_dim)),
        w_f2=nrm((depth, mlp_dim, dim)), b_f2=nrm((depth, dim)),
        lnf_g=lnf_g, lnf_b=lnf_b,
        w_head=nrm((dim, num_classes)), b_head=nrm((1, num_classes)),
    )


# ----------------------------------- main --------------------------------------

if __name__ == "__main__":
    # ViT(image_size=16, patch_size=8, num_classes=10, dim=64, depth=2,
    #     heads=4, mlp_dim=128, pool='cls', channels=3, dim_head=16, dropout=0)
    B, C, H, W = 2, 3, 16, 16
    patch = 8
    dim, depth, heads, dim_head, mlp_dim, num_classes = 64, 2, 4, 16, 128, 10
    num_patches = (H // patch) * (W // patch)
    S = num_patches + 1
    S_pad = max(8, ((S + 7) // 8) * 8)                      # 8-sublane aligned tokens
    NC_pad = max(128, ((num_classes + 127) // 128) * 128)   # lane-dense head

    key = jax.random.PRNGKey(0)
    k_img, k_par = jax.random.split(key)
    img = jax.random.normal(k_img, (B, C, H, W), dtype=jnp.float32)
    params = init_params(k_par, C=C, patch=patch, dim=dim, depth=depth, heads=heads,
                         dim_head=dim_head, mlp_dim=mlp_dim, num_classes=num_classes,
                         num_patches=num_patches)
    prep = prepare_params(params, dim=dim, depth=depth, heads=heads, dim_head=dim_head,
                          num_classes=num_classes, seq_len=S, s_pad=S_pad, nc_pad=NC_pad)

    out = vit_forward(img, prep, patch=patch, dim=dim, depth=depth, heads=heads,
                      dim_head=dim_head, num_classes=num_classes,
                      s_pad=S_pad, nc_pad=NC_pad)
    out = jax.block_until_ready(out)
    assert out.shape == (B, num_classes)

    ref = vit_reference(img, params, patch=patch, dim=dim, depth=depth, heads=heads,
                        dim_head=dim_head, num_classes=num_classes)
    # bf16 matmul operands (f32 accumulation) -> slightly looser tolerance than pure f32.
    if not jnp.allclose(out, ref, atol=1e-2, rtol=1e-2):
        raise AssertionError(f"kernel/reference mismatch:\n{out}\n{ref}")

    print("KERNEL_OK")
</pallas_src>

<mosaic_0001>
module attributes {stable_mosaic.version = 11 : i64} {
  func.func @vit_kernel(%arg0: i32, %arg1: memref<2x8x192xf32, #tpu.memory_space<vmem>>, %arg2: memref<1x192xf32, #tpu.memory_space<vmem>>, %arg3: memref<1x192xf32, #tpu.memory_space<vmem>>, %arg4: memref<192x64xbf16, #tpu.memory_space<vmem>>, %arg5: memref<1x64xf32, #tpu.memory_space<vmem>>, %arg6: memref<1x64xf32, #tpu.memory_space<vmem>>, %arg7: memref<1x64xf32, #tpu.memory_space<vmem>>, %arg8: memref<1x64xf32, #tpu.memory_space<vmem>>, %arg9: memref<8x64xf32, #tpu.memory_space<vmem>>, %arg10: memref<2x64xf32, #tpu.memory_space<vmem>>, %arg11: memref<2x64xf32, #tpu.memory_space<vmem>>, %arg12: memref<2x64x192xbf16, #tpu.memory_space<vmem>>, %arg13: memref<2x64x64xbf16, #tpu.memory_space<vmem>>, %arg14: memref<2x64xf32, #tpu.memory_space<vmem>>, %arg15: memref<2x64xf32, #tpu.memory_space<vmem>>, %arg16: memref<2x64xf32, #tpu.memory_space<vmem>>, %arg17: memref<2x64x128xbf16, #tpu.memory_space<vmem>>, %arg18: memref<2x128xf32, #tpu.memory_space<vmem>>, %arg19: memref<2x128x64xbf16, #tpu.memory_space<vmem>>, %arg20: memref<2x64xf32, #tpu.memory_space<vmem>>, %arg21: memref<1x64xf32, #tpu.memory_space<vmem>>, %arg22: memref<1x64xf32, #tpu.memory_space<vmem>>, %arg23: memref<64x128xbf16, #tpu.memory_space<vmem>>, %arg24: memref<1x128xf32, #tpu.memory_space<vmem>>, %arg25: memref<2x8x128xf32, #tpu.memory_space<vmem>>, %arg26: memref<2x8x64xf32, #tpu.memory_space<vmem>>) attributes {dimension_semantics = [#tpu.dimension_semantics<parallel>], iteration_bounds = array<i64: 1>, scalar_prefetch = 0 : i64, scratch_operands = 1 : i64, tpu.core_type = #tpu.core_type<tc>, window_params = [{transform_indices = @transform_0, window_bounds = array<i64: 2, 8, 192>}, {pipeline_mode = #tpu.pipeline_mode<synchronous>, transform_indices = @transform_1, window_bounds = array<i64: 1, 192>}, {pipeline_mode = #tpu.pipeline_mode<synchronous>, transform_indices = @transform_2, window_bounds = array<i64: 1, 192>}, {pipeline_mode = #tpu.pipeline_mode<synchronous>, transform_indices = @transform_3, window_bounds = array<i64: 192, 64>}, {pipeline_mode = #tpu.pipeline_mode<synchronous>, transform_indices = @transform_4, window_bounds = array<i64: 1, 64>}, {pipeline_mode = #tpu.pipeline_mode<synchronous>, transform_indices = @transform_5, window_bounds = array<i64: 1, 64>}, {pipeline_mode = #tpu.pipeline_mode<synchronous>, transform_indices = @transform_6, window_bounds = array<i64: 1, 64>}, {pipeline_mode = #tpu.pipeline_mode<synchronous>, transform_indices = @transform_7, window_bounds = array<i64: 1, 64>}, {pipeline_mode = #tpu.pipeline_mode<synchronous>, transform_indices = @transform_8, window_bounds = array<i64: 8, 64>}, {pipeline_mode = #tpu.pipeline_mode<synchronous>, transform_indices = @transform_9, window_bounds = array<i64: 2, 64>}, {pipeline_mode = #tpu.pipeline_mode<synchronous>, transform_indices = @transform_10, window_bounds = array<i64: 2, 64>}, {pipeline_mode = #tpu.pipeline_mode<synchronous>, transform_indices = @transform_11, window_bounds = array<i64: 2, 64, 192>}, {pipeline_mode = #tpu.pipeline_mode<synchronous>, transform_indices = @transform_12, window_bounds = array<i64: 2, 64, 64>}, {pipeline_mode = #tpu.pipeline_mode<synchronous>, transform_indices = @transform_13, window_bounds = array<i64: 2, 64>}, {pipeline_mode = #tpu.pipeline_mode<synchronous>, transform_indices = @transform_14, window_bounds = array<i64: 2, 64>}, {pipeline_mode = #tpu.pipeline_mode<synchronous>, transform_indices = @transform_15, window_bounds = array<i64: 2, 64>}, {pipeline_mode = #tpu.pipeline_mode<synchronous>, transform_indices = @transform_16, window_bounds = array<i64: 2, 64, 128>}, {pipeline_mode = #tpu.pipeline_mode<synchronous>, transform_indices = @transform_17, window_bounds = array<i64: 2, 128>}, {pipeline_mode = #tpu.pipeline_mode<synchronous>, transform_indices = @transform_18, window_bounds = array<i64: 2, 128, 64>}, {pipeline_mode = #tpu.pipeline_mode<synchronous>, transform_indices = @transform_19, window_bounds = array<i64: 2, 64>}, {pipeline_mode = #tpu.pipeline_mode<synchronous>, transform_indices = @transform_20, window_bounds = array<i64: 1, 64>}, {pipeline_mode = #tpu.pipeline_mode<synchronous>, transform_indices = @transform_21, window_bounds = array<i64: 1, 64>}, {pipeline_mode = #tpu.pipeline_mode<synchronous>, transform_indices = @transform_22, window_bounds = array<i64: 64, 128>}, {pipeline_mode = #tpu.pipeline_mode<synchronous>, transform_indices = @transform_23, window_bounds = array<i64: 1, 128>}, {transform_indices = @transform_24, window_bounds = array<i64: 2, 8, 128>}]} {
    %c0 = arith.constant 0 : index
    %c0_0 = arith.constant 0 : index
    %c0_1 = arith.constant 0 : index
    %0 = vector.load %arg1[%c0, %c0_0, %c0_1] : memref<2x8x192xf32, #tpu.memory_space<vmem>>, vector<2x8x192xf32>
    %1 = vector.shape_cast %0 : vector<2x8x192xf32> to vector<16x192xf32>
    %c0_2 = arith.constant 0 : index
    %c0_3 = arith.constant 0 : index
    %2 = vector.load %arg2[%c0_2, %c0_3] : memref<1x192xf32, #tpu.memory_space<vmem>>, vector<1x192xf32>
    %c0_4 = arith.constant 0 : index
    %c0_5 = arith.constant 0 : index
    %3 = vector.load %arg3[%c0_4, %c0_5] : memref<1x192xf32, #tpu.memory_space<vmem>>, vector<1x192xf32>
    %cst = arith.constant dense<0.000000e+00> : vector<16xf32>
    %4 = vector.multi_reduction <add>, %1, %cst [1] : vector<16x192xf32> to vector<16xf32>
    %5 = vector.shape_cast %4 : vector<16xf32> to vector<16x1xf32>
    %cst_6 = arith.constant 1.920000e+02 : f32
    %6 = vector.broadcast %cst_6 : f32 to vector<16x1xf32>
    %7 = arith.divf %5, %6 : vector<16x1xf32>
    %8 = vector.broadcast %7 : vector<16x1xf32> to vector<16x192xf32>
    %9 = arith.subf %1, %8 : vector<16x192xf32>
    %10 = arith.mulf %9, %9 : vector<16x192xf32>
    %cst_7 = arith.constant dense<0.000000e+00> : vector<16xf32>
    %11 = vector.multi_reduction <add>, %10, %cst_7 [1] : vector<16x192xf32> to vector<16xf32>
    %12 = vector.shape_cast %11 : vector<16xf32> to vector<16x1xf32>
    %cst_8 = arith.constant 1.920000e+02 : f32
    %13 = vector.broadcast %cst_8 : f32 to vector<16x1xf32>
    %14 = arith.divf %12, %13 : vector<16x1xf32>
    %15 = vector.broadcast %7 : vector<16x1xf32> to vector<16x192xf32>
    %16 = arith.subf %1, %15 : vector<16x192xf32>
    %cst_9 = arith.constant 9.99999974E-6 : f32
    %17 = vector.broadcast %cst_9 : f32 to vector<16x1xf32>
    %18 = arith.addf %14, %17 : vector<16x1xf32>
    %19 = math.rsqrt %18 : vector<16x1xf32>
    %20 = vector.broadcast %19 : vector<16x1xf32> to vector<16x192xf32>
    %21 = arith.mulf %16, %20 : vector<16x192xf32>
    %22 = vector.broadcast %2 : vector<1x192xf32> to vector<16x192xf32>
    %23 = arith.mulf %21, %22 : vector<16x192xf32>
    %24 = vector.broadcast %3 : vector<1x192xf32> to vector<16x192xf32>
    %25 = arith.addf %23, %24 : vector<16x192xf32>
    %c0_10 = arith.constant 0 : index
    %c0_11 = arith.constant 0 : index
    %26 = vector.load %arg4[%c0_10, %c0_11] : memref<192x64xbf16, #tpu.memory_space<vmem>>, vector<192x64xbf16>
    %27 = arith.truncf %25 : vector<16x192xf32> to vector<16x192xbf16>
    %cst_12 = arith.constant dense<0.000000e+00> : vector<16x64xf32>
    %28 = tpu.matmul %27, %26, %cst_12 {dimension_numbers = #tpu.dot_dimension_numbers<[1], [0], [0], [1], [0, 0, 1, 1], [], []>} : vector<16x192xbf16>, vector<192x64xbf16>, vector<16x64xf32> -> vector<16x64xf32>
    %c0_13 = arith.constant 0 : index
    %c0_14 = arith.constant 0 : index
    %29 = vector.load %arg5[%c0_13, %c0_14] : memref<1x64xf32, #tpu.memory_space<vmem>>, vector<1x64xf32>
    %30 = vector.broadcast %29 : vector<1x64xf32> to vector<16x64xf32>
    %31 = arith.addf %28, %30 : vector<16x64xf32>
    %c0_15 = arith.constant 0 : index
    %c0_16 = arith.constant 0 : index
    %32 = vector.load %arg6[%c0_15, %c0_16] : memref<1x64xf32, #tpu.memory_space<vmem>>, vector<1x64xf32>
    %c0_17 = arith.constant 0 : index
    %c0_18 = arith.constant 0 : index
    %33 = vector.load %arg7[%c0_17, %c0_18] : memref<1x64xf32, #tpu.memory_space<vmem>>, vector<1x64xf32>
    %cst_19 = arith.constant dense<0.000000e+00> : vector<16xf32>
    %34 = vector.multi_reduction <add>, %31, %cst_19 [1] : vector<16x64xf32> to vector<16xf32>
    %35 = vector.shape_cast %34 : vector<16xf32> to vector<16x1xf32>
    %cst_20 = arith.constant 6.400000e+01 : f32
    %36 = vector.broadcast %cst_20 : f32 to vector<16x1xf32>
    %37 = arith.divf %35, %36 : vector<16x1xf32>
    %38 = vector.broadcast %37 : vector<16x1xf32> to vector<16x64xf32>
    %39 = arith.subf %31, %38 : vector<16x64xf32>
    %40 = arith.mulf %39, %39 : vector<16x64xf32>
    %cst_21 = arith.constant dense<0.000000e+00> : vector<16xf32>
    %41 = vector.multi_reduction <add>, %40, %cst_21 [1] : vector<16x64xf32> to vector<16xf32>
    %42 = vector.shape_cast %41 : vector<16xf32> to vector<16x1xf32>
    %cst_22 = arith.constant 6.400000e+01 : f32
    %43 = vector.broadcast %cst_22 : f32 to vector<16x1xf32>
    %44 = arith.divf %42, %43 : vector<16x1xf32>
    %45 = vector.broadcast %37 : vector<16x1xf32> to vector<16x64xf32>
    %46 = arith.subf %31, %45 : vector<16x64xf32>
    %cst_23 = arith.constant 9.99999974E-6 : f32
    %47 = vector.broadcast %cst_23 : f32 to vector<16x1xf32>
    %48 = arith.addf %44, %47 : vector<16x1xf32>
    %49 = math.rsqrt %48 : vector<16x1xf32>
    %50 = vector.broadcast %49 : vector<16x1xf32> to vector<16x64xf32>
    %51 = arith.mulf %46, %50 : vector<16x64xf32>
    %52 = vector.broadcast %32 : vector<1x64xf32> to vector<16x64xf32>
    %53 = arith.mulf %51, %52 : vector<16x64xf32>
    %54 = vector.broadcast %33 : vector<1x64xf32> to vector<16x64xf32>
    %55 = arith.addf %53, %54 : vector<16x64xf32>
    %56 = vector.shape_cast %55 : vector<16x64xf32> to vector<2x8x64xf32>
    %57 = tpu.iota {dimensions = array<i32: 1>} : vector<2x8x64xi32>
    %c0_i32 = arith.constant 0 : i32
    %58 = vector.broadcast %c0_i32 : i32 to vector<2x8x64xi32>
    %59 = arith.cmpi eq, %57, %58 : vector<2x8x64xi32>
    %c0_24 = arith.constant 0 : index
    %c0_25 = arith.constant 0 : index
    %60 = vector.load %arg8[%c0_24, %c0_25] : memref<1x64xf32, #tpu.memory_space<vmem>>, vector<1x64xf32>
    %61 = vector.shape_cast %60 : vector<1x64xf32> to vector<1x1x64xf32>
    %62 = vector.broadcast %61 : vector<1x1x64xf32> to vector<2x8x64xf32>
    %63 = arith.select %59, %62, %56 : vector<2x8x64xi1>, vector<2x8x64xf32>
    %c0_26 = arith.constant 0 : index
    %c0_27 = arith.constant 0 : index
    %64 = vector.load %arg9[%c0_26, %c0_27] : memref<8x64xf32, #tpu.memory_space<vmem>>, vector<8x64xf32>
    %65 = vector.shape_cast %64 : vector<8x64xf32> to vector<1x8x64xf32>
    %66 = vector.broadcast %65 : vector<1x8x64xf32> to vector<2x8x64xf32>
    %67 = arith.addf %63, %66 : vector<2x8x64xf32>
    %68 = vector.shape_cast %67 : vector<2x8x64xf32> to vector<16x64xf32>
    %69 = tpu.iota {dimensions = array<i32: 2>} : vector<2x8x8xi32>
    %c5_i32 = arith.constant 5 : i32
    %70 = vector.broadcast %c5_i32 : i32 to vector<2x8x8xi32>
    %71 = arith.cmpi slt, %69, %70 : vector<2x8x8xi32>
    %c0_28 = arith.constant 0 : index
    %c0_29 = arith.constant 0 : index
    %72 = vector.load %arg10[%c0_28, %c0_29] : memref<2x64xf32, #tpu.memory_space<vmem>>, vector<1x64xf32>
    %c0_30 = arith.constant 0 : index
    %c0_31 = arith.constant 0 : index
    %73 = vector.load %arg11[%c0_30, %c0_31] : memref<2x64xf32, #tpu.memory_space<vmem>>, vector<1x64xf32>
    %cst_32 = arith.constant dense<0.000000e+00> : vector<16xf32>
    %74 = vector.multi_reduction <add>, %68, %cst_32 [1] : vector<16x64xf32> to vector<16xf32>
    %75 = vector.shape_cast %74 : vector<16xf32> to vector<16x1xf32>
    %cst_33 = arith.constant 6.400000e+01 : f32
    %76 = vector.broadcast %cst_33 : f32 to vector<16x1xf32>
    %77 = arith.divf %75, %76 : vector<16x1xf32>
    %78 = vector.broadcast %77 : vector<16x1xf32> to vector<16x64xf32>
    %79 = arith.subf %68, %78 : vector<16x64xf32>
    %80 = arith.mulf %79, %79 : vector<16x64xf32>
    %cst_34 = arith.constant dense<0.000000e+00> : vector<16xf32>
    %81 = vector.multi_reduction <add>, %80, %cst_34 [1] : vector<16x64xf32> to vector<16xf32>
    %82 = vector.shape_cast %81 : vector<16xf32> to vector<16x1xf32>
    %cst_35 = arith.constant 6.400000e+01 : f32
    %83 = vector.broadcast %cst_35 : f32 to vector<16x1xf32>
    %84 = arith.divf %82, %83 : vector<16x1xf32>
    %85 = vector.broadcast %77 : vector<16x1xf32> to vector<16x64xf32>
    %86 = arith.subf %68, %85 : vector<16x64xf32>
    %cst_36 = arith.constant 9.99999974E-6 : f32
    %87 = vector.broadcast %cst_36 : f32 to vector<16x1xf32>
    %88 = arith.addf %84, %87 : vector<16x1xf32>
    %89 = math.rsqrt %88 : vector<16x1xf32>
    %90 = vector.broadcast %89 : vector<16x1xf32> to vector<16x64xf32>
    %91 = arith.mulf %86, %90 : vector<16x64xf32>
    %92 = vector.broadcast %72 : vector<1x64xf32> to vector<16x64xf32>
    %93 = arith.mulf %91, %92 : vector<16x64xf32>
    %94 = vector.broadcast %73 : vector<1x64xf32> to vector<16x64xf32>
    %95 = arith.addf %93, %94 : vector<16x64xf32>
    %c0_37 = arith.constant 0 : index
    %c0_38 = arith.constant 0 : index
    %c0_39 = arith.constant 0 : index
    %96 = vector.load %arg12[%c0_37, %c0_38, %c0_39] : memref<2x64x192xbf16, #tpu.memory_space<vmem>>, vector<1x64x192xbf16>
    %97 = vector.shape_cast %96 : vector<1x64x192xbf16> to vector<64x192xbf16>
    %98 = arith.truncf %95 : vector<16x64xf32> to vector<16x64xbf16>
    %cst_40 = arith.constant dense<0.000000e+00> : vector<16x192xf32>
    %99 = tpu.matmul %98, %97, %cst_40 {dimension_numbers = #tpu.dot_dimension_numbers<[1], [0], [0], [1], [0, 0, 1, 1], [], []>} : vector<16x64xbf16>, vector<64x192xbf16>, vector<16x192xf32> -> vector<16x192xf32>
    %100 = vector.shape_cast %99 : vector<16x192xf32> to vector<2x8x192xf32>
    %101 = vector.extract_strided_slice %100 {offsets = [0, 0, 0], sizes = [2, 8, 16], strides = [1, 1, 1]} : vector<2x8x192xf32> to vector<2x8x16xf32>
    %102 = vector.extract_strided_slice %100 {offsets = [0, 0, 64], sizes = [2, 8, 16], strides = [1, 1, 1]} : vector<2x8x192xf32> to vector<2x8x16xf32>
    %103 = vector.extract_strided_slice %100 {offsets = [0, 0, 128], sizes = [2, 8, 16], strides = [1, 1, 1]} : vector<2x8x192xf32> to vector<2x8x16xf32>
    %104 = arith.truncf %101 : vector<2x8x16xf32> to vector<2x8x16xbf16>
    %105 = arith.truncf %102 : vector<2x8x16xf32> to vector<2x8x16xbf16>
    "tpu.trace_start"() <{level = 10 : i32, message = "bnd,bmd->bnm"}> : () -> ()
    %cst_41 = arith.constant dense<0.000000e+00> : vector<2x8x8xf32>
    %106 = tpu.matmul %104, %105, %cst_41 {dimension_numbers = #tpu.dot_dimension_numbers<[2], [2], [1], [1], [0, 0, 0, 1, 1, 1], [0], [0]>} : vector<2x8x16xbf16>, vector<2x8x16xbf16>, vector<2x8x8xf32> -> vector<2x8x8xf32>
    %cst_42 = arith.constant -1.000000e+30 : f32
    "tpu.trace_stop"() : () -> ()
    %107 = vector.broadcast %cst_42 : f32 to vector<2x8x8xf32>
    %108 = arith.select %71, %106, %107 : vector<2x8x8xi1>, vector<2x8x8xf32>
    %cst_43 = arith.constant dense<0xFF800000> : vector<2x8xf32>
    %109 = vector.multi_reduction <maximumf>, %108, %cst_43 [2] : vector<2x8x8xf32> to vector<2x8xf32>
    %110 = vector.shape_cast %109 : vector<2x8xf32> to vector<2x8x1xf32>
    %111 = vector.broadcast %110 : vector<2x8x1xf32> to vector<2x8x8xf32>
    %112 = arith.subf %108, %111 : vector<2x8x8xf32>
    %113 = math.exp %112 : vector<2x8x8xf32>
    %cst_44 = arith.constant dense<0.000000e+00> : vector<2x8xf32>
    %114 = vector.multi_reduction <add>, %113, %cst_44 [2] : vector<2x8x8xf32> to vector<2x8xf32>
    %115 = vector.shape_cast %114 : vector<2x8xf32> to vector<2x8x1xf32>
    %116 = vector.broadcast %115 : vector<2x8x1xf32> to vector<2x8x8xf32>
    %117 = arith.divf %113, %116 : vector<2x8x8xf32>
    %118 = arith.truncf %117 : vector<2x8x8xf32> to vector<2x8x8xbf16>
    %119 = arith.truncf %103 : vector<2x8x16xf32> to vector<2x8x16xbf16>
    "tpu.trace_start"() <{level = 10 : i32, message = "bnm,bmd->bnd"}> : () -> ()
    %cst_45 = arith.constant dense<0.000000e+00> : vector<2x8x16xf32>
    %120 = tpu.matmul %118, %119, %cst_45 {dimension_numbers = #tpu.dot_dimension_numbers<[2], [1], [1], [2], [0, 0, 0, 1, 1, 2], [0], [0]>} : vector<2x8x8xbf16>, vector<2x8x16xbf16>, vector<2x8x16xf32> -> vector<2x8x16xf32>
    "tpu.trace_stop"() : () -> ()
    %c0_46 = arith.constant 0 : index
    %c0_47 = arith.constant 0 : index
    %c0_48 = arith.constant 0 : index
    %121 = vector.load %arg26[%c0_46, %c0_47, %c0_48] : memref<2x8x64xf32, #tpu.memory_space<vmem>>, vector<2x8x16xf32>
    tpu.vector_store %arg26[%c0_46, %c0_47, %c0_48], %120 {strides = array<i32>} : memref<2x8x64xf32, #tpu.memory_space<vmem>>, vector<2x8x16xf32>,
    %122 = vector.extract_strided_slice %100 {offsets = [0, 0, 16], sizes = [2, 8, 16], strides = [1, 1, 1]} : vector<2x8x192xf32> to vector<2x8x16xf32>
    %123 = vector.extract_strided_slice %100 {offsets = [0, 0, 80], sizes = [2, 8, 16], strides = [1, 1, 1]} : vector<2x8x192xf32> to vector<2x8x16xf32>
    %124 = vector.extract_strided_slice %100 {offsets = [0, 0, 144], sizes = [2, 8, 16], strides = [1, 1, 1]} : vector<2x8x192xf32> to vector<2x8x16xf32>
    %125 = arith.truncf %122 : vector<2x8x16xf32> to vector<2x8x16xbf16>
    %126 = arith.truncf %123 : vector<2x8x16xf32> to vector<2x8x16xbf16>
    "tpu.trace_start"() <{level = 10 : i32, message = "bnd,bmd->bnm"}> : () -> ()
    %cst_49 = arith.constant dense<0.000000e+00> : vector<2x8x8xf32>
    %127 = tpu.matmul %125, %126, %cst_49 {dimension_numbers = #tpu.dot_dimension_numbers<[2], [2], [1], [1], [0, 0, 0, 1, 1, 1], [0], [0]>} : vector<2x8x16xbf16>, vector<2x8x16xbf16>, vector<2x8x8xf32> -> vector<2x8x8xf32>
    %cst_50 = arith.constant -1.000000e+30 : f32
    "tpu.trace_stop"() : () -> ()
    %128 = vector.broadcast %cst_50 : f32 to vector<2x8x8xf32>
    %129 = arith.select %71, %127, %128 : vector<2x8x8xi1>, vector<2x8x8xf32>
    %cst_51 = arith.constant dense<0xFF800000> : vector<2x8xf32>
    %130 = vector.multi_reduction <maximumf>, %129, %cst_51 [2] : vector<2x8x8xf32> to vector<2x8xf32>
    %131 = vector.shape_cast %130 : vector<2x8xf32> to vector<2x8x1xf32>
    %132 = vector.broadcast %131 : vector<2x8x1xf32> to vector<2x8x8xf32>
    %133 = arith.subf %129, %132 : vector<2x8x8xf32>
    %134 = math.exp %133 : vector<2x8x8xf32>
    %cst_52 = arith.constant dense<0.000000e+00> : vector<2x8xf32>
    %135 = vector.multi_reduction <add>, %134, %cst_52 [2] : vector<2x8x8xf32> to vector<2x8xf32>
    %136 = vector.shape_cast %135 : vector<2x8xf32> to vector<2x8x1xf32>
    %137 = vector.broadcast %136 : vector<2x8x1xf32> to vector<2x8x8xf32>
    %138 = arith.divf %134, %137 : vector<2x8x8xf32>
    %139 = arith.truncf %138 : vector<2x8x8xf32> to vector<2x8x8xbf16>
    %140 = arith.truncf %124 : vector<2x8x16xf32> to vector<2x8x16xbf16>
    "tpu.trace_start"() <{level = 10 : i32, message = "bnm,bmd->bnd"}> : () -> ()
    %cst_53 = arith.constant dense<0.000000e+00> : vector<2x8x16xf32>
    %141 = tpu.matmul %139, %140, %cst_53 {dimension_numbers = #tpu.dot_dimension_numbers<[2], [1], [1], [2], [0, 0, 0, 1, 1, 2], [0], [0]>} : vector<2x8x8xbf16>, vector<2x8x16xbf16>, vector<2x8x16xf32> -> vector<2x8x16xf32>
    "tpu.trace_stop"() : () -> ()
    %c0_54 = arith.constant 0 : index
    %c0_55 = arith.constant 0 : index
    %c16 = arith.constant 16 : index
    %142 = vector.load %arg26[%c0_54, %c0_55, %c16] : memref<2x8x64xf32, #tpu.memory_space<vmem>>, vector<2x8x16xf32>
    tpu.vector_store %arg26[%c0_54, %c0_55, %c16], %141 {strides = array<i32>} : memref<2x8x64xf32, #tpu.memory_space<vmem>>, vector<2x8x16xf32>,
    %143 = vector.extract_strided_slice %100 {offsets = [0, 0, 32], sizes = [2, 8, 16], strides = [1, 1, 1]} : vector<2x8x192xf32> to vector<2x8x16xf32>
    %144 = vector.extract_strided_slice %100 {offsets = [0, 0, 96], sizes = [2, 8, 16], strides = [1, 1, 1]} : vector<2x8x192xf32> to vector<2x8x16xf32>
    %145 = vector.extract_strided_slice %100 {offsets = [0, 0, 160], sizes = [2, 8, 16], strides = [1, 1, 1]} : vector<2x8x192xf32> to vector<2x8x16xf32>
    %146 = arith.truncf %143 : vector<2x8x16xf32> to vector<2x8x16xbf16>
    %147 = arith.truncf %144 : vector<2x8x16xf32> to vector<2x8x16xbf16>
    "tpu.trace_start"() <{level = 10 : i32, message = "bnd,bmd->bnm"}> : () -> ()
    %cst_56 = arith.constant dense<0.000000e+00> : vector<2x8x8xf32>
    %148 = tpu.matmul %146, %147, %cst_56 {dimension_numbers = #tpu.dot_dimension_numbers<[2], [2], [1], [1], [0, 0, 0, 1, 1, 1], [0], [0]>} : vector<2x8x16xbf16>, vector<2x8x16xbf16>, vector<2x8x8xf32> -> vector<2x8x8xf32>
    %cst_57 = arith.constant -1.000000e+30 : f32
    "tpu.trace_stop"() : () -> ()
    %149 = vector.broadcast %cst_57 : f32 to vector<2x8x8xf32>
    %150 = arith.select %71, %148, %149 : vector<2x8x8xi1>, vector<2x8x8xf32>
    %cst_58 = arith.constant dense<0xFF800000> : vector<2x8xf32>
    %151 = vector.multi_reduction <maximumf>, %150, %cst_58 [2] : vector<2x8x8xf32> to vector<2x8xf32>
    %152 = vector.shape_cast %151 : vector<2x8xf32> to vector<2x8x1xf32>
    %153 = vector.broadcast %152 : vector<2x8x1xf32> to vector<2x8x8xf32>
    %154 = arith.subf %150, %153 : vector<2x8x8xf32>
    %155 = math.exp %154 : vector<2x8x8xf32>
    %cst_59 = arith.constant dense<0.000000e+00> : vector<2x8xf32>
    %156 = vector.multi_reduction <add>, %155, %cst_59 [2] : vector<2x8x8xf32> to vector<2x8xf32>
    %157 = vector.shape_cast %156 : vector<2x8xf32> to vector<2x8x1xf32>
    %158 = vector.broadcast %157 : vector<2x8x1xf32> to vector<2x8x8xf32>
    %159 = arith.divf %155, %158 : vector<2x8x8xf32>
    %160 = arith.truncf %159 : vector<2x8x8xf32> to vector<2x8x8xbf16>
    %161 = arith.truncf %145 : vector<2x8x16xf32> to vector<2x8x16xbf16>
    "tpu.trace_start"() <{level = 10 : i32, message = "bnm,bmd->bnd"}> : () -> ()
    %cst_60 = arith.constant dense<0.000000e+00> : vector<2x8x16xf32>
    %162 = tpu.matmul %160, %161, %cst_60 {dimension_numbers = #tpu.dot_dimension_numbers<[2], [1], [1], [2], [0, 0, 0, 1, 1, 2], [0], [0]>} : vector<2x8x8xbf16>, vector<2x8x16xbf16>, vector<2x8x16xf32> -> vector<2x8x16xf32>
    "tpu.trace_stop"() : () -> ()
    %c0_61 = arith.constant 0 : index
    %c0_62 = arith.constant 0 : index
    %c32 = arith.constant 32 : index
    %163 = vector.load %arg26[%c0_61, %c0_62, %c32] : memref<2x8x64xf32, #tpu.memory_space<vmem>>, vector<2x8x16xf32>
    tpu.vector_store %arg26[%c0_61, %c0_62, %c32], %162 {strides = array<i32>} : memref<2x8x64xf32, #tpu.memory_space<vmem>>, vector<2x8x16xf32>,
    %164 = vector.extract_strided_slice %100 {offsets = [0, 0, 48], sizes = [2, 8, 16], strides = [1, 1, 1]} : vector<2x8x192xf32> to vector<2x8x16xf32>
    %165 = vector.extract_strided_slice %100 {offsets = [0, 0, 112], sizes = [2, 8, 16], strides = [1, 1, 1]} : vector<2x8x192xf32> to vector<2x8x16xf32>
    %166 = vector.extract_strided_slice %100 {offsets = [0, 0, 176], sizes = [2, 8, 16], strides = [1, 1, 1]} : vector<2x8x192xf32> to vector<2x8x16xf32>
    %167 = arith.truncf %164 : vector<2x8x16xf32> to vector<2x8x16xbf16>
    %168 = arith.truncf %165 : vector<2x8x16xf32> to vector<2x8x16xbf16>
    "tpu.trace_start"() <{level = 10 : i32, message = "bnd,bmd->bnm"}> : () -> ()
    %cst_63 = arith.constant dense<0.000000e+00> : vector<2x8x8xf32>
    %169 = tpu.matmul %167, %168, %cst_63 {dimension_numbers = #tpu.dot_dimension_numbers<[2], [2], [1], [1], [0, 0, 0, 1, 1, 1], [0], [0]>} : vector<2x8x16xbf16>, vector<2x8x16xbf16>, vector<2x8x8xf32> -> vector<2x8x8xf32>
    %cst_64 = arith.constant -1.000000e+30 : f32
    "tpu.trace_stop"() : () -> ()
    %170 = vector.broadcast %cst_64 : f32 to vector<2x8x8xf32>
    %171 = arith.select %71, %169, %170 : vector<2x8x8xi1>, vector<2x8x8xf32>
    %cst_65 = arith.constant dense<0xFF800000> : vector<2x8xf32>
    %172 = vector.multi_reduction <maximumf>, %171, %cst_65 [2] : vector<2x8x8xf32> to vector<2x8xf32>
    %173 = vector.shape_cast %172 : vector<2x8xf32> to vector<2x8x1xf32>
    %174 = vector.broadcast %173 : vector<2x8x1xf32> to vector<2x8x8xf32>
    %175 = arith.subf %171, %174 : vector<2x8x8xf32>
    %176 = math.exp %175 : vector<2x8x8xf32>
    %cst_66 = arith.constant dense<0.000000e+00> : vector<2x8xf32>
    %177 = vector.multi_reduction <add>, %176, %cst_66 [2] : vector<2x8x8xf32> to vector<2x8xf32>
    %178 = vector.shape_cast %177 : vector<2x8xf32> to vector<2x8x1xf32>
    %179 = vector.broadcast %178 : vector<2x8x1xf32> to vector<2x8x8xf32>
    %180 = arith.divf %176, %179 : vector<2x8x8xf32>
    %181 = arith.truncf %180 : vector<2x8x8xf32> to vector<2x8x8xbf16>
    %182 = arith.truncf %166 : vector<2x8x16xf32> to vector<2x8x16xbf16>
    "tpu.trace_start"() <{level = 10 : i32, message = "bnm,bmd->bnd"}> : () -> ()
    %cst_67 = arith.constant dense<0.000000e+00> : vector<2x8x16xf32>
    %183 = tpu.matmul %181, %182, %cst_67 {dimension_numbers = #tpu.dot_dimension_numbers<[2], [1], [1], [2], [0, 0, 0, 1, 1, 2], [0], [0]>} : vector<2x8x8xbf16>, vector<2x8x16xbf16>, vector<2x8x16xf32> -> vector<2x8x16xf32>
    "tpu.trace_stop"() : () -> ()
    %c0_68 = arith.constant 0 : index
    %c0_69 = arith.constant 0 : index
    %c48 = arith.constant 48 : index
    %184 = vector.load %arg26[%c0_68, %c0_69, %c48] : memref<2x8x64xf32, #tpu.memory_space<vmem>>, vector<2x8x16xf32>
    tpu.vector_store %arg26[%c0_68, %c0_69, %c48], %183 {strides = array<i32>} : memref<2x8x64xf32, #tpu.memory_space<vmem>>, vector<2x8x16xf32>,
    %c0_70 = arith.constant 0 : index
    %c0_71 = arith.constant 0 : index
    %c0_72 = arith.constant 0 : index
    %185 = vector.load %arg26[%c0_70, %c0_71, %c0_72] : memref<2x8x64xf32, #tpu.memory_space<vmem>>, vector<2x8x64xf32>
    %186 = vector.shape_cast %185 : vector<2x8x64xf32> to vector<16x64xf32>
    %c0_73 = arith.constant 0 : index
    %c0_74 = arith.constant 0 : index
    %c0_75 = arith.constant 0 : index
    %187 = vector.load %arg13[%c0_73, %c0_74, %c0_75] : memref<2x64x64xbf16, #tpu.memory_space<vmem>>, vector<1x64x64xbf16>
    %188 = vector.shape_cast %187 : vector<1x64x64xbf16> to vector<64x64xbf16>
    %189 = arith.truncf %186 : vector<16x64xf32> to vector<16x64xbf16>
    %cst_76 = arith.constant dense<0.000000e+00> : vector<16x64xf32>
    %190 = tpu.matmul %189, %188, %cst_76 {dimension_numbers = #tpu.dot_dimension_numbers<[1], [0], [0], [1], [0, 0, 1, 1], [], []>} : vector<16x64xbf16>, vector<64x64xbf16>, vector<16x64xf32> -> vector<16x64xf32>
    %c0_77 = arith.constant 0 : index
    %c0_78 = arith.constant 0 : index
    %191 = vector.load %arg14[%c0_77, %c0_78] : memref<2x64xf32, #tpu.memory_space<vmem>>, vector<1x64xf32>
    %192 = vector.broadcast %191 : vector<1x64xf32> to vector<16x64xf32>
    %193 = arith.addf %190, %192 : vector<16x64xf32>
    %194 = arith.addf %68, %193 : vector<16x64xf32>
    %c0_79 = arith.constant 0 : index
    %c0_80 = arith.constant 0 : index
    %195 = vector.load %arg15[%c0_79, %c0_80] : memref<2x64xf32, #tpu.memory_space<vmem>>, vector<1x64xf32>
    %c0_81 = arith.constant 0 : index
    %c0_82 = arith.constant 0 : index
    %196 = vector.load %arg16[%c0_81, %c0_82] : memref<2x64xf32, #tpu.memory_space<vmem>>, vector<1x64xf32>
    %cst_83 = arith.constant dense<0.000000e+00> : vector<16xf32>
    %197 = vector.multi_reduction <add>, %194, %cst_83 [1] : vector<16x64xf32> to vector<16xf32>
    %198 = vector.shape_cast %197 : vector<16xf32> to vector<16x1xf32>
    %cst_84 = arith.constant 6.400000e+01 : f32
    %199 = vector.broadcast %cst_84 : f32 to vector<16x1xf32>
    %200 = arith.divf %198, %199 : vector<16x1xf32>
    %201 = vector.broadcast %200 : vector<16x1xf32> to vector<16x64xf32>
    %202 = arith.subf %194, %201 : vector<16x64xf32>
    %203 = arith.mulf %202, %202 : vector<16x64xf32>
    %cst_85 = arith.constant dense<0.000000e+00> : vector<16xf32>
    %204 = vector.multi_reduction <add>, %203, %cst_85 [1] : vector<16x64xf32> to vector<16xf32>
    %205 = vector.shape_cast %204 : vector<16xf32> to vector<16x1xf32>
    %cst_86 = arith.constant 6.400000e+01 : f32
    %206 = vector.broadcast %cst_86 : f32 to vector<16x1xf32>
    %207 = arith.divf %205, %206 : vector<16x1xf32>
    %208 = vector.broadcast %200 : vector<16x1xf32> to vector<16x64xf32>
    %209 = arith.subf %194, %208 : vector<16x64xf32>
    %cst_87 = arith.constant 9.99999974E-6 : f32
    %210 = vector.broadcast %cst_87 : f32 to vector<16x1xf32>
    %211 = arith.addf %207, %210 : vector<16x1xf32>
    %212 = math.rsqrt %211 : vector<16x1xf32>
    %213 = vector.broadcast %212 : vector<16x1xf32> to vector<16x64xf32>
    %214 = arith.mulf %209, %213 : vector<16x64xf32>
    %215 = vector.broadcast %195 : vector<1x64xf32> to vector<16x64xf32>
    %216 = arith.mulf %214, %215 : vector<16x64xf32>
    %217 = vector.broadcast %196 : vector<1x64xf32> to vector<16x64xf32>
    %218 = arith.addf %216, %217 : vector<16x64xf32>
    %c0_88 = arith.constant 0 : index
    %c0_89 = arith.constant 0 : index
    %c0_90 = arith.constant 0 : index
    %219 = vector.load %arg17[%c0_88, %c0_89, %c0_90] : memref<2x64x128xbf16, #tpu.memory_space<vmem>>, vector<1x64x128xbf16>
    %220 = vector.shape_cast %219 : vector<1x64x128xbf16> to vector<64x128xbf16>
    %221 = arith.truncf %218 : vector<16x64xf32> to vector<16x64xbf16>
    %cst_91 = arith.constant dense<0.000000e+00> : vector<16x128xf32>
    %222 = tpu.matmul %221, %220, %cst_91 {dimension_numbers = #tpu.dot_dimension_numbers<[1], [0], [0], [1], [0, 0, 1, 1], [], []>} : vector<16x64xbf16>, vector<64x128xbf16>, vector<16x128xf32> -> vector<16x128xf32>
    %c0_92 = arith.constant 0 : index
    %c0_93 = arith.constant 0 : index
    %223 = vector.load %arg18[%c0_92, %c0_93] : memref<2x128xf32, #tpu.memory_space<vmem>>, vector<1x128xf32>
    %224 = vector.broadcast %223 : vector<1x128xf32> to vector<16x128xf32>
    %225 = arith.addf %222, %224 : vector<16x128xf32>
    %cst_94 = arith.constant 5.000000e-01 : f32
    %226 = vector.broadcast %cst_94 : f32 to vector<16x128xf32>
    %227 = arith.mulf %226, %225 : vector<16x128xf32>
    %cst_95 = arith.constant 0.707106769 : f32
    %228 = vector.broadcast %cst_95 : f32 to vector<16x128xf32>
    %229 = arith.mulf %225, %228 : vector<16x128xf32>
    %cst_96 = arith.constant 0.000000e+00 : f32
    %230 = vector.broadcast %cst_96 : f32 to vector<16x128xf32>
    %231 = arith.cmpf oge, %229, %230 : vector<16x128xf32>
    %cst_97 = arith.constant 1.000000e+00 : f32
    %cst_98 = arith.constant -1.000000e+00 : f32
    %232 = vector.broadcast %cst_97 : f32 to vector<16x128xf32>
    %233 = vector.broadcast %cst_98 : f32 to vector<16x128xf32>
    %234 = arith.select %231, %232, %233 : vector<16x128xi1>, vector<16x128xf32>
    %235 = math.absf %229 : vector<16x128xf32>
    %cst_99 = arith.constant 0.327591091 : f32
    %236 = vector.broadcast %cst_99 : f32 to vector<16x128xf32>
    %237 = arith.mulf %236, %235 : vector<16x128xf32>
    %cst_100 = arith.constant 1.000000e+00 : f32
    %238 = vector.broadcast %cst_100 : f32 to vector<16x128xf32>
    %239 = arith.addf %238, %237 : vector<16x128xf32>
    %240 = tpu.reciprocal %239 {approx = true} : vector<16x128xf32> -> vector<16x128xf32>
    %cst_101 = arith.constant 1.06140542 : f32
    %241 = vector.broadcast %cst_101 : f32 to vector<16x128xf32>
    %242 = arith.mulf %241, %240 : vector<16x128xf32>
    %cst_102 = arith.constant -1.45315206 : f32
    %243 = vector.broadcast %cst_102 : f32 to vector<16x128xf32>
    %244 = arith.addf %242, %243 : vector<16x128xf32>
    %245 = arith.mulf %244, %240 : vector<16x128xf32>
    %cst_103 = arith.constant 1.42141378 : f32
    %246 = vector.broadcast %cst_103 : f32 to vector<16x128xf32>
    %247 = arith.addf %245, %246 : vector<16x128xf32>
    %248 = arith.mulf %247, %240 : vector<16x128xf32>
    %cst_104 = arith.constant -0.284496725 : f32
    %249 = vector.broadcast %cst_104 : f32 to vector<16x128xf32>
    %250 = arith.addf %248, %249 : vector<16x128xf32>
    %251 = arith.mulf %250, %240 : vector<16x128xf32>
    %cst_105 = arith.constant 0.254829586 : f32
    %252 = vector.broadcast %cst_105 : f32 to vector<16x128xf32>
    %253 = arith.addf %251, %252 : vector<16x128xf32>
    %254 = arith.mulf %253, %240 : vector<16x128xf32>
    %cst_106 = arith.constant 0.000000e+00 : f32
    %255 = vector.broadcast %cst_106 : f32 to vector<16x128xf32>
    %256 = arith.subf %255, %235 : vector<16x128xf32>
    %257 = arith.mulf %256, %235 : vector<16x128xf32>
    %258 = math.exp %257 : vector<16x128xf32>
    %259 = arith.mulf %254, %258 : vector<16x128xf32>
    %cst_107 = arith.constant 1.000000e+00 : f32
    %260 = vector.broadcast %cst_107 : f32 to vector<16x128xf32>
    %261 = arith.subf %260, %259 : vector<16x128xf32>
    %262 = arith.mulf %234, %261 : vector<16x128xf32>
    %cst_108 = arith.constant 1.000000e+00 : f32
    %263 = vector.broadcast %cst_108 : f32 to vector<16x128xf32>
    %264 = arith.addf %263, %262 : vector<16x128xf32>
    %265 = arith.mulf %227, %264 : vector<16x128xf32>
    %c0_109 = arith.constant 0 : index
    %c0_110 = arith.constant 0 : index
    %c0_111 = arith.constant 0 : index
    %266 = vector.load %arg19[%c0_109, %c0_110, %c0_111] : memref<2x128x64xbf16, #tpu.memory_space<vmem>>, vector<1x128x64xbf16>
    %267 = vector.shape_cast %266 : vector<1x128x64xbf16> to vector<128x64xbf16>
    %268 = arith.truncf %265 : vector<16x128xf32> to vector<16x128xbf16>
    %cst_112 = arith.constant dense<0.000000e+00> : vector<16x64xf32>
    %269 = tpu.matmul %268, %267, %cst_112 {dimension_numbers = #tpu.dot_dimension_numbers<[1], [0], [0], [1], [0, 0, 1, 1], [], []>} : vector<16x128xbf16>, vector<128x64xbf16>, vector<16x64xf32> -> vector<16x64xf32>
    %c0_113 = arith.constant 0 : index
    %c0_114 = arith.constant 0 : index
    %270 = vector.load %arg20[%c0_113, %c0_114] : memref<2x64xf32, #tpu.memory_space<vmem>>, vector<1x64xf32>
    %271 = vector.broadcast %270 : vector<1x64xf32> to vector<16x64xf32>
    %272 = arith.addf %269, %271 : vector<16x64xf32>
    %273 = arith.addf %194, %272 : vector<16x64xf32>
    %c1 = arith.constant 1 : index
    %c0_115 = arith.constant 0 : index
    %274 = vector.load %arg10[%c1, %c0_115] : memref<2x64xf32, #tpu.memory_space<vmem>>, vector<1x64xf32>
    %c1_116 = arith.constant 1 : index
    %c0_117 = arith.constant 0 : index
    %275 = vector.load %arg11[%c1_116, %c0_117] : memref<2x64xf32, #tpu.memory_space<vmem>>, vector<1x64xf32>
    %cst_118 = arith.constant dense<0.000000e+00> : vector<16xf32>
    %276 = vector.multi_reduction <add>, %273, %cst_118 [1] : vector<16x64xf32> to vector<16xf32>
    %277 = vector.shape_cast %276 : vector<16xf32> to vector<16x1xf32>
    %cst_119 = arith.constant 6.400000e+01 : f32
    %278 = vector.broadcast %cst_119 : f32 to vector<16x1xf32>
    %279 = arith.divf %277, %278 : vector<16x1xf32>
    %280 = vector.broadcast %279 : vector<16x1xf32> to vector<16x64xf32>
    %281 = arith.subf %273, %280 : vector<16x64xf32>
    %282 = arith.mulf %281, %281 : vector<16x64xf32>
    %cst_120 = arith.constant dense<0.000000e+00> : vector<16xf32>
    %283 = vector.multi_reduction <add>, %282, %cst_120 [1] : vector<16x64xf32> to vector<16xf32>
    %284 = vector.shape_cast %283 : vector<16xf32> to vector<16x1xf32>
    %cst_121 = arith.constant 6.400000e+01 : f32
    %285 = vector.broadcast %cst_121 : f32 to vector<16x1xf32>
    %286 = arith.divf %284, %285 : vector<16x1xf32>
    %287 = vector.broadcast %279 : vector<16x1xf32> to vector<16x64xf32>
    %288 = arith.subf %273, %287 : vector<16x64xf32>
    %cst_122 = arith.constant 9.99999974E-6 : f32
    %289 = vector.broadcast %cst_122 : f32 to vector<16x1xf32>
    %290 = arith.addf %286, %289 : vector<16x1xf32>
    %291 = math.rsqrt %290 : vector<16x1xf32>
    %292 = vector.broadcast %291 : vector<16x1xf32> to vector<16x64xf32>
    %293 = arith.mulf %288, %292 : vector<16x64xf32>
    %294 = vector.broadcast %274 : vector<1x64xf32> to vector<16x64xf32>
    %295 = arith.mulf %293, %294 : vector<16x64xf32>
    %296 = vector.broadcast %275 : vector<1x64xf32> to vector<16x64xf32>
    %297 = arith.addf %295, %296 : vector<16x64xf32>
    %c1_123 = arith.constant 1 : index
    %c0_124 = arith.constant 0 : index
    %c0_125 = arith.constant 0 : index
    %298 = vector.load %arg12[%c1_123, %c0_124, %c0_125] : memref<2x64x192xbf16, #tpu.memory_space<vmem>>, vector<1x64x192xbf16>
    %299 = vector.shape_cast %298 : vector<1x64x192xbf16> to vector<64x192xbf16>
    %300 = arith.truncf %297 : vector<16x64xf32> to vector<16x64xbf16>
    %cst_126 = arith.constant dense<0.000000e+00> : vector<16x192xf32>
    %301 = tpu.matmul %300, %299, %cst_126 {dimension_numbers = #tpu.dot_dimension_numbers<[1], [0], [0], [1], [0, 0, 1, 1], [], []>} : vector<16x64xbf16>, vector<64x192xbf16>, vector<16x192xf32> -> vector<16x192xf32>
    %302 = vector.shape_cast %301 : vector<16x192xf32> to vector<2x8x192xf32>
    %303 = vector.extract_strided_slice %302 {offsets = [0, 0, 0], sizes = [2, 8, 16], strides = [1, 1, 1]} : vector<2x8x192xf32> to vector<2x8x16xf32>
    %304 = vector.extract_strided_slice %302 {offsets = [0, 0, 64], sizes = [2, 8, 16], strides = [1, 1, 1]} : vector<2x8x192xf32> to vector<2x8x16xf32>
    %305 = vector.extract_strided_slice %302 {offsets = [0, 0, 128], sizes = [2, 8, 16], strides = [1, 1, 1]} : vector<2x8x192xf32> to vector<2x8x16xf32>
    %306 = arith.truncf %303 : vector<2x8x16xf32> to vector<2x8x16xbf16>
    %307 = arith.truncf %304 : vector<2x8x16xf32> to vector<2x8x16xbf16>
    "tpu.trace_start"() <{level = 10 : i32, message = "bnd,bmd->bnm"}> : () -> ()
    %cst_127 = arith.constant dense<0.000000e+00> : vector<2x8x8xf32>
    %308 = tpu.matmul %306, %307, %cst_127 {dimension_numbers = #tpu.dot_dimension_numbers<[2], [2], [1], [1], [0, 0, 0, 1, 1, 1], [0], [0]>} : vector<2x8x16xbf16>, vector<2x8x16xbf16>, vector<2x8x8xf32> -> vector<2x8x8xf32>
    %cst_128 = arith.constant -1.000000e+30 : f32
    "tpu.trace_stop"() : () -> ()
    %309 = vector.broadcast %cst_128 : f32 to vector<2x8x8xf32>
    %310 = arith.select %71, %308, %309 : vector<2x8x8xi1>, vector<2x8x8xf32>
    %cst_129 = arith.constant dense<0xFF800000> : vector<2x8xf32>
    %311 = vector.multi_reduction <maximumf>, %310, %cst_129 [2] : vector<2x8x8xf32> to vector<2x8xf32>
    %312 = vector.shape_cast %311 : vector<2x8xf32> to vector<2x8x1xf32>
    %313 = vector.broadcast %312 : vector<2x8x1xf32> to vector<2x8x8xf32>
    %314 = arith.subf %310, %313 : vector<2x8x8xf32>
    %315 = math.exp %314 : vector<2x8x8xf32>
    %cst_130 = arith.constant dense<0.000000e+00> : vector<2x8xf32>
    %316 = vector.multi_reduction <add>, %315, %cst_130 [2] : vector<2x8x8xf32> to vector<2x8xf32>
    %317 = vector.shape_cast %316 : vector<2x8xf32> to vector<2x8x1xf32>
    %318 = vector.broadcast %317 : vector<2x8x1xf32> to vector<2x8x8xf32>
    %319 = arith.divf %315, %318 : vector<2x8x8xf32>
    %320 = arith.truncf %319 : vector<2x8x8xf32> to vector<2x8x8xbf16>
    %321 = arith.truncf %305 : vector<2x8x16xf32> to vector<2x8x16xbf16>
    "tpu.trace_start"() <{level = 10 : i32, message = "bnm,bmd->bnd"}> : () -> ()
    %cst_131 = arith.constant dense<0.000000e+00> : vector<2x8x16xf32>
    %322 = tpu.matmul %320, %321, %cst_131 {dimension_numbers = #tpu.dot_dimension_numbers<[2], [1], [1], [2], [0, 0, 0, 1, 1, 2], [0], [0]>} : vector<2x8x8xbf16>, vector<2x8x16xbf16>, vector<2x8x16xf32> -> vector<2x8x16xf32>
    "tpu.trace_stop"() : () -> ()
    %c0_132 = arith.constant 0 : index
    %c0_133 = arith.constant 0 : index
    %c0_134 = arith.constant 0 : index
    %323 = vector.load %arg26[%c0_132, %c0_133, %c0_134] : memref<2x8x64xf32, #tpu.memory_space<vmem>>, vector<2x8x16xf32>
    tpu.vector_store %arg26[%c0_132, %c0_133, %c0_134], %322 {strides = array<i32>} : memref<2x8x64xf32, #tpu.memory_space<vmem>>, vector<2x8x16xf32>,
    %324 = vector.extract_strided_slice %302 {offsets = [0, 0, 16], sizes = [2, 8, 16], strides = [1, 1, 1]} : vector<2x8x192xf32> to vector<2x8x16xf32>
    %325 = vector.extract_strided_slice %302 {offsets = [0, 0, 80], sizes = [2, 8, 16], strides = [1, 1, 1]} : vector<2x8x192xf32> to vector<2x8x16xf32>
    %326 = vector.extract_strided_slice %302 {offsets = [0, 0, 144], sizes = [2, 8, 16], strides = [1, 1, 1]} : vector<2x8x192xf32> to vector<2x8x16xf32>
    %327 = arith.truncf %324 : vector<2x8x16xf32> to vector<2x8x16xbf16>
    %328 = arith.truncf %325 : vector<2x8x16xf32> to vector<2x8x16xbf16>
    "tpu.trace_start"() <{level = 10 : i32, message = "bnd,bmd->bnm"}> : () -> ()
    %cst_135 = arith.constant dense<0.000000e+00> : vector<2x8x8xf32>
    %329 = tpu.matmul %327, %328, %cst_135 {dimension_numbers = #tpu.dot_dimension_numbers<[2], [2], [1], [1], [0, 0, 0, 1, 1, 1], [0], [0]>} : vector<2x8x16xbf16>, vector<2x8x16xbf16>, vector<2x8x8xf32> -> vector<2x8x8xf32>
    %cst_136 = arith.constant -1.000000e+30 : f32
    "tpu.trace_stop"() : () -> ()
    %330 = vector.broadcast %cst_136 : f32 to vector<2x8x8xf32>
    %331 = arith.select %71, %329, %330 : vector<2x8x8xi1>, vector<2x8x8xf32>
    %cst_137 = arith.constant dense<0xFF800000> : vector<2x8xf32>
    %332 = vector.multi_reduction <maximumf>, %331, %cst_137 [2] : vector<2x8x8xf32> to vector<2x8xf32>
    %333 = vector.shape_cast %332 : vector<2x8xf32> to vector<2x8x1xf32>
    %334 = vector.broadcast %333 : vector<2x8x1xf32> to vector<2x8x8xf32>
    %335 = arith.subf %331, %334 : vector<2x8x8xf32>
    %336 = math.exp %335 : vector<2x8x8xf32>
    %cst_138 = arith.constant dense<0.000000e+00> : vector<2x8xf32>
    %337 = vector.multi_reduction <add>, %336, %cst_138 [2] : vector<2x8x8xf32> to vector<2x8xf32>
    %338 = vector.shape_cast %337 : vector<2x8xf32> to vector<2x8x1xf32>
    %339 = vector.broadcast %338 : vector<2x8x1xf32> to vector<2x8x8xf32>
    %340 = arith.divf %336, %339 : vector<2x8x8xf32>
    %341 = arith.truncf %340 : vector<2x8x8xf32> to vector<2x8x8xbf16>
    %342 = arith.truncf %326 : vector<2x8x16xf32> to vector<2x8x16xbf16>
    "tpu.trace_start"() <{level = 10 : i32, message = "bnm,bmd->bnd"}> : () -> ()
    %cst_139 = arith.constant dense<0.000000e+00> : vector<2x8x16xf32>
    %343 = tpu.matmul %341, %342, %cst_139 {dimension_numbers = #tpu.dot_dimension_numbers<[2], [1], [1], [2], [0, 0, 0, 1, 1, 2], [0], [0]>} : vector<2x8x8xbf16>, vector<2x8x16xbf16>, vector<2x8x16xf32> -> vector<2x8x16xf32>
    "tpu.trace_stop"() : () -> ()
    %c0_140 = arith.constant 0 : index
    %c0_141 = arith.constant 0 : index
    %c16_142 = arith.constant 16 : index
    %344 = vector.load %arg26[%c0_140, %c0_141, %c16_142] : memref<2x8x64xf32, #tpu.memory_space<vmem>>, vector<2x8x16xf32>
    tpu.vector_store %arg26[%c0_140, %c0_141, %c16_142], %343 {strides = array<i32>} : memref<2x8x64xf32, #tpu.memory_space<vmem>>, vector<2x8x16xf32>,
    %345 = vector.extract_strided_slice %302 {offsets = [0, 0, 32], sizes = [2, 8, 16], strides = [1, 1, 1]} : vector<2x8x192xf32> to vector<2x8x16xf32>
    %346 = vector.extract_strided_slice %302 {offsets = [0, 0, 96], sizes = [2, 8, 16], strides = [1, 1, 1]} : vector<2x8x192xf32> to vector<2x8x16xf32>
    %347 = vector.extract_strided_slice %302 {offsets = [0, 0, 160], sizes = [2, 8, 16], strides = [1, 1, 1]} : vector<2x8x192xf32> to vector<2x8x16xf32>
    %348 = arith.truncf %345 : vector<2x8x16xf32> to vector<2x8x16xbf16>
    %349 = arith.truncf %346 : vector<2x8x16xf32> to vector<2x8x16xbf16>
    "tpu.trace_start"() <{level = 10 : i32, message = "bnd,bmd->bnm"}> : () -> ()
    %cst_143 = arith.constant dense<0.000000e+00> : vector<2x8x8xf32>
    %350 = tpu.matmul %348, %349, %cst_143 {dimension_numbers = #tpu.dot_dimension_numbers<[2], [2], [1], [1], [0, 0, 0, 1, 1, 1], [0], [0]>} : vector<2x8x16xbf16>, vector<2x8x16xbf16>, vector<2x8x8xf32> -> vector<2x8x8xf32>
    %cst_144 = arith.constant -1.000000e+30 : f32
    "tpu.trace_stop"() : () -> ()
    %351 = vector.broadcast %cst_144 : f32 to vector<2x8x8xf32>
    %352 = arith.select %71, %350, %351 : vector<2x8x8xi1>, vector<2x8x8xf32>
    %cst_145 = arith.constant dense<0xFF800000> : vector<2x8xf32>
    %353 = vector.multi_reduction <maximumf>, %352, %cst_145 [2] : vector<2x8x8xf32> to vector<2x8xf32>
    %354 = vector.shape_cast %353 : vector<2x8xf32> to vector<2x8x1xf32>
    %355 = vector.broadcast %354 : vector<2x8x1xf32> to vector<2x8x8xf32>
    %356 = arith.subf %352, %355 : vector<2x8x8xf32>
    %357 = math.exp %356 : vector<2x8x8xf32>
    %cst_146 = arith.constant dense<0.000000e+00> : vector<2x8xf32>
    %358 = vector.multi_reduction <add>, %357, %cst_146 [2] : vector<2x8x8xf32> to vector<2x8xf32>
    %359 = vector.shape_cast %358 : vector<2x8xf32> to vector<2x8x1xf32>
    %360 = vector.broadcast %359 : vector<2x8x1xf32> to vector<2x8x8xf32>
    %361 = arith.divf %357, %360 : vector<2x8x8xf32>
    %362 = arith.truncf %361 : vector<2x8x8xf32> to vector<2x8x8xbf16>
    %363 = arith.truncf %347 : vector<2x8x16xf32> to vector<2x8x16xbf16>
    "tpu.trace_start"() <{level = 10 : i32, message = "bnm,bmd->bnd"}> : () -> ()
    %cst_147 = arith.constant dense<0.000000e+00> : vector<2x8x16xf32>
    %364 = tpu.matmul %362, %363, %cst_147 {dimension_numbers = #tpu.dot_dimension_numbers<[2], [1], [1], [2], [0, 0, 0, 1, 1, 2], [0], [0]>} : vector<2x8x8xbf16>, vector<2x8x16xbf16>, vector<2x8x16xf32> -> vector<2x8x16xf32>
    "tpu.trace_stop"() : () -> ()
    %c0_148 = arith.constant 0 : index
    %c0_149 = arith.constant 0 : index
    %c32_150 = arith.constant 32 : index
    %365 = vector.load %arg26[%c0_148, %c0_149, %c32_150] : memref<2x8x64xf32, #tpu.memory_space<vmem>>, vector<2x8x16xf32>
    tpu.vector_store %arg26[%c0_148, %c0_149, %c32_150], %364 {strides = array<i32>} : memref<2x8x64xf32, #tpu.memory_space<vmem>>, vector<2x8x16xf32>,
    %366 = vector.extract_strided_slice %302 {offsets = [0, 0, 48], sizes = [2, 8, 16], strides = [1, 1, 1]} : vector<2x8x192xf32> to vector<2x8x16xf32>
    %367 = vector.extract_strided_slice %302 {offsets = [0, 0, 112], sizes = [2, 8, 16], strides = [1, 1, 1]} : vector<2x8x192xf32> to vector<2x8x16xf32>
    %368 = vector.extract_strided_slice %302 {offsets = [0, 0, 176], sizes = [2, 8, 16], strides = [1, 1, 1]} : vector<2x8x192xf32> to vector<2x8x16xf32>
    %369 = arith.truncf %366 : vector<2x8x16xf32> to vector<2x8x16xbf16>
    %370 = arith.truncf %367 : vector<2x8x16xf32> to vector<2x8x16xbf16>
    "tpu.trace_start"() <{level = 10 : i32, message = "bnd,bmd->bnm"}> : () -> ()
    %cst_151 = arith.constant dense<0.000000e+00> : vector<2x8x8xf32>
    %371 = tpu.matmul %369, %370, %cst_151 {dimension_numbers = #tpu.dot_dimension_numbers<[2], [2], [1], [1], [0, 0, 0, 1, 1, 1], [0], [0]>} : vector<2x8x16xbf16>, vector<2x8x16xbf16>, vector<2x8x8xf32> -> vector<2x8x8xf32>
    %cst_152 = arith.constant -1.000000e+30 : f32
    "tpu.trace_stop"() : () -> ()
    %372 = vector.broadcast %cst_152 : f32 to vector<2x8x8xf32>
    %373 = arith.select %71, %371, %372 : vector<2x8x8xi1>, vector<2x8x8xf32>
    %cst_153 = arith.constant dense<0xFF800000> : vector<2x8xf32>
    %374 = vector.multi_reduction <maximumf>, %373, %cst_153 [2] : vector<2x8x8xf32> to vector<2x8xf32>
    %375 = vector.shape_cast %374 : vector<2x8xf32> to vector<2x8x1xf32>
    %376 = vector.broadcast %375 : vector<2x8x1xf32> to vector<2x8x8xf32>
    %377 = arith.subf %373, %376 : vector<2x8x8xf32>
    %378 = math.exp %377 : vector<2x8x8xf32>
    %cst_154 = arith.constant dense<0.000000e+00> : vector<2x8xf32>
    %379 = vector.multi_reduction <add>, %378, %cst_154 [2] : vector<2x8x8xf32> to vector<2x8xf32>
    %380 = vector.shape_cast %379 : vector<2x8xf32> to vector<2x8x1xf32>
    %381 = vector.broadcast %380 : vector<2x8x1xf32> to vector<2x8x8xf32>
    %382 = arith.divf %378, %381 : vector<2x8x8xf32>
    %383 = arith.truncf %382 : vector<2x8x8xf32> to vector<2x8x8xbf16>
    %384 = arith.truncf %368 : vector<2x8x16xf32> to vector<2x8x16xbf16>
    "tpu.trace_start"() <{level = 10 : i32, message = "bnm,bmd->bnd"}> : () -> ()
    %cst_155 = arith.constant dense<0.000000e+00> : vector<2x8x16xf32>
    %385 = tpu.matmul %383, %384, %cst_155 {dimension_numbers = #tpu.dot_dimension_numbers<[2], [1], [1], [2], [0, 0, 0, 1, 1, 2], [0], [0]>} : vector<2x8x8xbf16>, vector<2x8x16xbf16>, vector<2x8x16xf32> -> vector<2x8x16xf32>
    "tpu.trace_stop"() : () -> ()
    %c0_156 = arith.constant 0 : index
    %c0_157 = arith.constant 0 : index
    %c48_158 = arith.constant 48 : index
    %386 = vector.load %arg26[%c0_156, %c0_157, %c48_158] : memref<2x8x64xf32, #tpu.memory_space<vmem>>, vector<2x8x16xf32>
    tpu.vector_store %arg26[%c0_156, %c0_157, %c48_158], %385 {strides = array<i32>} : memref<2x8x64xf32, #tpu.memory_space<vmem>>, vector<2x8x16xf32>,
    %c0_159 = arith.constant 0 : index
    %c0_160 = arith.constant 0 : index
    %c0_161 = arith.constant 0 : index
    %387 = vector.load %arg26[%c0_159, %c0_160, %c0_161] : memref<2x8x64xf32, #tpu.memory_space<vmem>>, vector<2x8x64xf32>
    %388 = vector.shape_cast %387 : vector<2x8x64xf32> to vector<16x64xf32>
    %c1_162 = arith.constant 1 : index
    %c0_163 = arith.constant 0 : index
    %c0_164 = arith.constant 0 : index
    %389 = vector.load %arg13[%c1_162, %c0_163, %c0_164] : memref<2x64x64xbf16, #tpu.memory_space<vmem>>, vector<1x64x64xbf16>
    %390 = vector.shape_cast %389 : vector<1x64x64xbf16> to vector<64x64xbf16>
    %391 = arith.truncf %388 : vector<16x64xf32> to vector<16x64xbf16>
    %cst_165 = arith.constant dense<0.000000e+00> : vector<16x64xf32>
    %392 = tpu.matmul %391, %390, %cst_165 {dimension_numbers = #tpu.dot_dimension_numbers<[1], [0], [0], [1], [0, 0, 1, 1], [], []>} : vector<16x64xbf16>, vector<64x64xbf16>, vector<16x64xf32> -> vector<16x64xf32>
    %c1_166 = arith.constant 1 : index
    %c0_167 = arith.constant 0 : index
    %393 = vector.load %arg14[%c1_166, %c0_167] : memref<2x64xf32, #tpu.memory_space<vmem>>, vector<1x64xf32>
    %394 = vector.broadcast %393 : vector<1x64xf32> to vector<16x64xf32>
    %395 = arith.addf %392, %394 : vector<16x64xf32>
    %396 = arith.addf %273, %395 : vector<16x64xf32>
    %c1_168 = arith.constant 1 : index
    %c0_169 = arith.constant 0 : index
    %397 = vector.load %arg15[%c1_168, %c0_169] : memref<2x64xf32, #tpu.memory_space<vmem>>, vector<1x64xf32>
    %c1_170 = arith.constant 1 : index
    %c0_171 = arith.constant 0 : index
    %398 = vector.load %arg16[%c1_170, %c0_171] : memref<2x64xf32, #tpu.memory_space<vmem>>, vector<1x64xf32>
    %cst_172 = arith.constant dense<0.000000e+00> : vector<16xf32>
    %399 = vector.multi_reduction <add>, %396, %cst_172 [1] : vector<16x64xf32> to vector<16xf32>
    %400 = vector.shape_cast %399 : vector<16xf32> to vector<16x1xf32>
    %cst_173 = arith.constant 6.400000e+01 : f32
    %401 = vector.broadcast %cst_173 : f32 to vector<16x1xf32>
    %402 = arith.divf %400, %401 : vector<16x1xf32>
    %403 = vector.broadcast %402 : vector<16x1xf32> to vector<16x64xf32>
    %404 = arith.subf %396, %403 : vector<16x64xf32>
    %405 = arith.mulf %404, %404 : vector<16x64xf32>
    %cst_174 = arith.constant dense<0.000000e+00> : vector<16xf32>
    %406 = vector.multi_reduction <add>, %405, %cst_174 [1] : vector<16x64xf32> to vector<16xf32>
    %407 = vector.shape_cast %406 : vector<16xf32> to vector<16x1xf32>
    %cst_175 = arith.constant 6.400000e+01 : f32
    %408 = vector.broadcast %cst_175 : f32 to vector<16x1xf32>
    %409 = arith.divf %407, %408 : vector<16x1xf32>
    %410 = vector.broadcast %402 : vector<16x1xf32> to vector<16x64xf32>
    %411 = arith.subf %396, %410 : vector<16x64xf32>
    %cst_176 = arith.constant 9.99999974E-6 : f32
    %412 = vector.broadcast %cst_176 : f32 to vector<16x1xf32>
    %413 = arith.addf %409, %412 : vector<16x1xf32>
    %414 = math.rsqrt %413 : vector<16x1xf32>
    %415 = vector.broadcast %414 : vector<16x1xf32> to vector<16x64xf32>
    %416 = arith.mulf %411, %415 : vector<16x64xf32>
    %417 = vector.broadcast %397 : vector<1x64xf32> to vector<16x64xf32>
    %418 = arith.mulf %416, %417 : vector<16x64xf32>
    %419 = vector.broadcast %398 : vector<1x64xf32> to vector<16x64xf32>
    %420 = arith.addf %418, %419 : vector<16x64xf32>
    %c1_177 = arith.constant 1 : index
    %c0_178 = arith.constant 0 : index
    %c0_179 = arith.constant 0 : index
    %421 = vector.load %arg17[%c1_177, %c0_178, %c0_179] : memref<2x64x128xbf16, #tpu.memory_space<vmem>>, vector<1x64x128xbf16>
    %422 = vector.shape_cast %421 : vector<1x64x128xbf16> to vector<64x128xbf16>
    %423 = arith.truncf %420 : vector<16x64xf32> to vector<16x64xbf16>
    %cst_180 = arith.constant dense<0.000000e+00> : vector<16x128xf32>
    %424 = tpu.matmul %423, %422, %cst_180 {dimension_numbers = #tpu.dot_dimension_numbers<[1], [0], [0], [1], [0, 0, 1, 1], [], []>} : vector<16x64xbf16>, vector<64x128xbf16>, vector<16x128xf32> -> vector<16x128xf32>
    %c1_181 = arith.constant 1 : index
    %c0_182 = arith.constant 0 : index
    %425 = vector.load %arg18[%c1_181, %c0_182] : memref<2x128xf32, #tpu.memory_space<vmem>>, vector<1x128xf32>
    %426 = vector.broadcast %425 : vector<1x128xf32> to vector<16x128xf32>
    %427 = arith.addf %424, %426 : vector<16x128xf32>
    %cst_183 = arith.constant 5.000000e-01 : f32
    %428 = vector.broadcast %cst_183 : f32 to vector<16x128xf32>
    %429 = arith.mulf %428, %427 : vector<16x128xf32>
    %cst_184 = arith.constant 0.707106769 : f32
    %430 = vector.broadcast %cst_184 : f32 to vector<16x128xf32>
    %431 = arith.mulf %427, %430 : vector<16x128xf32>
    %cst_185 = arith.constant 0.000000e+00 : f32
    %432 = vector.broadcast %cst_185 : f32 to vector<16x128xf32>
    %433 = arith.cmpf oge, %431, %432 : vector<16x128xf32>
    %cst_186 = arith.constant 1.000000e+00 : f32
    %cst_187 = arith.constant -1.000000e+00 : f32
    %434 = vector.broadcast %cst_186 : f32 to vector<16x128xf32>
    %435 = vector.broadcast %cst_187 : f32 to vector<16x128xf32>
    %436 = arith.select %433, %434, %435 : vector<16x128xi1>, vector<16x128xf32>
    %437 = math.absf %431 : vector<16x128xf32>
    %cst_188 = arith.constant 0.327591091 : f32
    %438 = vector.broadcast %cst_188 : f32 to vector<16x128xf32>
    %439 = arith.mulf %438, %437 : vector<16x128xf32>
    %cst_189 = arith.constant 1.000000e+00 : f32
    %440 = vector.broadcast %cst_189 : f32 to vector<16x128xf32>
    %441 = arith.addf %440, %439 : vector<16x128xf32>
    %442 = tpu.reciprocal %441 {approx = true} : vector<16x128xf32> -> vector<16x128xf32>
    %cst_190 = arith.constant 1.06140542 : f32
    %443 = vector.broadcast %cst_190 : f32 to vector<16x128xf32>
    %444 = arith.mulf %443, %442 : vector<16x128xf32>
    %cst_191 = arith.constant -1.45315206 : f32
    %445 = vector.broadcast %cst_191 : f32 to vector<16x128xf32>
    %446 = arith.addf %444, %445 : vector<16x128xf32>
    %447 = arith.mulf %446, %442 : vector<16x128xf32>
    %cst_192 = arith.constant 1.42141378 : f32
    %448 = vector.broadcast %cst_192 : f32 to vector<16x128xf32>
    %449 = arith.addf %447, %448 : vector<16x128xf32>
    %450 = arith.mulf %449, %442 : vector<16x128xf32>
    %cst_193 = arith.constant -0.284496725 : f32
    %451 = vector.broadcast %cst_193 : f32 to vector<16x128xf32>
    %452 = arith.addf %450, %451 : vector<16x128xf32>
    %453 = arith.mulf %452, %442 : vector<16x128xf32>
    %cst_194 = arith.constant 0.254829586 : f32
    %454 = vector.broadcast %cst_194 : f32 to vector<16x128xf32>
    %455 = arith.addf %453, %454 : vector<16x128xf32>
    %456 = arith.mulf %455, %442 : vector<16x128xf32>
    %cst_195 = arith.constant 0.000000e+00 : f32
    %457 = vector.broadcast %cst_195 : f32 to vector<16x128xf32>
    %458 = arith.subf %457, %437 : vector<16x128xf32>
    %459 = arith.mulf %458, %437 : vector<16x128xf32>
    %460 = math.exp %459 : vector<16x128xf32>
    %461 = arith.mulf %456, %460 : vector<16x128xf32>
    %cst_196 = arith.constant 1.000000e+00 : f32
    %462 = vector.broadcast %cst_196 : f32 to vector<16x128xf32>
    %463 = arith.subf %462, %461 : vector<16x128xf32>
    %464 = arith.mulf %436, %463 : vector<16x128xf32>
    %cst_197 = arith.constant 1.000000e+00 : f32
    %465 = vector.broadcast %cst_197 : f32 to vector<16x128xf32>
    %466 = arith.addf %465, %464 : vector<16x128xf32>
    %467 = arith.mulf %429, %466 : vector<16x128xf32>
    %c1_198 = arith.constant 1 : index
    %c0_199 = arith.constant 0 : index
    %c0_200 = arith.constant 0 : index
    %468 = vector.load %arg19[%c1_198, %c0_199, %c0_200] : memref<2x128x64xbf16, #tpu.memory_space<vmem>>, vector<1x128x64xbf16>
    %469 = vector.shape_cast %468 : vector<1x128x64xbf16> to vector<128x64xbf16>
    %470 = arith.truncf %467 : vector<16x128xf32> to vector<16x128xbf16>
    %cst_201 = arith.constant dense<0.000000e+00> : vector<16x64xf32>
    %471 = tpu.matmul %470, %469, %cst_201 {dimension_numbers = #tpu.dot_dimension_numbers<[1], [0], [0], [1], [0, 0, 1, 1], [], []>} : vector<16x128xbf16>, vector<128x64xbf16>, vector<16x64xf32> -> vector<16x64xf32>
    %c1_202 = arith.constant 1 : index
    %c0_203 = arith.constant 0 : index
    %472 = vector.load %arg20[%c1_202, %c0_203] : memref<2x64xf32, #tpu.memory_space<vmem>>, vector<1x64xf32>
    %473 = vector.broadcast %472 : vector<1x64xf32> to vector<16x64xf32>
    %474 = arith.addf %471, %473 : vector<16x64xf32>
    %475 = arith.addf %396, %474 : vector<16x64xf32>
    %c0_204 = arith.constant 0 : index
    %c0_205 = arith.constant 0 : index
    %476 = vector.load %arg21[%c0_204, %c0_205] : memref<1x64xf32, #tpu.memory_space<vmem>>, vector<1x64xf32>
    %c0_206 = arith.constant 0 : index
    %c0_207 = arith.constant 0 : index
    %477 = vector.load %arg22[%c0_206, %c0_207] : memref<1x64xf32, #tpu.memory_space<vmem>>, vector<1x64xf32>
    %cst_208 = arith.constant dense<0.000000e+00> : vector<16xf32>
    %478 = vector.multi_reduction <add>, %475, %cst_208 [1] : vector<16x64xf32> to vector<16xf32>
    %479 = vector.shape_cast %478 : vector<16xf32> to vector<16x1xf32>
    %cst_209 = arith.constant 6.400000e+01 : f32
    %480 = vector.broadcast %cst_209 : f32 to vector<16x1xf32>
    %481 = arith.divf %479, %480 : vector<16x1xf32>
    %482 = vector.broadcast %481 : vector<16x1xf32> to vector<16x64xf32>
    %483 = arith.subf %475, %482 : vector<16x64xf32>
    %484 = arith.mulf %483, %483 : vector<16x64xf32>
    %cst_210 = arith.constant dense<0.000000e+00> : vector<16xf32>
    %485 = vector.multi_reduction <add>, %484, %cst_210 [1] : vector<16x64xf32> to vector<16xf32>
    %486 = vector.shape_cast %485 : vector<16xf32> to vector<16x1xf32>
    %cst_211 = arith.constant 6.400000e+01 : f32
    %487 = vector.broadcast %cst_211 : f32 to vector<16x1xf32>
    %488 = arith.divf %486, %487 : vector<16x1xf32>
    %489 = vector.broadcast %481 : vector<16x1xf32> to vector<16x64xf32>
    %490 = arith.subf %475, %489 : vector<16x64xf32>
    %cst_212 = arith.constant 9.99999974E-6 : f32
    %491 = vector.broadcast %cst_212 : f32 to vector<16x1xf32>
    %492 = arith.addf %488, %491 : vector<16x1xf32>
    %493 = math.rsqrt %492 : vector<16x1xf32>
    %494 = vector.broadcast %493 : vector<16x1xf32> to vector<16x64xf32>
    %495 = arith.mulf %490, %494 : vector<16x64xf32>
    %496 = vector.broadcast %476 : vector<1x64xf32> to vector<16x64xf32>
    %497 = arith.mulf %495, %496 : vector<16x64xf32>
    %498 = vector.broadcast %477 : vector<1x64xf32> to vector<16x64xf32>
    %499 = arith.addf %497, %498 : vector<16x64xf32>
    %c0_213 = arith.constant 0 : index
    %c0_214 = arith.constant 0 : index
    %500 = vector.load %arg23[%c0_213, %c0_214] : memref<64x128xbf16, #tpu.memory_space<vmem>>, vector<64x128xbf16>
    %501 = arith.truncf %499 : vector<16x64xf32> to vector<16x64xbf16>
    %cst_215 = arith.constant dense<0.000000e+00> : vector<16x128xf32>
    %502 = tpu.matmul %501, %500, %cst_215 {dimension_numbers = #tpu.dot_dimension_numbers<[1], [0], [0], [1], [0, 0, 1, 1], [], []>} : vector<16x64xbf16>, vector<64x128xbf16>, vector<16x128xf32> -> vector<16x128xf32>
    %c0_216 = arith.constant 0 : index
    %c0_217 = arith.constant 0 : index
    %503 = vector.load %arg24[%c0_216, %c0_217] : memref<1x128xf32, #tpu.memory_space<vmem>>, vector<1x128xf32>
    %504 = vector.broadcast %503 : vector<1x128xf32> to vector<16x128xf32>
    %505 = arith.addf %502, %504 : vector<16x128xf32>
    %506 = vector.shape_cast %505 : vector<16x128xf32> to vector<2x8x128xf32>
    %c0_218 = arith.constant 0 : index
    %c0_219 = arith.constant 0 : index
    %c0_220 = arith.constant 0 : index
    %507 = vector.load %arg25[%c0_218, %c0_219, %c0_220] : memref<2x8x128xf32, #tpu.memory_space<vmem>>, vector<2x8x128xf32>
    tpu.vector_store %arg25[%c0_218, %c0_219, %c0_220], %506 {strides = array<i32>} : memref<2x8x128xf32, #tpu.memory_space<vmem>>, vector<2x8x128xf32>,
    return
  }
  func.func @transform_0(%arg0: i32) -> (i32, i32, i32) {
    %c0_i32 = arith.constant 0 : i32
    %c0_i32_0 = arith.constant 0 : i32
    %c0_i32_1 = arith.constant 0 : i32
    return %arg0, %c0_i32, %c0_i32_0 : i32, i32, i32
  }
  func.func @transform_1(%arg0: i32) -> (i32, i32) {
    %c0_i32 = arith.constant 0 : i32
    %c0_i32_0 = arith.constant 0 : i32
    %c0_i32_1 = arith.constant 0 : i32
    return %c0_i32, %c0_i32_0 : i32, i32
  }
  func.func @transform_2(%arg0: i32) -> (i32, i32) {
    %c0_i32 = arith.constant 0 : i32
    %c0_i32_0 = arith.constant 0 : i32
    %c0_i32_1 = arith.constant 0 : i32
    return %c0_i32, %c0_i32_0 : i32, i32
  }
  func.func @transform_3(%arg0: i32) -> (i32, i32) {
    %c0_i32 = arith.constant 0 : i32
    %c0_i32_0 = arith.constant 0 : i32
    %c0_i32_1 = arith.constant 0 : i32
    return %c0_i32, %c0_i32_0 : i32, i32
  }
  func.func @transform_4(%arg0: i32) -> (i32, i32) {
    %c0_i32 = arith.constant 0 : i32
    %c0_i32_0 = arith.constant 0 : i32
    %c0_i32_1 = arith.constant 0 : i32
    return %c0_i32, %c0_i32_0 : i32, i32
  }
  func.func @transform_5(%arg0: i32) -> (i32, i32) {
    %c0_i32 = arith.constant 0 : i32
    %c0_i32_0 = arith.constant 0 : i32
    %c0_i32_1 = arith.constant 0 : i32
    return %c0_i32, %c0_i32_0 : i32, i32
  }
  func.func @transform_6(%arg0: i32) -> (i32, i32) {
    %c0_i32 = arith.constant 0 : i32
    %c0_i32_0 = arith.constant 0 : i32
    %c0_i32_1 = arith.constant 0 : i32
    return %c0_i32, %c0_i32_0 : i32, i32
  }
  func.func @transform_7(%arg0: i32) -> (i32, i32) {
    %c0_i32 = arith.constant 0 : i32
    %c0_i32_0 = arith.constant 0 : i32
    %c0_i32_1 = arith.constant 0 : i32
    return %c0_i32, %c0_i32_0 : i32, i32
  }
  func.func @transform_8(%arg0: i32) -> (i32, i32) {
    %c0_i32 = arith.constant 0 : i32
    %c0_i32_0 = arith.constant 0 : i32
    %c0_i32_1 = arith.constant 0 : i32
    return %c0_i32, %c0_i32_0 : i32, i32
  }
  func.func @transform_9(%arg0: i32) -> (i32, i32) {
    %c0_i32 = arith.constant 0 : i32
    %c0_i32_0 = arith.constant 0 : i32
    %c0_i32_1 = arith.constant 0 : i32
    return %c0_i32, %c0_i32_0 : i32, i32
  }
  func.func @transform_10(%arg0: i32) -> (i32, i32) {
    %c0_i32 = arith.constant 0 : i32
    %c0_i32_0 = arith.constant 0 : i32
    %c0_i32_1 = arith.constant 0 : i32
    return %c0_i32, %c0_i32_0 : i32, i32
  }
  func.func @transform_11(%arg0: i32) -> (i32, i32, i32) {
    %c0_i32 = arith.constant 0 : i32
    %c0_i32_0 = arith.constant 0 : i32
    %c0_i32_1 = arith.constant 0 : i32
    %c0_i32_2 = arith.constant 0 : i32
    return %c0_i32, %c0_i32_0, %c0_i32_1 : i32, i32, i32
  }
  func.func @transform_12(%arg0: i32) -> (i32, i32, i32) {
    %c0_i32 = arith.constant 0 : i32
    %c0_i32_0 = arith.constant 0 : i32
    %c0_i32_1 = arith.constant 0 : i32
    %c0_i32_2 = arith.constant 0 : i32
    return %c0_i32, %c0_i32_0, %c0_i32_1 : i32, i32, i32
  }
  func.func @transform_13(%arg0: i32) -> (i32, i32) {
    %c0_i32 = arith.constant 0 : i32
    %c0_i32_0 = arith.constant 0 : i32
    %c0_i32_1 = arith.constant 0 : i32
    return %c0_i32, %c0_i32_0 : i32, i32
  }
  func.func @transform_14(%arg0: i32) -> (i32, i32) {
    %c0_i32 = arith.constant 0 : i32
    %c0_i32_0 = arith.constant 0 : i32
    %c0_i32_1 = arith.constant 0 : i32
    return %c0_i32, %c0_i32_0 : i32, i32
  }
  func.func @transform_15(%arg0: i32) -> (i32, i32) {
    %c0_i32 = arith.constant 0 : i32
    %c0_i32_0 = arith.constant 0 : i32
    %c0_i32_1 = arith.constant 0 : i32
    return %c0_i32, %c0_i32_0 : i32, i32
  }
  func.func @transform_16(%arg0: i32) -> (i32, i32, i32) {
    %c0_i32 = arith.constant 0 : i32
    %c0_i32_0 = arith.constant 0 : i32
    %c0_i32_1 = arith.constant 0 : i32
    %c0_i32_2 = arith.constant 0 : i32
    return %c0_i32, %c0_i32_0, %c0_i32_1 : i32, i32, i32
  }
  func.func @transform_17(%arg0: i32) -> (i32, i32) {
    %c0_i32 = arith.constant 0 : i32
    %c0_i32_0 = arith.constant 0 : i32
    %c0_i32_1 = arith.constant 0 : i32
    return %c0_i32, %c0_i32_0 : i32, i32
  }
  func.func @transform_18(%arg0: i32) -> (i32, i32, i32) {
    %c0_i32 = arith.constant 0 : i32
    %c0_i32_0 = arith.constant 0 : i32
    %c0_i32_1 = arith.constant 0 : i32
    %c0_i32_2 = arith.constant 0 : i32
    return %c0_i32, %c0_i32_0, %c0_i32_1 : i32, i32, i32
  }
  func.func @transform_19(%arg0: i32) -> (i32, i32) {
    %c0_i32 = arith.constant 0 : i32
    %c0_i32_0 = arith.constant 0 : i32
    %c0_i32_1 = arith.constant 0 : i32
    return %c0_i32, %c0_i32_0 : i32, i32
  }
  func.func @transform_20(%arg0: i32) -> (i32, i32) {
    %c0_i32 = arith.constant 0 : i32
    %c0_i32_0 = arith.constant 0 : i32
    %c0_i32_1 = arith.constant 0 : i32
    return %c0_i32, %c0_i32_0 : i32, i32
  }
  func.func @transform_21(%arg0: i32) -> (i32, i32) {
    %c0_i32 = arith.constant 0 : i32
    %c0_i32_0 = arith.constant 0 : i32
    %c0_i32_1 = arith.constant 0 : i32
    return %c0_i32, %c0_i32_0 : i32, i32
  }
  func.func @transform_22(%arg0: i32) -> (i32, i32) {
    %c0_i32 = arith.constant 0 : i32
    %c0_i32_0 = arith.constant 0 : i32
    %c0_i32_1 = arith.constant 0 : i32
    return %c0_i32, %c0_i32_0 : i32, i32
  }
  func.func @transform_23(%arg0: i32) -> (i32, i32) {
    %c0_i32 = arith.constant 0 : i32
    %c0_i32_0 = arith.constant 0 : i32
    %c0_i32_1 = arith.constant 0 : i32
    return %c0_i32, %c0_i32_0 : i32, i32
  }
  func.func @transform_24(%arg0: i32) -> (i32, i32, i32) {
    %c0_i32 = arith.constant 0 : i32
    %c0_i32_0 = arith.constant 0 : i32
    %c0_i32_1 = arith.constant 0 : i32
    return %arg0, %c0_i32, %c0_i32_0 : i32, i32, i32
  }
}

</mosaic_0001>

<llo_original>
// kernel: tpu_custom_call.1
$region0: #{tpu_custom_call.1}
  #allocation0 [shape = 'u32[]', space=smem, size = 0x4, offset = 0x4, fixed_abs, tag = 'smem constant byte address 0x4 - core index']
  #allocation1 [shape = 'u32[144,128]{1,0:T(1,128)}', space=vmem, size = 0x12000, scoped, tag = 'internal scratch']
  #allocation2 [shape = 'f32[2,8,64]{2,1,0:T(8,128)}', space=vmem, size = 0x2000, scoped, tag = 'scratch operand']
  %s0 = inlined_call_operand.vmem [shape: f32[2,8,192], index: 0, kind: input, shape index: {}]
  %s1 = inlined_call_operand.vmem [shape: f32[1,192], index: 1, kind: input, shape index: {}]
  %s2 = inlined_call_operand.vmem [shape: f32[1,192], index: 2, kind: input, shape index: {}]
  %s3 = inlined_call_operand.vmem [shape: bf16[192,64], index: 3, kind: input, shape index: {}]
  %s4 = inlined_call_operand.vmem [shape: f32[1,64], index: 4, kind: input, shape index: {}]
  %s5 = inlined_call_operand.hbm [shape: f32[1,64], index: 5, kind: input, shape index: {}]
  %s6 = inlined_call_operand.hbm [shape: f32[1,64], index: 6, kind: input, shape index: {}]
  %s7 = inlined_call_operand.hbm [shape: f32[1,64], index: 7, kind: input, shape index: {}]
  %s8 = inlined_call_operand.hbm [shape: f32[8,64], index: 8, kind: input, shape index: {}]
  %s9 = inlined_call_operand.hbm [shape: f32[2,64], index: 9, kind: input, shape index: {}]
  %s10 = inlined_call_operand.hbm [shape: f32[2,64], index: 10, kind: input, shape index: {}]
  %s11 = inlined_call_operand.vmem [shape: bf16[2,64,192], index: 11, kind: input, shape index: {}]
  %s12 = inlined_call_operand.vmem [shape: bf16[2,64,64], index: 12, kind: input, shape index: {}]
  %s13 = inlined_call_operand.vmem [shape: f32[2,64], index: 13, kind: input, shape index: {}]
  %s14 = inlined_call_operand.vmem [shape: f32[2,64], index: 14, kind: input, shape index: {}]
  %s15 = inlined_call_operand.vmem [shape: f32[2,64], index: 15, kind: input, shape index: {}]
  %s16 = inlined_call_operand.vmem [shape: bf16[2,64,128], index: 16, kind: input, shape index: {}]
  %s17 = inlined_call_operand.vmem [shape: f32[2,128], index: 17, kind: input, shape index: {}]
  %s18 = inlined_call_operand.vmem [shape: bf16[2,128,64], index: 18, kind: input, shape index: {}]
  %s19 = inlined_call_operand.vmem [shape: f32[2,64], index: 19, kind: input, shape index: {}]
  %s20 = inlined_call_operand.vmem [shape: f32[1,64], index: 20, kind: input, shape index: {}]
  %s21 = inlined_call_operand.vmem [shape: f32[1,64], index: 21, kind: input, shape index: {}]
  %s22 = inlined_call_operand.vmem [shape: bf16[64,128], index: 22, kind: input, shape index: {}]
  %s23 = inlined_call_operand.vmem [shape: f32[1,128], index: 23, kind: input, shape index: {}]
  %s24 = inlined_call_operand.hbm [shape: f32[2,8,128], index: 24, kind: output, shape index: {}]
  %s25 = sld [smem:[#allocation0]]
  $region130: #{tpu_custom_call.1} parent=0
    _
  %s27 = ssub.s32 1, %s25
  %s28 = scalar_select 0, %s27, %s25
  $region1: #{tpu_custom_call.1} parent=0
    #allocation3 [shape = 'u8[512]{0}', space=vmem, size = 0x400, scoped, tag = 'input window, operand 5, single buffered']
    #allocation4 [shape = 's32[1]{0}', space=sflag, size = 0x4, scoped, tag = 'scoped memory for tpu_custom_call.1']
    #allocation5 [shape = 's32[1]{0}', space=sflag, size = 0x4, scoped, tag = 'scoped memory for tpu_custom_call.1']
    #allocation6 [shape = 'u8[512]{0}', space=vmem, size = 0x400, scoped, tag = 'input window, operand 6, single buffered']
    #allocation7 [shape = 's32[1]{0}', space=sflag, size = 0x4, scoped, tag = 'scoped memory for tpu_custom_call.1']
    #allocation8 [shape = 'u8[512]{0}', space=vmem, size = 0x400, scoped, tag = 'input window, operand 7, single buffered']
    #allocation9 [shape = 'u8[4096]{0}', space=vmem, size = 0x1000, scoped, tag = 'input window, operand 8, single buffered']
    #allocation10 [shape = 's32[1]{0}', space=sflag, size = 0x4, scoped, tag = 'scoped memory for tpu_custom_call.1']
    #allocation11 [shape = 'u8[1024]{0}', space=vmem, size = 0x400, scoped, tag = 'input window, operand 9, single buffered']
    #allocation12 [shape = 'u8[1024]{0}', space=vmem, size = 0x400, scoped, tag = 'input window, operand 10, single buffered']
    #allocation13 [shape = 's32[1]{0}', space=sflag, size = 0x4, scoped, tag = 'scoped memory for tpu_custom_call.1']
    #allocation14 [shape = 'u8[8192]{0}', space=vmem, size = 0x2000, scoped, tag = 'output window, operand 0, single buffered']
    %29 = vsyncpa [#allocation4], 0
    %30 = vsyncpa [#allocation7], 0
    %31 = vsyncpa [#allocation10], 0
    %32 = vsyncpa [#allocation13], 0
    %33 = vsyncpa [#allocation5], 0
    // Predicated region
    $region2: #{tpu_custom_call.1} parent=1 // pred_check
      _
    $region3: #{tpu_custom_call.1} parent=1 // pred_check_branch
      %35 = sbr.rel (0) target = $region5
    $region4: #{tpu_custom_call.1} parent=1 // pred_region
      _
    $region5: #{tpu_custom_call.1} parent=1 // pred_fallthru
      _
    // Predicated region
    $region6: #{tpu_custom_call.1} parent=1 // pred_check
      _
    $region7: #{tpu_custom_call.1} parent=1 // pred_check_branch
      %37 = sbr.rel (0) target = $region9
    $region8: #{tpu_custom_call.1} parent=1 // pred_region
      _
    $region9: #{tpu_custom_call.1} parent=1 // pred_fallthru
      _
    // Predicated region
    $region10: #{tpu_custom_call.1} parent=1 // pred_check
      _
    $region11: #{tpu_custom_call.1} parent=1 // pred_check_branch
      %39 = sbr.rel (0) target = $region13
    $region12: #{tpu_custom_call.1} parent=1 // pred_region
      _
    $region13: #{tpu_custom_call.1} parent=1 // pred_fallthru
      _
    // Predicated region
    $region14: #{tpu_custom_call.1} parent=1 // pred_check
      _
    $region15: #{tpu_custom_call.1} parent=1 // pred_check_branch
      %41 = sbr.rel (0) target = $region17
    $region16: #{tpu_custom_call.1} parent=1 // pred_region
      _
    $region17: #{tpu_custom_call.1} parent=1 // pred_fallthru
      _
    // Predicated region
    $region18: #{tpu_custom_call.1} parent=1 // pred_check
      _
    $region19: #{tpu_custom_call.1} parent=1 // pred_check_branch
      %43 = sbr.rel (0) target = $region21
    $region20: #{tpu_custom_call.1} parent=1 // pred_region
      _
    $region21: #{tpu_custom_call.1} parent=1 // pred_fallthru
      _
    // Predicated region
    $region22: #{tpu_custom_call.1} parent=1 // pred_check
      _
    $region23: #{tpu_custom_call.1} parent=1 // pred_check_branch
      %45 = sbr.rel (0) target = $region25
    $region24: #{tpu_custom_call.1} parent=1 // pred_region
      %s47 = ssub.s32 16, 16
      %48 = vsyncadd [#allocation4], %s47
      %s50 = sshll.u32 [#allocation3], 4
      %s51 = int_to_ptr.vmem [resolvable:$true] %s50
      %53 = dma.hbm_to_vmem [thread:$0]  %s5, 16, %s51, [#allocation4]
    $region25: #{tpu_custom_call.1} parent=1 // pred_fallthru
      _
    // Predicated region
    $region26: #{tpu_custom_call.1} parent=1 // pred_check
      _
    $region27: #{tpu_custom_call.1} parent=1 // pred_check_branch
      %55 = sbr.rel (0) target = $region29
    $region28: #{tpu_custom_call.1} parent=1 // pred_region
      %s57 = ssub.s32 16, 16
      %58 = vsyncadd [#allocation7], %s57
      %s60 = sshll.u32 [#allocation6], 4
      %s61 = int_to_ptr.vmem [resolvable:$true] %s60
      %63 = dma.hbm_to_vmem [thread:$0]  %s6, 16, %s61, [#allocation7]
    $region29: #{tpu_custom_call.1} parent=1 // pred_fallthru
      _
    // Predicated region
    $region30: #{tpu_custom_call.1} parent=1 // pred_check
      _
    $region31: #{tpu_custom_call.1} parent=1 // pred_check_branch
      %65 = sbr.rel (0) target = $region33
    $region32: #{tpu_custom_call.1} parent=1 // pred_region
      %s67 = ssub.s32 16, 16
      %68 = vsyncadd [#allocation7], %s67
      %s70 = sshll.u32 [#allocation8], 4
      %s71 = int_to_ptr.vmem [resolvable:$true] %s70
      %73 = dma.hbm_to_vmem [thread:$0]  %s7, 16, %s71, [#allocation7]
    $region33: #{tpu_custom_call.1} parent=1 // pred_fallthru
      _
    // Predicated region
    $region34: #{tpu_custom_call.1} parent=1 // pred_check
      _
    $region35: #{tpu_custom_call.1} parent=1 // pred_check_branch
      %75 = sbr.rel (0) target = $region37
    $region36: #{tpu_custom_call.1} parent=1 // pred_region
      %s77 = ssub.s32 128, 128
      %78 = vsyncadd [#allocation10], %s77
      %s80 = sshll.u32 [#allocation9], 4
      %s81 = int_to_ptr.vmem [resolvable:$true] %s80
      %83 = dma.hbm_to_vmem [thread:$0]  %s8, 128, %s81, [#allocation10]
    $region37: #{tpu_custom_call.1} parent=1 // pred_fallthru
      _
    // Predicated region
    $region38: #{tpu_custom_call.1} parent=1 // pred_check
      _
    $region39: #{tpu_custom_call.1} parent=1 // pred_check_branch
      %85 = sbr.rel (0) target = $region41
    $region40: #{tpu_custom_call.1} parent=1 // pred_region
      %s87 = ssub.s32 32, 32
      %88 = vsyncadd [#allocation10], %s87
      %s90 = sshll.u32 [#allocation11], 4
      %s91 = int_to_ptr.vmem [resolvable:$true] %s90
      %93 = dma.hbm_to_vmem [thread:$0]  %s9, 32, %s91, [#allocation10]
    $region41: #{tpu_custom_call.1} parent=1 // pred_fallthru
      _
    // Predicated region
    $region42: #{tpu_custom_call.1} parent=1 // pred_check
      _
    $region43: #{tpu_custom_call.1} parent=1 // pred_check_branch
      %95 = sbr.rel (0) target = $region45
    $region44: #{tpu_custom_call.1} parent=1 // pred_region
      %s97 = ssub.s32 32, 32
      %98 = vsyncadd [#allocation13], %s97
      %s100 = sshll.u32 [#allocation12], 4
      %s101 = int_to_ptr.vmem [resolvable:$true] %s100
      %103 = dma.hbm_to_vmem [thread:$0]  %s10, 32, %s101, [#allocation13]
    $region45: #{tpu_custom_call.1} parent=1 // pred_fallthru
      _
    // Predicated region
    $region46: #{tpu_custom_call.1} parent=1 // pred_check
      _
    $region47: #{tpu_custom_call.1} parent=1 // pred_check_branch
      %105 = sbr.rel (0) target = $region49
    $region48: #{tpu_custom_call.1} parent=1 // pred_region
      _
    $region49: #{tpu_custom_call.1} parent=1 // pred_fallthru
      _
    // Predicated region
    $region50: #{tpu_custom_call.1} parent=1 // pred_check
      _
    $region51: #{tpu_custom_call.1} parent=1 // pred_check_branch
      %107 = sbr.rel (0) target = $region53
    $region52: #{tpu_custom_call.1} parent=1 // pred_region
      _
    $region53: #{tpu_custom_call.1} parent=1 // pred_fallthru
      _
    // Predicated region
    $region54: #{tpu_custom_call.1} parent=1 // pred_check
      _
    $region55: #{tpu_custom_call.1} parent=1 // pred_check_branch
      %109 = sbr.rel (0) target = $region57
    $region56: #{tpu_custom_call.1} parent=1 // pred_region
      _
    $region57: #{tpu_custom_call.1} parent=1 // pred_fallthru
      _
    // Predicated region
    $region58: #{tpu_custom_call.1} parent=1 // pred_check
      _
    $region59: #{tpu_custom_call.1} parent=1 // pred_check_branch
      %111 = sbr.rel (0) target = $region61
    $region60: #{tpu_custom_call.1} parent=1 // pred_region
      _
    $region61: #{tpu_custom_call.1} parent=1 // pred_fallthru
      _
    // Predicated region
    $region62: #{tpu_custom_call.1} parent=1 // pred_check
      _
    $region63: #{tpu_custom_call.1} parent=1 // pred_check_branch
      %113 = sbr.rel (0) target = $region65
    $region64: #{tpu_custom_call.1} parent=1 // pred_region
      _
    $region65: #{tpu_custom_call.1} parent=1 // pred_fallthru
      _
    // Predicated region
    $region66: #{tpu_custom_call.1} parent=1 // pred_check
      _
    $region67: #{tpu_custom_call.1} parent=1 // pred_check_branch
      %115 = sbr.rel (0) target = $region69
    $region68: #{tpu_custom_call.1} parent=1 // pred_region
      _
    $region69: #{tpu_custom_call.1} parent=1 // pred_fallthru
      _
    // Predicated region
    $region70: #{tpu_custom_call.1} parent=1 // pred_check
      _
    $region71: #{tpu_custom_call.1} parent=1 // pred_check_branch
      %117 = sbr.rel (0) target = $region73
    $region72: #{tpu_custom_call.1} parent=1 // pred_region
      _
    $region73: #{tpu_custom_call.1} parent=1 // pred_fallthru
      _
    // Predicated region
    $region74: #{tpu_custom_call.1} parent=1 // pred_check
      _
    $region75: #{tpu_custom_call.1} parent=1 // pred_check_branch
      %119 = sbr.rel (0) target = $region77
    $region76: #{tpu_custom_call.1} parent=1 // pred_region
      _
    $region77: #{tpu_custom_call.1} parent=1 // pred_fallthru
      _
    // Predicated region
    $region78: #{tpu_custom_call.1} parent=1 // pred_check
      _
    $region79: #{tpu_custom_call.1} parent=1 // pred_check_branch
      %121 = sbr.rel (0) target = $region81
    $region80: #{tpu_custom_call.1} parent=1 // pred_region
      _
    $region81: #{tpu_custom_call.1} parent=1 // pred_fallthru
      _
    // Predicated region
    $region82: #{tpu_custom_call.1} parent=1 // pred_check
      _
    $region83: #{tpu_custom_call.1} parent=1 // pred_check_branch
      %123 = sbr.rel (0) target = $region85
    $region84: #{tpu_custom_call.1} parent=1 // pred_region
      _
    $region85: #{tpu_custom_call.1} parent=1 // pred_fallthru
      _
    // Predicated region
    $region86: #{tpu_custom_call.1} parent=1 // pred_check
      _
    $region87: #{tpu_custom_call.1} parent=1 // pred_check_branch
      %125 = sbr.rel (0) target = $region89
    $region88: #{tpu_custom_call.1} parent=1 // pred_region
      _
    $region89: #{tpu_custom_call.1} parent=1 // pred_fallthru
      _
    // Predicated region
    $region90: #{tpu_custom_call.1} parent=1 // pred_check
      _
    $region91: #{tpu_custom_call.1} parent=1 // pred_check_branch
      %127 = sbr.rel (0) target = $region93
    $region92: #{tpu_custom_call.1} parent=1 // pred_region
      _
    $region93: #{tpu_custom_call.1} parent=1 // pred_fallthru
      _
    // Predicated region
    $region94: #{tpu_custom_call.1} parent=1 // pred_check
      _
    $region95: #{tpu_custom_call.1} parent=1 // pred_check_branch
      %129 = sbr.rel (0) target = $region97
    $region96: #{tpu_custom_call.1} parent=1 // pred_region
      _
    $region97: #{tpu_custom_call.1} parent=1 // pred_fallthru
      _
    // Predicated region
    $region98: #{tpu_custom_call.1} parent=1 // pred_check
      _
    $region99: #{tpu_custom_call.1} parent=1 // pred_check_branch
      %131 = sbr.rel (0) target = $region101
    $region100: #{tpu_custom_call.1} parent=1 // pred_region
      %132 = dma.done [#allocation4], 16
    $region101: #{tpu_custom_call.1} parent=1 // pred_fallthru
      _
    // Predicated region
    $region102: #{tpu_custom_call.1} parent=1 // pred_check
      _
    $region103: #{tpu_custom_call.1} parent=1 // pred_check_branch
      %134 = sbr.rel (0) target = $region105
    $region104: #{tpu_custom_call.1} parent=1 // pred_region
      %135 = dma.done [#allocation7], 16
    $region105: #{tpu_custom_call.1} parent=1 // pred_fallthru
      _
    // Predicated region
    $region106: #{tpu_custom_call.1} parent=1 // pred_check
      _
    $region107: #{tpu_custom_call.1} parent=1 // pred_check_branch
      %137 = sbr.rel (0) target = $region109
    $region108: #{tpu_custom_call.1} parent=1 // pred_region
      %138 = dma.done [#allocation7], 16
    $region109: #{tpu_custom_call.1} parent=1 // pred_fallthru
      _
    // Predicated region
    $region110: #{tpu_custom_call.1} parent=1 // pred_check
      _
    $region111: #{tpu_custom_call.1} parent=1 // pred_check_branch
      %140 = sbr.rel (0) target = $region113
    $region112: #{tpu_custom_call.1} parent=1 // pred_region
      %141 = dma.done [#allocation10], 128
    $region113: #{tpu_custom_call.1} parent=1 // pred_fallthru
      _
    // Predicated region
    $region114: #{tpu_custom_call.1} parent=1 // pred_check
      _
    $region115: #{tpu_custom_call.1} parent=1 // pred_check_branch
      %143 = sbr.rel (0) target = $region117
    $region116: #{tpu_custom_call.1} parent=1 // pred_region
      %144 = dma.done [#allocation10], 32
    $region117: #{tpu_custom_call.1} parent=1 // pred_fallthru
      _
    // Predicated region
    $region118: #{tpu_custom_call.1} parent=1 // pred_check
      _
    $region119: #{tpu_custom_call.1} parent=1 // pred_check_branch
      %146 = sbr.rel (0) target = $region121
    $region120: #{tpu_custom_call.1} parent=1 // pred_region
      %147 = dma.done [#allocation13], 32
    $region121: #{tpu_custom_call.1} parent=1 // pred_fallthru
      _
    %v149 = vld [vmem:[%s0] sm:$0xff]
    %v150 = vld [vmem:[%s0 + $0x8] sm:$0xff]
    %v151 = vld [vmem:[%s0 + $0x10] sm:$0xff]
    %v152 = vld [vmem:[%s0 + $0x18] sm:$0xff]
    %v153 = vld [vmem:[%s1] sm:$0x3]
    %v154 = vld [vmem:[%s2] sm:$0x3]
    %vm155 = vcmask 523264
    %v156 = vsel %vm155, %v150, 0.0
    %v157 = vadd.f32 %v149, %v156
    %158 = vadd.xlane.f32.xlu0 %v157
    %v159 = vpop.xlane.xlu0 %158
    %v160 = vsel %vm155, %v152, 0.0
    %v161 = vadd.f32 %v151, %v160
    %162 = vadd.xlane.f32.xlu0 %v161
    %v163 = vpop.xlane.xlu0 %162
    %v164 = vrcp.pop 192.0
    %v165 = vmul.f32 %v159, %v164
    %v166 = vmul.f32 %v163, %v164
    %v167 = vsub.f32 %v149, %v165
    %v168 = vsub.f32 %v150, %v165
    %v169 = vsub.f32 %v151, %v166
    %v170 = vsub.f32 %v152, %v166
    %v171 = vmul.f32 %v167, %v167
    %v172 = vmul.f32 %v168, %v168
    %v173 = vmul.f32 %v169, %v169
    %v174 = vmul.f32 %v170, %v170
    %v175 = vsel %vm155, %v172, 0.0
    %v176 = vadd.f32 %v171, %v175
    %177 = vadd.xlane.f32.xlu0 %v176
    %v178 = vpop.xlane.xlu0 %177
    %v179 = vsel %vm155, %v174, 0.0
    %v180 = vadd.f32 %v173, %v179
    %181 = vadd.xlane.f32.xlu0 %v180
    %v182 = vpop.xlane.xlu0 %181
    %v183 = vmul.f32 %v178, %v164
    %v184 = vmul.f32 %v182, %v164
    %v185 = vadd.f32 %v183, 1e-05
    %v186 = vadd.f32 %v184, 1e-05
    %v187 = vrsqrt.pop %v185
    %v188 = vrsqrt.pop %v186
    %v189 = vmul.f32 %v167, %v187
    %v190 = vmul.f32 %v168, %v187
    %v191 = vmul.f32 %v169, %v188
    %v192 = vmul.f32 %v170, %v188
    %v194 = vlaneseq
    %v195 = vshrl.u32 %v194, 7
    %v196 = vsub.s32 0, %v195
    %v197 = vrot.slane %v153, %v196
    %v198 = vlaneseq
    %v199 = vshrl.u32 %v198, 7
    %v200 = vsub.s32 1, %v199
    %v201 = vrot.slane %v153, %v200
    %v204 = vmul.f32 %v189, %v197
    %v205 = vmul.f32 %v190, %v201
    %v206 = vmul.f32 %v191, %v197
    %v207 = vmul.f32 %v192, %v201
    %v209 = vlaneseq
    %v210 = vshrl.u32 %v209, 7
    %v211 = vsub.s32 0, %v210
    %v212 = vrot.slane %v154, %v211
    %v213 = vlaneseq
    %v214 = vshrl.u32 %v213, 7
    %v215 = vsub.s32 1, %v214
    %v216 = vrot.slane %v154, %v215
    %v219 = vadd.f32 %v204, %v212
    %v220 = vadd.f32 %v205, %v216
    %v221 = vadd.f32 %v206, %v212
    %v222 = vadd.f32 %v207, %v216
    %v223 = vld [vmem:[%s3] sm:$0xf]
    %v224 = vld [vmem:[%s3 + $0x4] sm:$0xf]
    %v225 = vld [vmem:[%s3 + $0x8] sm:$0xf]
    %v226 = vld [vmem:[%s3 + $0xc] sm:$0xf]
    %v227 = vld [vmem:[%s3 + $0x10] sm:$0xf]
    %v228 = vld [vmem:[%s3 + $0x14] sm:$0xf]
    %v229 = vld [vmem:[%s3 + $0x18] sm:$0xf]
    %v230 = vld [vmem:[%s3 + $0x1c] sm:$0xf]
    %v231 = vld [vmem:[%s3 + $0x20] sm:$0xf]
    %v232 = vld [vmem:[%s3 + $0x24] sm:$0xf]
    %v233 = vld [vmem:[%s3 + $0x28] sm:$0xf]
    %v234 = vld [vmem:[%s3 + $0x2c] sm:$0xf]
    %v235 = vld [vmem:[%s3 + $0x30] sm:$0xf]
    %v236 = vld [vmem:[%s3 + $0x34] sm:$0xf]
    %v237 = vld [vmem:[%s3 + $0x38] sm:$0xf]
    %v238 = vld [vmem:[%s3 + $0x3c] sm:$0xf]
    %v239 = vld [vmem:[%s3 + $0x40] sm:$0xf]
    %v240 = vld [vmem:[%s3 + $0x44] sm:$0xf]
    %v241 = vld [vmem:[%s3 + $0x48] sm:$0xf]
    %v242 = vld [vmem:[%s3 + $0x4c] sm:$0xf]
    %v243 = vld [vmem:[%s3 + $0x50] sm:$0xf]
    %v244 = vld [vmem:[%s3 + $0x54] sm:$0xf]
    %v245 = vld [vmem:[%s3 + $0x58] sm:$0xf]
    %v246 = vld [vmem:[%s3 + $0x5c] sm:$0xf]
    %v247 = vpack.c.bf16 %v221, %v219
    %v248 = vpack.c.bf16 %v222, %v220
    %v249 = vld [vmem:[%s4] sm:$0x1]
    %v251 = vlaneseq
    %v252 = vshrl.u32 %v251, 7
    %v253 = vsub.s32 0, %v252
    %v254 = vrot.slane %v249, %v253
    %v280 = vunpack.c.l.b16 %v223
    %v281 = vunpack.c.l.b16 %v224
    %v282 = vunpack.c.l.b16 %v225
    %v283 = vunpack.c.l.b16 %v226
    %v284 = vunpack.c.l.b16 %v227
    %v285 = vunpack.c.l.b16 %v228
    %v286 = vunpack.c.l.b16 %v229
    %v287 = vunpack.c.l.b16 %v230
    %v288 = vunpack.c.l.b16 %v231
    %v289 = vunpack.c.l.b16 %v232
    %v290 = vunpack.c.l.b16 %v233
    %v291 = vunpack.c.l.b16 %v234
    %v292 = vunpack.c.l.b16 %v235
    %v293 = vunpack.c.l.b16 %v236
    %v294 = vunpack.c.l.b16 %v237
    %v295 = vunpack.c.l.b16 %v238
    %v296 = vunpack.c.l.b16 %v239
    %v297 = vunpack.c.l.b16 %v240
    %v298 = vunpack.c.l.b16 %v241
    %v299 = vunpack.c.l.b16 %v242
    %v300 = vunpack.c.l.b16 %v243
    %v301 = vunpack.c.l.b16 %v244
    %v302 = vunpack.c.l.b16 %v245
    %v303 = vunpack.c.l.b16 %v246
    %v304 = vpack.c.b16 %v281, %v280
    %v305 = vpack.c.b16 %v283, %v282
    %v306 = vpack.c.b16 %v285, %v284
    %v307 = vpack.c.b16 %v287, %v286
    %v308 = vpack.c.b16 %v289, %v288
    %v309 = vpack.c.b16 %v291, %v290
    %v310 = vpack.c.b16 %v293, %v292
    %v311 = vpack.c.b16 %v295, %v294
    %v312 = vpack.c.b16 %v297, %v296
    %v313 = vpack.c.b16 %v299, %v298
    %v314 = vpack.c.b16 %v301, %v300
    %v315 = vpack.c.b16 %v303, %v302
    %v329 = vsel %vm155, %v248, 0
    %331 = vmatprep.subr.bf16.mxu0 0
    %332 = vmatpush1.bf16.msra.mxu0 %v304
    %333 = vmatprep.subr.bf16.mxu0 0
    %334 = vmatpush1.bf16.msra.mxu0 %v305
    %335 = vmatprep.subr.bf16.mxu0 0
    %336 = vmatpush1.bf16.msra.mxu0 %v306
    %337 = vmatprep.subr.bf16.mxu0 0
    %338 = vmatpush1.bf16.msra.mxu0 %v307
    %339 = vmatprep.subr.bf16.mxu0 0
    %340 = vmatpush1.bf16.msra.mxu0 %v308
    %341 = vmatprep.subr.bf16.mxu0 0
    %342 = vmatpush1.bf16.msra.mxu0 %v309
    %343 = vmatprep.subr.bf16.mxu0 0
    %344 = vmatpush1.bf16.msra.mxu0 %v310
    %345 = vmatprep.subr.bf16.mxu0 0
    %346 = vmatpush1.bf16.msra.mxu0 %v311
    %347 = vmatprep.subr.bf16.mxu0 0
    %348 = vmatpush1.bf16.msra.mxu0 %v312
    %349 = vmatprep.subr.bf16.mxu0 0
    %350 = vmatpush1.bf16.msra.mxu0 %v313
    %351 = vmatprep.subr.bf16.mxu0 0
    %352 = vmatpush1.bf16.msra.mxu0 %v314
    %353 = vmatprep.subr.bf16.mxu0 0
    %354 = vmatpush1.bf16.msra.mxu0 %v315
    %355 = vmatprep.subr.bf16.mxu0 0
    %356 = vmatpush1.bf16.msra.mxu0 0
    %357 = vmatprep.subr.bf16.mxu0 0
    %358 = vmatpush1.bf16.msra.mxu0 0
    %359 = vmatprep.subr.bf16.mxu0 0
    %360 = vmatpush1.bf16.msra.mxu0 0
    %361 = vmatprep.subr.bf16.mxu0 0
    %362 = vmatpush1.bf16.msra.mxu0 0
    %363 = vmatprep.mubr.bf16.mxu0 %v329
    %364 = vmatmul.mubr.bf16.gmra.mrb[0].mxu0 %v247
    %v365 = vpop.f32.mrb[0].mxu0
    %v366 = vadd.f32 %v254, %v365
    %v367 = vpop.f32.mrb[0].mxu0
    %v368 = vpop.f32.mrb[0].mxu0
    %v369 = vadd.f32 %v254, %v368
    %v370 = vpop.f32.mrb[0].mxu0
    %371 = vdwg.mxu0
    %v372 = vld [vmem:[#allocation3] sm:$0x1]
    %v373 = vld [vmem:[#allocation6] sm:$0x1]
    %v374 = vsel %vm155, %v366, 0.0
    %375 = vadd.xlane.f32.xlu0 %v374
    %v376 = vpop.xlane.xlu0 %375
    %v377 = vsel %vm155, %v369, 0.0
    %378 = vadd.xlane.f32.xlu0 %v377
    %v379 = vpop.xlane.xlu0 %378
    %v380 = vrcp.pop 64.0
    %v381 = vmul.f32 %v376, %v380
    %v382 = vmul.f32 %v379, %v380
    %v383 = vsub.f32 %v366, %v381
    %v384 = vsub.f32 %v369, %v382
    %v385 = vmul.f32 %v383, %v383
    %v386 = vmul.f32 %v384, %v384
    %v387 = vsel %vm155, %v385, 0.0
    %388 = vadd.xlane.f32.xlu0 %v387
    %v389 = vpop.xlane.xlu0 %388
    %v390 = vsel %vm155, %v386, 0.0
    %391 = vadd.xlane.f32.xlu0 %v390
    %v392 = vpop.xlane.xlu0 %391
    %v393 = vmul.f32 %v389, %v380
    %v394 = vmul.f32 %v392, %v380
    %v395 = vadd.f32 %v393, 1e-05
    %v396 = vadd.f32 %v394, 1e-05
    %v397 = vrsqrt.pop %v395
    %v398 = vrsqrt.pop %v396
    %v399 = vmul.f32 %v383, %v397
    %v400 = vmul.f32 %v384, %v398
    %v402 = vlaneseq
    %v403 = vshrl.u32 %v402, 7
    %v404 = vsub.s32 0, %v403
    %v405 = vrot.slane %v372, %v404
    %v407 = vmul.f32 %v399, %v405
    %v408 = vmul.f32 %v400, %v405
    %v410 = vlaneseq
    %v411 = vshrl.u32 %v410, 7
    %v412 = vsub.s32 0, %v411
    %v413 = vrot.slane %v373, %v412
    %v415 = vadd.f32 %v407, %v413
    %v416 = vadd.f32 %v408, %v413
    %v417 = vlaneseq
    %v418 = vshrl.u32 %v417, 7
    %vm419 = vcmp.eq.s32.totalorder %v418, 0
    %v420 = vld [vmem:[#allocation8] sm:$0x1]
    %v422 = vlaneseq
    %v423 = vshrl.u32 %v422, 7
    %v424 = vsub.s32 0, %v423
    %v425 = vrot.slane %v420, %v424
    %v427 = vsel %vm419, %v425, %v415
    %v428 = vsel %vm419, %v425, %v416
    %v429 = vld [vmem:[#allocation9] sm:$0xff]
    %v430 = vadd.f32 %v427, %v429
    %v431 = vadd.f32 %v428, %v429
    %v432 = vlaneseq
    %v433 = vand.u32 %v432, 127
    %vm434 = vcmp.lt.s32.totalorder %v433, 5
    %v435 = vld [vmem:[#allocation11] sm:$0x1]
    %v436 = vld [vmem:[#allocation12] sm:$0x1]
    %v437 = vsel %vm155, %v430, 0.0
    %438 = vadd.xlane.f32.xlu0 %v437
    %v439 = vpop.xlane.xlu0 %438
    %v440 = vsel %vm155, %v431, 0.0
    %441 = vadd.xlane.f32.xlu0 %v440
    %v442 = vpop.xlane.xlu0 %441
    %v443 = vmul.f32 %v439, %v380
    %v444 = vmul.f32 %v442, %v380
    %v445 = vsub.f32 %v430, %v443
    %v446 = vsub.f32 %v431, %v444
    %v447 = vmul.f32 %v445, %v445
    %v448 = vmul.f32 %v446, %v446
    %v449 = vsel %vm155, %v447, 0.0
    %450 = vadd.xlane.f32.xlu0 %v449
    %v451 = vpop.xlane.xlu0 %450
    %v452 = vsel %vm155, %v448, 0.0
    %453 = vadd.xlane.f32.xlu0 %v452
    %v454 = vpop.xlane.xlu0 %453
    %v455 = vmul.f32 %v451, %v380
    %v456 = vmul.f32 %v454, %v380
    %v457 = vadd.f32 %v455, 1e-05
    %v458 = vadd.f32 %v456, 1e-05
    %v459 = vrsqrt.pop %v457
    %v460 = vrsqrt.pop %v458
    %v461 = vmul.f32 %v445, %v459
    %v462 = vmul.f32 %v446, %v460
    %v463 = vlaneseq
    %v464 = vshrl.u32 %v463, 7
    %v465 = vsub.s32 0, %v464
    %v466 = vrot.slane %v435, %v465
    %v467 = vmul.f32 %v461, %v466
    %v468 = vmul.f32 %v462, %v466
    %v469 = vlaneseq
    %v470 = vshrl.u32 %v469, 7
    %v471 = vsub.s32 0, %v470
    %v472 = vrot.slane %v436, %v471
    %v473 = vadd.f32 %v467, %v472
    %v474 = vadd.f32 %v468, %v472
    %v475 = vld [vmem:[%s11] sm:$0xff]
    %v476 = vld [vmem:[%s11 + $0x8] sm:$0xff]
    %v477 = vld [vmem:[%s11 + $0x10] sm:$0xff]
    %v478 = vld [vmem:[%s11 + $0x18] sm:$0xff]
    %v479 = vld [vmem:[%s11 + $0x20] sm:$0xff]
    %v480 = vld [vmem:[%s11 + $0x28] sm:$0xff]
    %v481 = vld [vmem:[%s11 + $0x30] sm:$0xff]
    %v482 = vld [vmem:[%s11 + $0x38] sm:$0xff]
    %v483 = vpack.c.bf16 %v474, %v473
    %v492 = vunpack.c.l.b16 %v475
    %v493 = vunpack.c.h.b16 %v475
    %v494 = vunpack.c.l.b16 %v476
    %v495 = vunpack.c.h.b16 %v476
    %v496 = vunpack.c.l.b16 %v477
    %v497 = vunpack.c.h.b16 %v477
    %v498 = vunpack.c.l.b16 %v478
    %v499 = vunpack.c.h.b16 %v478
    %v500 = vunpack.c.l.b16 %v479
    %v501 = vunpack.c.h.b16 %v479
    %v502 = vunpack.c.l.b16 %v480
    %v503 = vunpack.c.h.b16 %v480
    %v504 = vunpack.c.l.b16 %v481
    %v505 = vunpack.c.h.b16 %v481
    %v506 = vunpack.c.l.b16 %v482
    %v507 = vunpack.c.h.b16 %v482
    %v508 = vpack.c.b16 %v494, %v492
    %v509 = vpack.c.b16 %v495, %v493
    %v510 = vpack.c.b16 %v498, %v496
    %v511 = vpack.c.b16 %v499, %v497
    %v512 = vpack.c.b16 %v502, %v500
    %v513 = vpack.c.b16 %v503, %v501
    %v514 = vpack.c.b16 %v506, %v504
    %v515 = vpack.c.b16 %v507, %v505
    %v525 = vsel %vm155, %v483, 0
    %527 = vmatprep.subr.bf16.mxu0 %v509
    %528 = vmatpush1.bf16.msra.mxu0 %v508
    %529 = vmatprep.subr.bf16.mxu0 %v511
    %530 = vmatpush1.bf16.msra.mxu0 %v510
    %531 = vmatprep.subr.bf16.mxu0 %v513
    %532 = vmatpush1.bf16.msra.mxu0 %v512
    %533 = vmatprep.subr.bf16.mxu0 %v515
    %534 = vmatpush1.bf16.msra.mxu0 %v514
    %535 = vmatprep.subr.bf16.mxu0 0
    %536 = vmatpush1.bf16.msra.mxu0 0
    %537 = vmatprep.subr.bf16.mxu0 0
    %538 = vmatpush1.bf16.msra.mxu0 0
    %539 = vmatprep.subr.bf16.mxu0 0
    %540 = vmatpush1.bf16.msra.mxu0 0
    %541 = vmatprep.subr.bf16.mxu0 0
    %542 = vmatpush1.bf16.msra.mxu0 0
    %543 = vmatprep.subr.bf16.mxu0 0
    %544 = vmatpush1.bf16.msra.mxu0 0
    %545 = vmatprep.subr.bf16.mxu0 0
    %546 = vmatpush1.bf16.msra.mxu0 0
    %547 = vmatprep.subr.bf16.mxu0 0
    %548 = vmatpush1.bf16.msra.mxu0 0
    %549 = vmatprep.subr.bf16.mxu0 0
    %550 = vmatpush1.bf16.msra.mxu0 0
    %551 = vmatprep.subr.bf16.mxu0 0
    %552 = vmatpush1.bf16.msra.mxu0 0
    %553 = vmatprep.subr.bf16.mxu0 0
    %554 = vmatpush1.bf16.msra.mxu0 0
    %555 = vmatprep.subr.bf16.mxu0 0
    %556 = vmatpush1.bf16.msra.mxu0 0
    %557 = vmatprep.subr.bf16.mxu0 0
    %558 = vmatpush1.bf16.msra.mxu0 0
    %559 = vmatprep.mubr.bf16.mxu0 0
    %560 = vmatmul.mubr.bf16.gmra.mrb[0].mxu0 %v525
    %v561 = vpop.f32.mrb[0].mxu0
    %v562 = vadd.f32 0.0, %v561
    %v563 = vpop.f32.mrb[0].mxu0
    %v564 = vadd.f32 0.0, %v563
    %v565 = vpop.f32.mrb[0].mxu0
    %v566 = vadd.f32 0.0, %v565
    %v567 = vpop.f32.mrb[0].mxu0
    %v568 = vadd.f32 0.0, %v567
    %569 = vdwg.mxu0
    %v570 = vpack.c.bf16 %v562, %v562
    %v571 = vpack.c.bf16 %v566, %v566
    %573 = vrot.lane.b32.xlu0 %v570, 64
    %v574 = vpop.permute.xlu0 %573
    %vm575 = vcmask 130048
    %v577 = vsel %vm575, %v570, 0
    %v580 = vsel %vm575, %v574, 0
    %582 = vmatprep.subr.bf16.mxu0 0
    %583 = vmatpush1.bf16.xpose.msra.mxu0 %v580
    %584 = vmatprep.subr.bf16.mxu0 0
    %585 = vmatpush1.bf16.xpose.msra.mxu0 0
    %586 = vmatprep.subr.bf16.mxu0 0
    %587 = vmatpush1.bf16.xpose.msra.mxu0 0
    %588 = vmatprep.subr.bf16.mxu0 0
    %589 = vmatpush1.bf16.xpose.msra.mxu0 0
    %590 = vmatprep.subr.bf16.mxu0 0
    %591 = vmatpush1.bf16.xpose.msra.mxu0 0
    %592 = vmatprep.subr.bf16.mxu0 0
    %593 = vmatpush1.bf16.xpose.msra.mxu0 0
    %594 = vmatprep.subr.bf16.mxu0 0
    %595 = vmatpush1.bf16.xpose.msra.mxu0 0
    %596 = vmatprep.subr.bf16.mxu0 0
    %597 = vmatpush1.bf16.xpose.msra.mxu0 0
    %598 = vmatprep.subr.bf16.mxu0 0
    %599 = vmatpush1.bf16.xpose.msra.mxu0 0
    %600 = vmatprep.subr.bf16.mxu0 0
    %601 = vmatpush1.bf16.xpose.msra.mxu0 0
    %602 = vmatprep.subr.bf16.mxu0 0
    %603 = vmatpush1.bf16.xpose.msra.mxu0 0
    %604 = vmatprep.subr.bf16.mxu0 0
    %605 = vmatpush1.bf16.xpose.msra.mxu0 0
    %606 = vmatprep.subr.bf16.mxu0 0
    %607 = vmatpush1.bf16.xpose.msra.mxu0 0
    %608 = vmatprep.subr.bf16.mxu0 0
    %609 = vmatpush1.bf16.xpose.msra.mxu0 0
    %610 = vmatprep.subr.bf16.mxu0 0
    %611 = vmatpush1.bf16.xpose.msra.mxu0 0
    %612 = vmatprep.subr.bf16.mxu0 0
    %613 = vmatpush1.bf16.xpose.msra.mxu0 0
    %614 = vmatprep.mubr.bf16.mxu0 0
    %615 = vmatmul.mubr.bf16.gmra.mrb[0].mxu0 %v577
    %v616 = vpop.f32.mrb[0].mxu0
    %v617 = vadd.f32 0.0, %v616
    %v618 = vpop.f32.mrb[0].mxu0
    %v619 = vpop.f32.mrb[0].mxu0
    %v620 = vpop.f32.mrb[0].mxu0
    %621 = vdwg.mxu0
    %623 = vrot.lane.b32.xlu0 %v571, 64
    %v624 = vpop.permute.xlu0 %623
    %v626 = vsel %vm575, %v571, 0
    %v629 = vsel %vm575, %v624, 0
    %631 = vmatprep.subr.bf16.mxu0 0
    %632 = vmatpush1.bf16.xpose.msra.mxu0 %v629
    %633 = vmatprep.subr.bf16.mxu0 0
    %634 = vmatpush1.bf16.xpose.msra.mxu0 0
    %635 = vmatprep.subr.bf16.mxu0 0
    %636 = vmatpush1.bf16.xpose.msra.mxu0 0
    %637 = vmatprep.subr.bf16.mxu0 0
    %638 = vmatpush1.bf16.xpose.msra.mxu0 0
    %639 = vmatprep.subr.bf16.mxu0 0
    %640 = vmatpush1.bf16.xpose.msra.mxu0 0
    %641 = vmatprep.subr.bf16.mxu0 0
    %642 = vmatpush1.bf16.xpose.msra.mxu0 0
    %643 = vmatprep.subr.bf16.mxu0 0
    %644 = vmatpush1.bf16.xpose.msra.mxu0 0
    %645 = vmatprep.subr.bf16.mxu0 0
    %646 = vmatpush1.bf16.xpose.msra.mxu0 0
    %647 = vmatprep.subr.bf16.mxu0 0
    %648 = vmatpush1.bf16.xpose.msra.mxu0 0
    %649 = vmatprep.subr.bf16.mxu0 0
    %650 = vmatpush1.bf16.xpose.msra.mxu0 0
    %651 = vmatprep.subr.bf16.mxu0 0
    %652 = vmatpush1.bf16.xpose.msra.mxu0 0
    %653 = vmatprep.subr.bf16.mxu0 0
    %654 = vmatpush1.bf16.xpose.msra.mxu0 0
    %655 = vmatprep.subr.bf16.mxu0 0
    %656 = vmatpush1.bf16.xpose.msra.mxu0 0
    %657 = vmatprep.subr.bf16.mxu0 0
    %658 = vmatpush1.bf16.xpose.msra.mxu0 0
    %659 = vmatprep.subr.bf16.mxu0 0
    %660 = vmatpush1.bf16.xpose.msra.mxu0 0
    %661 = vmatprep.subr.bf16.mxu0 0
    %662 = vmatpush1.bf16.xpose.msra.mxu0 0
    %663 = vmatprep.mubr.bf16.mxu0 0
    %664 = vmatmul.mubr.bf16.gmra.mrb[0].mxu0 %v626
    %v665 = vpop.f32.mrb[0].mxu0
    %v666 = vadd.f32 0.0, %v665
    %v667 = vpop.f32.mrb[0].mxu0
    %v668 = vpop.f32.mrb[0].mxu0
    %v669 = vpop.f32.mrb[0].mxu0
    %670 = vdwg.mxu0
    %v671 = vsel %vm434, %v617, -1e+30
    %v672 = vsel %vm434, %v666, -1e+30
    %vm673 = vcmask 64512
    %v674 = vsel %vm673, %v671, -inf
    %675 = vmax.xlane.f32.xlu0 %v674
    %v676 = vpop.xlane.xlu0 %675
    %v677 = vsel %vm673, %v672, -inf
    %678 = vmax.xlane.f32.xlu0 %v677
    %v679 = vpop.xlane.xlu0 %678
    %v680 = vsub.f32 %v671, %v676
    %v681 = vsub.f32 %v672, %v679
    %v682 = vmul.f32 %v680, 1.442695
    %v683 = vpow.pop %v682
    %v684 = vmul.f32 %v681, 1.442695
    %v685 = vpow.pop %v684
    %v686 = vsel %vm673, %v683, 0.0
    %687 = vadd.xlane.f32.xlu0 %v686
    %v688 = vpop.xlane.xlu0 %687
    %v689 = vsel %vm673, %v685, 0.0
    %690 = vadd.xlane.f32.xlu0 %v689
    %v691 = vpop.xlane.xlu0 %690
    %v692 = vrcp.pop %v688
    %v693 = vmul.f32 %v683, %v692
    %v694 = vrcp.pop %v691
    %v695 = vmul.f32 %v685, %v694
    %v696 = vpack.c.bf16 %v693, %v693
    %v697 = vpack.c.bf16 %v695, %v695
    %v698 = vpack.c.bf16 %v564, %v564
    %v699 = vpack.c.bf16 %v568, %v568
    %v701 = vsel %vm673, %v696, 0
    %vm703 = vcmask 1043456
    %v705 = vsel %vm703, %v698, 0
    %707 = vmatprep.subr.bf16.mxu0 0
    %708 = vmatpush1.bf16.msra.mxu0 %v705
    %709 = vmatprep.subr.bf16.mxu0 0
    %710 = vmatpush1.bf16.msra.mxu0 0
    %711 = vmatprep.subr.bf16.mxu0 0
    %712 = vmatpush1.bf16.msra.mxu0 0
    %713 = vmatprep.subr.bf16.mxu0 0
    %714 = vmatpush1.bf16.msra.mxu0 0
    %715 = vmatprep.subr.bf16.mxu0 0
    %716 = vmatpush1.bf16.msra.mxu0 0
    %717 = vmatprep.subr.bf16.mxu0 0
    %718 = vmatpush1.bf16.msra.mxu0 0
    %719 = vmatprep.subr.bf16.mxu0 0
    %720 = vmatpush1.bf16.msra.mxu0 0
    %721 = vmatprep.subr.bf16.mxu0 0
    %722 = vmatpush1.bf16.msra.mxu0 0
    %723 = vmatprep.subr.bf16.mxu0 0
    %724 = vmatpush1.bf16.msra.mxu0 0
    %725 = vmatprep.subr.bf16.mxu0 0
    %726 = vmatpush1.bf16.msra.mxu0 0
    %727 = vmatprep.subr.bf16.mxu0 0
    %728 = vmatpush1.bf16.msra.mxu0 0
    %729 = vmatprep.subr.bf16.mxu0 0
    %730 = vmatpush1.bf16.msra.mxu0 0
    %731 = vmatprep.subr.bf16.mxu0 0
    %732 = vmatpush1.bf16.msra.mxu0 0
    %733 = vmatprep.subr.bf16.mxu0 0
    %734 = vmatpush1.bf16.msra.mxu0 0
    %735 = vmatprep.subr.bf16.mxu0 0
    %736 = vmatpush1.bf16.msra.mxu0 0
    %737 = vmatprep.subr.bf16.mxu0 0
    %738 = vmatpush1.bf16.msra.mxu0 0
    %739 = vmatprep.mubr.bf16.mxu0 0
    %740 = vmatmul.mubr.bf16.gmra.mrb[0].mxu0 %v701
    %v741 = vpop.f32.mrb[0].mxu0
    %v742 = vadd.f32 0.0, %v741
    %v743 = vpop.f32.mrb[0].mxu0
    %v744 = vpop.f32.mrb[0].mxu0
    %v745 = vpop.f32.mrb[0].mxu0
    %746 = vdwg.mxu0
    %v748 = vsel %vm673, %v697, 0
    %v751 = vsel %vm703, %v699, 0
    %753 = vmatprep.subr.bf16.mxu0 0
    %754 = vmatpush1.bf16.msra.mxu0 %v751
    %755 = vmatprep.subr.bf16.mxu0 0
    %756 = vmatpush1.bf16.msra.mxu0 0
    %757 = vmatprep.subr.bf16.mxu0 0
    %758 = vmatpush1.bf16.msra.mxu0 0
    %759 = vmatprep.subr.bf16.mxu0 0
    %760 = vmatpush1.bf16.msra.mxu0 0
    %761 = vmatprep.subr.bf16.mxu0 0
    %762 = vmatpush1.bf16.msra.mxu0 0
    %763 = vmatprep.subr.bf16.mxu0 0
    %764 = vmatpush1.bf16.msra.mxu0 0
    %765 = vmatprep.subr.bf16.mxu0 0
    %766 = vmatpush1.bf16.msra.mxu0 0
    %767 = vmatprep.subr.bf16.mxu0 0
    %768 = vmatpush1.bf16.msra.mxu0 0
    %769 = vmatprep.subr.bf16.mxu0 0
    %770 = vmatpush1.bf16.msra.mxu0 0
    %771 = vmatprep.subr.bf16.mxu0 0
    %772 = vmatpush1.bf16.msra.mxu0 0
    %773 = vmatprep.subr.bf16.mxu0 0
    %774 = vmatpush1.bf16.msra.mxu0 0
    %775 = vmatprep.subr.bf16.mxu0 0
    %776 = vmatpush1.bf16.msra.mxu0 0
    %777 = vmatprep.subr.bf16.mxu0 0
    %778 = vmatpush1.bf16.msra.mxu0 0
    %779 = vmatprep.subr.bf16.mxu0 0
    %780 = vmatpush1.bf16.msra.mxu0 0
    %781 = vmatprep.subr.bf16.mxu0 0
    %782 = vmatpush1.bf16.msra.mxu0 0
    %783 = vmatprep.subr.bf16.mxu0 0
    %784 = vmatpush1.bf16.msra.mxu0 0
    %785 = vmatprep.mubr.bf16.mxu0 0
    %786 = vmatmul.mubr.bf16.gmra.mrb[0].mxu0 %v748
    %v787 = vpop.f32.mrb[0].mxu0
    %v788 = vadd.f32 0.0, %v787
    %v789 = vpop.f32.mrb[0].mxu0
    %v790 = vpop.f32.mrb[0].mxu0
    %v791 = vpop.f32.mrb[0].mxu0
    %792 = vdwg.mxu0
    %793 = vst.msk [vmem:[#allocation2] sm:$0xff] %vm575, %v742
    %794 = vst.msk [vmem:[#allocation2 + $0x8] sm:$0xff] %vm575, %v788
    %795 = vrot.lane.b32.xlu0 %v570, 112
    %v796 = vpop.permute.xlu0 %795
    %797 = vrot.lane.b32.xlu0 %v570, 48
    %v798 = vpop.permute.xlu0 %797
    %v800 = vsel %vm575, %v796, 0
    %v803 = vsel %vm575, %v798, 0
    %805 = vmatprep.subr.bf16.mxu0 0
    %806 = vmatpush1.bf16.xpose.msra.mxu0 %v803
    %807 = vmatprep.subr.bf16.mxu0 0
    %808 = vmatpush1.bf16.xpose.msra.mxu0 0
    %809 = vmatprep.subr.bf16.mxu0 0
    %810 = vmatpush1.bf16.xpose.msra.mxu0 0
    %811 = vmatprep.subr.bf16.mxu0 0
    %812 = vmatpush1.bf16.xpose.msra.mxu0 0
    %813 = vmatprep.subr.bf16.mxu0 0
    %814 = vmatpush1.bf16.xpose.msra.mxu0 0
    %815 = vmatprep.subr.bf16.mxu0 0
    %816 = vmatpush1.bf16.xpose.msra.mxu0 0
    %817 = vmatprep.subr.bf16.mxu0 0
    %818 = vmatpush1.bf16.xpose.msra.mxu0 0
    %819 = vmatprep.subr.bf16.mxu0 0
    %820 = vmatpush1.bf16.xpose.msra.mxu0 0
    %821 = vmatprep.subr.bf16.mxu0 0
    %822 = vmatpush1.bf16.xpose.msra.mxu0 0
    %823 = vmatprep.subr.bf16.mxu0 0
    %824 = vmatpush1.bf16.xpose.msra.mxu0 0
    %825 = vmatprep.subr.bf16.mxu0 0
    %826 = vmatpush1.bf16.xpose.msra.mxu0 0
    %827 = vmatprep.subr.bf16.mxu0 0
    %828 = vmatpush1.bf16.xpose.msra.mxu0 0
    %829 = vmatprep.subr.bf16.mxu0 0
    %830 = vmatpush1.bf16.xpose.msra.mxu0 0
    %831 = vmatprep.subr.bf16.mxu0 0
    %832 = vmatpush1.bf16.xpose.msra.mxu0 0
    %833 = vmatprep.subr.bf16.mxu0 0
    %834 = vmatpush1.bf16.xpose.msra.mxu0 0
    %835 = vmatprep.subr.bf16.mxu0 0
    %836 = vmatpush1.bf16.xpose.msra.mxu0 0
    %837 = vmatprep.mubr.bf16.mxu0 0
    %838 = vmatmul.mubr.bf16.gmra.mrb[0].mxu0 %v800
    %v839 = vpop.f32.mrb[0].mxu0
    %v840 = vadd.f32 0.0, %v839
    %v841 = vpop.f32.mrb[0].mxu0
    %v842 = vpop.f32.mrb[0].mxu0
    %v843 = vpop.f32.mrb[0].mxu0
    %844 = vdwg.mxu0
    %845 = vrot.lane.b32.xlu0 %v571, 112
    %v846 = vpop.permute.xlu0 %845
    %847 = vrot.lane.b32.xlu0 %v571, 48
    %v848 = vpop.permute.xlu0 %847
    %v850 = vsel %vm575, %v846, 0
    %v853 = vsel %vm575, %v848, 0
    %855 = vmatprep.subr.bf16.mxu0 0
    %856 = vmatpush1.bf16.xpose.msra.mxu0 %v853
    %857 = vmatprep.subr.bf16.mxu0 0
    %858 = vmatpush1.bf16.xpose.msra.mxu0 0
    %859 = vmatprep.subr.bf16.mxu0 0
    %860 = vmatpush1.bf16.xpose.msra.mxu0 0
    %861 = vmatprep.subr.bf16.mxu0 0
    %862 = vmatpush1.bf16.xpose.msra.mxu0 0
    %863 = vmatprep.subr.bf16.mxu0 0
    %864 = vmatpush1.bf16.xpose.msra.mxu0 0
    %865 = vmatprep.subr.bf16.mxu0 0
    %866 = vmatpush1.bf16.xpose.msra.mxu0 0
    %867 = vmatprep.subr.bf16.mxu0 0
    %868 = vmatpush1.bf16.xpose.msra.mxu0 0
    %869 = vmatprep.subr.bf16.mxu0 0
    %870 = vmatpush1.bf16.xpose.msra.mxu0 0
    %871 = vmatprep.subr.bf16.mxu0 0
    %872 = vmatpush1.bf16.xpose.msra.mxu0 0
    %873 = vmatprep.subr.bf16.mxu0 0
    %874 = vmatpush1.bf16.xpose.msra.mxu0 0
    %875 = vmatprep.subr.bf16.mxu0 0
    %876 = vmatpush1.bf16.xpose.msra.mxu0 0
    %877 = vmatprep.subr.bf16.mxu0 0
    %878 = vmatpush1.bf16.xpose.msra.mxu0 0
    %879 = vmatprep.subr.bf16.mxu0 0
    %880 = vmatpush1.bf16.xpose.msra.mxu0 0
    %881 = vmatprep.subr.bf16.mxu0 0
    %882 = vmatpush1.bf16.xpose.msra.mxu0 0
    %883 = vmatprep.subr.bf16.mxu0 0
    %884 = vmatpush1.bf16.xpose.msra.mxu0 0
    %885 = vmatprep.subr.bf16.mxu0 0
    %886 = vmatpush1.bf16.xpose.msra.mxu0 0
    %887 = vmatprep.mubr.bf16.mxu0 0
    %888 = vmatmul.mubr.bf16.gmra.mrb[0].mxu0 %v850
    %v889 = vpop.f32.mrb[0].mxu0
    %v890 = vadd.f32 0.0, %v889
    %v891 = vpop.f32.mrb[0].mxu0
    %v892 = vpop.f32.mrb[0].mxu0
    %v893 = vpop.f32.mrb[0].mxu0
    %894 = vdwg.mxu0
    %v895 = vsel %vm434, %v840, -1e+30
    %v896 = vsel %vm434, %v890, -1e+30
    %v897 = vsel %vm673, %v895, -inf
    %898 = vmax.xlane.f32.xlu0 %v897
    %v899 = vpop.xlane.xlu0 %898
    %v900 = vsel %vm673, %v896, -inf
    %901 = vmax.xlane.f32.xlu0 %v900
    %v902 = vpop.xlane.xlu0 %901
    %v903 = vsub.f32 %v895, %v899
    %v904 = vsub.f32 %v896, %v902
    %v905 = vmul.f32 %v903, 1.442695
    %v906 = vpow.pop %v905
    %v907 = vmul.f32 %v904, 1.442695
    %v908 = vpow.pop %v907
    %v909 = vsel %vm673, %v906, 0.0
    %910 = vadd.xlane.f32.xlu0 %v909
    %v911 = vpop.xlane.xlu0 %910
    %v912 = vsel %vm673, %v908, 0.0
    %913 = vadd.xlane.f32.xlu0 %v912
    %v914 = vpop.xlane.xlu0 %913
    %v915 = vrcp.pop %v911
    %v916 = vmul.f32 %v906, %v915
    %v917 = vrcp.pop %v914
    %v918 = vmul.f32 %v908, %v917
    %v919 = vpack.c.bf16 %v916, %v916
    %v920 = vpack.c.bf16 %v918, %v918
    %922 = vrot.lane.b32.xlu0 %v698, 112
    %v923 = vpop.permute.xlu0 %922
    %v925 = vsel %vm673, %v919, 0
    %v928 = vsel %vm703, %v923, 0
    %930 = vmatprep.subr.bf16.mxu0 0
    %931 = vmatpush1.bf16.msra.mxu0 %v928
    %932 = vmatprep.subr.bf16.mxu0 0
    %933 = vmatpush1.bf16.msra.mxu0 0
    %934 = vmatprep.subr.bf16.mxu0 0
    %935 = vmatpush1.bf16.msra.mxu0 0
    %936 = vmatprep.subr.bf16.mxu0 0
    %937 = vmatpush1.bf16.msra.mxu0 0
    %938 = vmatprep.subr.bf16.mxu0 0
    %939 = vmatpush1.bf16.msra.mxu0 0
    %940 = vmatprep.subr.bf16.mxu0 0
    %941 = vmatpush1.bf16.msra.mxu0 0
    %942 = vmatprep.subr.bf16.mxu0 0
    %943 = vmatpush1.bf16.msra.mxu0 0
    %944 = vmatprep.subr.bf16.mxu0 0
    %945 = vmatpush1.bf16.msra.mxu0 0
    %946 = vmatprep.subr.bf16.mxu0 0
    %947 = vmatpush1.bf16.msra.mxu0 0
    %948 = vmatprep.subr.bf16.mxu0 0
    %949 = vmatpush1.bf16.msra.mxu0 0
    %950 = vmatprep.subr.bf16.mxu0 0
    %951 = vmatpush1.bf16.msra.mxu0 0
    %952 = vmatprep.subr.bf16.mxu0 0
    %953 = vmatpush1.bf16.msra.mxu0 0
    %954 = vmatprep.subr.bf16.mxu0 0
    %955 = vmatpush1.bf16.msra.mxu0 0
    %956 = vmatprep.subr.bf16.mxu0 0
    %957 = vmatpush1.bf16.msra.mxu0 0
    %958 = vmatprep.subr.bf16.mxu0 0
    %959 = vmatpush1.bf16.msra.mxu0 0
    %960 = vmatprep.subr.bf16.mxu0 0
    %961 = vmatpush1.bf16.msra.mxu0 0
    %962 = vmatprep.mubr.bf16.mxu0 0
    %963 = vmatmul.mubr.bf16.gmra.mrb[0].mxu0 %v925
    %v964 = vpop.f32.mrb[0].mxu0
    %v965 = vadd.f32 0.0, %v964
    %v966 = vpop.f32.mrb[0].mxu0
    %v967 = vpop.f32.mrb[0].mxu0
    %v968 = vpop.f32.mrb[0].mxu0
    %969 = vdwg.mxu0
    %971 = vrot.lane.b32.xlu0 %v699, 112
    %v972 = vpop.permute.xlu0 %971
    %v974 = vsel %vm673, %v920, 0
    %v977 = vsel %vm703, %v972, 0
    %979 = vmatprep.subr.bf16.mxu0 0
    %980 = vmatpush1.bf16.msra.mxu0 %v977
    %981 = vmatprep.subr.bf16.mxu0 0
    %982 = vmatpush1.bf16.msra.mxu0 0
    %983 = vmatprep.subr.bf16.mxu0 0
    %984 = vmatpush1.bf16.msra.mxu0 0
    %985 = vmatprep.subr.bf16.mxu0 0
    %986 = vmatpush1.bf16.msra.mxu0 0
    %987 = vmatprep.subr.bf16.mxu0 0
    %988 = vmatpush1.bf16.msra.mxu0 0
    %989 = vmatprep.subr.bf16.mxu0 0
    %990 = vmatpush1.bf16.msra.mxu0 0
    %991 = vmatprep.subr.bf16.mxu0 0
    %992 = vmatpush1.bf16.msra.mxu0 0
    %993 = vmatprep.subr.bf16.mxu0 0
    %994 = vmatpush1.bf16.msra.mxu0 0
    %995 = vmatprep.subr.bf16.mxu0 0
    %996 = vmatpush1.bf16.msra.mxu0 0
    %997 = vmatprep.subr.bf16.mxu0 0
    %998 = vmatpush1.bf16.msra.mxu0 0
    %999 = vmatprep.subr.bf16.mxu0 0
    %1000 = vmatpush1.bf16.msra.mxu0 0
    %1001 = vmatprep.subr.bf16.mxu0 0
    %1002 = vmatpush1.bf16.msra.mxu0 0
    %1003 = vmatprep.subr.bf16.mxu0 0
    %1004 = vmatpush1.bf16.msra.mxu0 0
    %1005 = vmatprep.subr.bf16.mxu0 0
    %1006 = vmatpush1.bf16.msra.mxu0 0
    %1007 = vmatprep.subr.bf16.mxu0 0
    %1008 = vmatpush1.bf16.msra.mxu0 0
    %1009 = vmatprep.subr.bf16.mxu0 0
    %1010 = vmatpush1.bf16.msra.mxu0 0
    %1011 = vmatprep.mubr.bf16.mxu0 0
    %1012 = vmatmul.mubr.bf16.gmra.mrb[0].mxu0 %v974
    %v1013 = vpop.f32.mrb[0].mxu0
    %v1014 = vadd.f32 0.0, %v1013
    %v1015 = vpop.f32.mrb[0].mxu0
    %v1016 = vpop.f32.mrb[0].mxu0
    %v1017 = vpop.f32.mrb[0].mxu0
    %1018 = vdwg.mxu0
    %1021 = vrot.lane.b32.xlu0 %v965, 16
    %v1022 = vpop.permute.xlu0 %1021
    %1023 = vrot.lane.b32.xlu0 %v1014, 16
    %v1024 = vpop.permute.xlu0 %1023
    %vm1027 = vcmask 261248
    %1028 = vst.msk [vmem:[#allocation2] sm:$0xff] %vm1027, %v1022
    %1029 = vst.msk [vmem:[#allocation2 + $0x8] sm:$0xff] %vm1027, %v1024
    %1030 = vrot.lane.b32.xlu0 %v570, 96
    %v1031 = vpop.permute.xlu0 %1030
    %1032 = vrot.lane.b32.xlu0 %v570, 32
    %v1033 = vpop.permute.xlu0 %1032
    %v1035 = vsel %vm575, %v1031, 0
    %v1038 = vsel %vm575, %v1033, 0
    %1040 = vmatprep.subr.bf16.mxu0 0
    %1041 = vmatpush1.bf16.xpose.msra.mxu0 %v1038
    %1042 = vmatprep.subr.bf16.mxu0 0
    %1043 = vmatpush1.bf16.xpose.msra.mxu0 0
    %1044 = vmatprep.subr.bf16.mxu0 0
    %1045 = vmatpush1.bf16.xpose.msra.mxu0 0
    %1046 = vmatprep.subr.bf16.mxu0 0
    %1047 = vmatpush1.bf16.xpose.msra.mxu0 0
    %1048 = vmatprep.subr.bf16.mxu0 0
    %1049 = vmatpush1.bf16.xpose.msra.mxu0 0
    %1050 = vmatprep.subr.bf16.mxu0 0
    %1051 = vmatpush1.bf16.xpose.msra.mxu0 0
    %1052 = vmatprep.subr.bf16.mxu0 0
    %1053 = vmatpush1.bf16.xpose.msra.mxu0 0
    %1054 = vmatprep.subr.bf16.mxu0 0
    %1055 = vmatpush1.bf16.xpose.msra.mxu0 0
    %1056 = vmatprep.subr.bf16.mxu0 0
    %1057 = vmatpush1.bf16.xpose.msra.mxu0 0
    %1058 = vmatprep.subr.bf16.mxu0 0
    %1059 = vmatpush1.bf16.xpose.msra.mxu0 0
    %1060 = vmatprep.subr.bf16.mxu0 0
    %1061 = vmatpush1.bf16.xpose.msra.mxu0 0
    %1062 = vmatprep.subr.bf16.mxu0 0
    %1063 = vmatpush1.bf16.xpose.msra.mxu0 0
    %1064 = vmatprep.subr.bf16.mxu0 0
    %1065 = vmatpush1.bf16.xpose.msra.mxu0 0
    %1066 = vmatprep.subr.bf16.mxu0 0
    %1067 = vmatpush1.bf16.xpose.msra.mxu0 0
    %1068 = vmatprep.subr.bf16.mxu0 0
    %1069 = vmatpush1.bf16.xpose.msra.mxu0 0
    %1070 = vmatprep.subr.bf16.mxu0 0
    %1071 = vmatpush1.bf16.xpose.msra.mxu0 0
    %1072 = vmatprep.mubr.bf16.mxu0 0
    %1073 = vmatmul.mubr.bf16.gmra.mrb[0].mxu0 %v1035
    %v1074 = vpop.f32.mrb[0].mxu0
    %v1075 = vadd.f32 0.0, %v1074
    %v1076 = vpop.f32.mrb[0].mxu0
    %v1077 = vpop.f32.mrb[0].mxu0
    %v1078 = vpop.f32.mrb[0].mxu0
    %1079 = vdwg.mxu0
    %1080 = vrot.lane.b32.xlu0 %v571, 96
    %v1081 = vpop.permute.xlu0 %1080
    %1082 = vrot.lane.b32.xlu0 %v571, 32
    %v1083 = vpop.permute.xlu0 %1082
    %v1085 = vsel %vm575, %v1081, 0
    %v1088 = vsel %vm575, %v1083, 0
    %1090 = vmatprep.subr.bf16.mxu0 0
    %1091 = vmatpush1.bf16.xpose.msra.mxu0 %v1088
    %1092 = vmatprep.subr.bf16.mxu0 0
    %1093 = vmatpush1.bf16.xpose.msra.mxu0 0
    %1094 = vmatprep.subr.bf16.mxu0 0
    %1095 = vmatpush1.bf16.xpose.msra.mxu0 0
    %1096 = vmatprep.subr.bf16.mxu0 0
    %1097 = vmatpush1.bf16.xpose.msra.mxu0 0
    %1098 = vmatprep.subr.bf16.mxu0 0
    %1099 = vmatpush1.bf16.xpose.msra.mxu0 0
    %1100 = vmatprep.subr.bf16.mxu0 0
    %1101 = vmatpush1.bf16.xpose.msra.mxu0 0
    %1102 = vmatprep.subr.bf16.mxu0 0
    %1103 = vmatpush1.bf16.xpose.msra.mxu0 0
    %1104 = vmatprep.subr.bf16.mxu0 0
    %1105 = vmatpush1.bf16.xpose.msra.mxu0 0
    %1106 = vmatprep.subr.bf16.mxu0 0
    %1107 = vmatpush1.bf16.xpose.msra.mxu0 0
    %1108 = vmatprep.subr.bf16.mxu0 0
    %1109 = vmatpush1.bf16.xpose.msra.mxu0 0
    %1110 = vmatprep.subr.bf16.mxu0 0
    %1111 = vmatpush1.bf16.xpose.msra.mxu0 0
    %1112 = vmatprep.subr.bf16.mxu0 0
    %1113 = vmatpush1.bf16.xpose.msra.mxu0 0
    %1114 = vmatprep.subr.bf16.mxu0 0
    %1115 = vmatpush1.bf16.xpose.msra.mxu0 0
    %1116 = vmatprep.subr.bf16.mxu0 0
    %1117 = vmatpush1.bf16.xpose.msra.mxu0 0
    %1118 = vmatprep.subr.bf16.mxu0 0
    %1119 = vmatpush1.bf16.xpose.msra.mxu0 0
    %1120 = vmatprep.subr.bf16.mxu0 0
    %1121 = vmatpush1.bf16.xpose.msra.mxu0 0
    %1122 = vmatprep.mubr.bf16.mxu0 0
    %1123 = vmatmul.mubr.bf16.gmra.mrb[0].mxu0 %v1085
    %v1124 = vpop.f32.mrb[0].mxu0
    %v1125 = vadd.f32 0.0, %v1124
    %v1126 = vpop.f32.mrb[0].mxu0
    %v1127 = vpop.f32.mrb[0].mxu0
    %v1128 = vpop.f32.mrb[0].mxu0
    %1129 = vdwg.mxu0
    %v1130 = vsel %vm434, %v1075, -1e+30
    %v1131 = vsel %vm434, %v1125, -1e+30
    %v1132 = vsel %vm673, %v1130, -inf
    %1133 = vmax.xlane.f32.xlu0 %v1132
    %v1134 = vpop.xlane.xlu0 %1133
    %v1135 = vsel %vm673, %v1131, -inf
    %1136 = vmax.xlane.f32.xlu0 %v1135
    %v1137 = vpop.xlane.xlu0 %1136
    %v1138 = vsub.f32 %v1130, %v1134
    %v1139 = vsub.f32 %v1131, %v1137
    %v1140 = vmul.f32 %v1138, 1.442695
    %v1141 = vpow.pop %v1140
    %v1142 = vmul.f32 %v1139, 1.442695
    %v1143 = vpow.pop %v1142
    %v1144 = vsel %vm673, %v1141, 0.0
    %1145 = vadd.xlane.f32.xlu0 %v1144
    %v1146 = vpop.xlane.xlu0 %1145
    %v1147 = vsel %vm673, %v1143, 0.0
    %1148 = vadd.xlane.f32.xlu0 %v1147
    %v1149 = vpop.xlane.xlu0 %1148
    %v1150 = vrcp.pop %v1146
    %v1151 = vmul.f32 %v1141, %v1150
    %v1152 = vrcp.pop %v1149
    %v1153 = vmul.f32 %v1143, %v1152
    %v1154 = vpack.c.bf16 %v1151, %v1151
    %v1155 = vpack.c.bf16 %v1153, %v1153
    %1156 = vrot.lane.b32.xlu0 %v698, 96
    %v1157 = vpop.permute.xlu0 %1156
    %v1159 = vsel %vm673, %v1154, 0
    %v1162 = vsel %vm703, %v1157, 0
    %1164 = vmatprep.subr.bf16.mxu0 0
    %1165 = vmatpush1.bf16.msra.mxu0 %v1162
    %1166 = vmatprep.subr.bf16.mxu0 0
    %1167 = vmatpush1.bf16.msra.mxu0 0
    %1168 = vmatprep.subr.bf16.mxu0 0
    %1169 = vmatpush1.bf16.msra.mxu0 0
    %1170 = vmatprep.subr.bf16.mxu0 0
    %1171 = vmatpush1.bf16.msra.mxu0 0
    %1172 = vmatprep.subr.bf16.mxu0 0
    %1173 = vmatpush1.bf16.msra.mxu0 0
    %1174 = vmatprep.subr.bf16.mxu0 0
    %1175 = vmatpush1.bf16.msra.mxu0 0
    %1176 = vmatprep.subr.bf16.mxu0 0
    %1177 = vmatpush1.bf16.msra.mxu0 0
    %1178 = vmatprep.subr.bf16.mxu0 0
    %1179 = vmatpush1.bf16.msra.mxu0 0
    %1180 = vmatprep.subr.bf16.mxu0 0
    %1181 = vmatpush1.bf16.msra.mxu0 0
    %1182 = vmatprep.subr.bf16.mxu0 0
    %1183 = vmatpush1.bf16.msra.mxu0 0
    %1184 = vmatprep.subr.bf16.mxu0 0
    %1185 = vmatpush1.bf16.msra.mxu0 0
    %1186 = vmatprep.subr.bf16.mxu0 0
    %1187 = vmatpush1.bf16.msra.mxu0 0
    %1188 = vmatprep.subr.bf16.mxu0 0
    %1189 = vmatpush1.bf16.msra.mxu0 0
    %1190 = vmatprep.subr.bf16.mxu0 0
    %1191 = vmatpush1.bf16.msra.mxu0 0
    %1192 = vmatprep.subr.bf16.mxu0 0
    %1193 = vmatpush1.bf16.msra.mxu0 0
    %1194 = vmatprep.subr.bf16.mxu0 0
    %1195 = vmatpush1.bf16.msra.mxu0 0
    %1196 = vmatprep.mubr.bf16.mxu0 0
    %1197 = vmatmul.mubr.bf16.gmra.mrb[0].mxu0 %v1159
    %v1198 = vpop.f32.mrb[0].mxu0
    %v1199 = vadd.f32 0.0, %v1198
    %v1200 = vpop.f32.mrb[0].mxu0
    %v1201 = vpop.f32.mrb[0].mxu0
    %v1202 = vpop.f32.mrb[0].mxu0
    %1203 = vdwg.mxu0
    %1204 = vrot.lane.b32.xlu0 %v699, 96
    %v1205 = vpop.permute.xlu0 %1204
    %v1207 = vsel %vm673, %v1155, 0
    %v1210 = vsel %vm703, %v1205, 0
    %1212 = vmatprep.subr.bf16.mxu0 0
    %1213 = vmatpush1.bf16.msra.mxu0 %v1210
    %1214 = vmatprep.subr.bf16.mxu0 0
    %1215 = vmatpush1.bf16.msra.mxu0 0
    %1216 = vmatprep.subr.bf16.mxu0 0
    %1217 = vmatpush1.bf16.msra.mxu0 0
    %1218 = vmatprep.subr.bf16.mxu0 0
    %1219 = vmatpush1.bf16.msra.mxu0 0
    %1220 = vmatprep.subr.bf16.mxu0 0
    %1221 = vmatpush1.bf16.msra.mxu0 0
    %1222 = vmatprep.subr.bf16.mxu0 0
    %1223 = vmatpush1.bf16.msra.mxu0 0
    %1224 = vmatprep.subr.bf16.mxu0 0
    %1225 = vmatpush1.bf16.msra.mxu0 0
    %1226 = vmatprep.subr.bf16.mxu0 0
    %1227 = vmatpush1.bf16.msra.mxu0 0
    %1228 = vmatprep.subr.bf16.mxu0 0
    %1229 = vmatpush1.bf16.msra.mxu0 0
    %1230 = vmatprep.subr.bf16.mxu0 0
    %1231 = vmatpush1.bf16.msra.mxu0 0
    %1232 = vmatprep.subr.bf16.mxu0 0
    %1233 = vmatpush1.bf16.msra.mxu0 0
    %1234 = vmatprep.subr.bf16.mxu0 0
    %1235 = vmatpush1.bf16.msra.mxu0 0
    %1236 = vmatprep.subr.bf16.mxu0 0
    %1237 = vmatpush1.bf16.msra.mxu0 0
    %1238 = vmatprep.subr.bf16.mxu0 0
    %1239 = vmatpush1.bf16.msra.mxu0 0
    %1240 = vmatprep.subr.bf16.mxu0 0
    %1241 = vmatpush1.bf16.msra.mxu0 0
    %1242 = vmatprep.subr.bf16.mxu0 0
    %1243 = vmatpush1.bf16.msra.mxu0 0
    %1244 = vmatprep.mubr.bf16.mxu0 0
    %1245 = vmatmul.mubr.bf16.gmra.mrb[0].mxu0 %v1207
    %v1246 = vpop.f32.mrb[0].mxu0
    %v1247 = vadd.f32 0.0, %v1246
    %v1248 = vpop.f32.mrb[0].mxu0
    %v1249 = vpop.f32.mrb[0].mxu0
    %v1250 = vpop.f32.mrb[0].mxu0
    %1251 = vdwg.mxu0
    %1254 = vrot.lane.b32.xlu0 %v1199, 32
    %v1255 = vpop.permute.xlu0 %1254
    %1256 = vrot.lane.b32.xlu0 %v1247, 32
    %v1257 = vpop.permute.xlu0 %1256
    %vm1260 = vcmask 392448
    %1261 = vst.msk [vmem:[#allocation2] sm:$0xff] %vm1260, %v1255
    %1262 = vst.msk [vmem:[#allocation2 + $0x8] sm:$0xff] %vm1260, %v1257
    %1263 = vrot.lane.b32.xlu0 %v570, 80
    %v1264 = vpop.permute.xlu0 %1263
    %1265 = vrot.lane.b32.xlu0 %v570, 16
    %v1266 = vpop.permute.xlu0 %1265
    %v1268 = vsel %vm575, %v1264, 0
    %v1271 = vsel %vm575, %v1266, 0
    %1273 = vmatprep.subr.bf16.mxu0 0
    %1274 = vmatpush1.bf16.xpose.msra.mxu0 %v1271
    %1275 = vmatprep.subr.bf16.mxu0 0
    %1276 = vmatpush1.bf16.xpose.msra.mxu0 0
    %1277 = vmatprep.subr.bf16.mxu0 0
    %1278 = vmatpush1.bf16.xpose.msra.mxu0 0
    %1279 = vmatprep.subr.bf16.mxu0 0
    %1280 = vmatpush1.bf16.xpose.msra.mxu0 0
    %1281 = vmatprep.subr.bf16.mxu0 0
    %1282 = vmatpush1.bf16.xpose.msra.mxu0 0
    %1283 = vmatprep.subr.bf16.mxu0 0
    %1284 = vmatpush1.bf16.xpose.msra.mxu0 0
    %1285 = vmatprep.subr.bf16.mxu0 0
    %1286 = vmatpush1.bf16.xpose.msra.mxu0 0
    %1287 = vmatprep.subr.bf16.mxu0 0
    %1288 = vmatpush1.bf16.xpose.msra.mxu0 0
    %1289 = vmatprep.subr.bf16.mxu0 0
    %1290 = vmatpush1.bf16.xpose.msra.mxu0 0
    %1291 = vmatprep.subr.bf16.mxu0 0
    %1292 = vmatpush1.bf16.xpose.msra.mxu0 0
    %1293 = vmatprep.subr.bf16.mxu0 0
    %1294 = vmatpush1.bf16.xpose.msra.mxu0 0
    %1295 = vmatprep.subr.bf16.mxu0 0
    %1296 = vmatpush1.bf16.xpose.msra.mxu0 0
    %1297 = vmatprep.subr.bf16.mxu0 0
    %1298 = vmatpush1.bf16.xpose.msra.mxu0 0
    %1299 = vmatprep.subr.bf16.mxu0 0
    %1300 = vmatpush1.bf16.xpose.msra.mxu0 0
    %1301 = vmatprep.subr.bf16.mxu0 0
    %1302 = vmatpush1.bf16.xpose.msra.mxu0 0
    %1303 = vmatprep.subr.bf16.mxu0 0
    %1304 = vmatpush1.bf16.xpose.msra.mxu0 0
    %1305 = vmatprep.mubr.bf16.mxu0 0
    %1306 = vmatmul.mubr.bf16.gmra.mrb[0].mxu0 %v1268
    %v1307 = vpop.f32.mrb[0].mxu0
    %v1308 = vadd.f32 0.0, %v1307
    %v1309 = vpop.f32.mrb[0].mxu0
    %v1310 = vpop.f32.mrb[0].mxu0
    %v1311 = vpop.f32.mrb[0].mxu0
    %1312 = vdwg.mxu0
    %1313 = vrot.lane.b32.xlu0 %v571, 80
    %v1314 = vpop.permute.xlu0 %1313
    %1315 = vrot.lane.b32.xlu0 %v571, 16
    %v1316 = vpop.permute.xlu0 %1315
    %v1318 = vsel %vm575, %v1314, 0
    %v1321 = vsel %vm575, %v1316, 0
    %1323 = vmatprep.subr.bf16.mxu0 0
    %1324 = vmatpush1.bf16.xpose.msra.mxu0 %v1321
    %1325 = vmatprep.subr.bf16.mxu0 0
    %1326 = vmatpush1.bf16.xpose.msra.mxu0 0
    %1327 = vmatprep.subr.bf16.mxu0 0
    %1328 = vmatpush1.bf16.xpose.msra.mxu0 0
    %1329 = vmatprep.subr.bf16.mxu0 0
    %1330 = vmatpush1.bf16.xpose.msra.mxu0 0
    %1331 = vmatprep.subr.bf16.mxu0 0
    %1332 = vmatpush1.bf16.xpose.msra.mxu0 0
    %1333 = vmatprep.subr.bf16.mxu0 0
    %1334 = vmatpush1.bf16.xpose.msra.mxu0 0
    %1335 = vmatprep.subr.bf16.mxu0 0
    %1336 = vmatpush1.bf16.xpose.msra.mxu0 0
    %1337 = vmatprep.subr.bf16.mxu0 0
    %1338 = vmatpush1.bf16.xpose.msra.mxu0 0
    %1339 = vmatprep.subr.bf16.mxu0 0
    %1340 = vmatpush1.bf16.xpose.msra.mxu0 0
    %1341 = vmatprep.subr.bf16.mxu0 0
    %1342 = vmatpush1.bf16.xpose.msra.mxu0 0
    %1343 = vmatprep.subr.bf16.mxu0 0
    %1344 = vmatpush1.bf16.xpose.msra.mxu0 0
    %1345 = vmatprep.subr.bf16.mxu0 0
    %1346 = vmatpush1.bf16.xpose.msra.mxu0 0
    %1347 = vmatprep.subr.bf16.mxu0 0
    %1348 = vmatpush1.bf16.xpose.msra.mxu0 0
    %1349 = vmatprep.subr.bf16.mxu0 0
    %1350 = vmatpush1.bf16.xpose.msra.mxu0 0
    %1351 = vmatprep.subr.bf16.mxu0 0
    %1352 = vmatpush1.bf16.xpose.msra.mxu0 0
    %1353 = vmatprep.subr.bf16.mxu0 0
    %1354 = vmatpush1.bf16.xpose.msra.mxu0 0
    %1355 = vmatprep.mubr.bf16.mxu0 0
    %1356 = vmatmul.mubr.bf16.gmra.mrb[0].mxu0 %v1318
    %v1357 = vpop.f32.mrb[0].mxu0
    %v1358 = vadd.f32 0.0, %v1357
    %v1359 = vpop.f32.mrb[0].mxu0
    %v1360 = vpop.f32.mrb[0].mxu0
    %v1361 = vpop.f32.mrb[0].mxu0
    %1362 = vdwg.mxu0
    %v1363 = vsel %vm434, %v1308, -1e+30
    %v1364 = vsel %vm434, %v1358, -1e+30
    %v1365 = vsel %vm673, %v1363, -inf
    %1366 = vmax.xlane.f32.xlu0 %v1365
    %v1367 = vpop.xlane.xlu0 %1366
    %v1368 = vsel %vm673, %v1364, -inf
    %1369 = vmax.xlane.f32.xlu0 %v1368
    %v1370 = vpop.xlane.xlu0 %1369
    %v1371 = vsub.f32 %v1363, %v1367
    %v1372 = vsub.f32 %v1364, %v1370
    %v1373 = vmul.f32 %v1371, 1.442695
    %v1374 = vpow.pop %v1373
    %v1375 = vmul.f32 %v1372, 1.442695
    %v1376 = vpow.pop %v1375
    %v1377 = vsel %vm673, %v1374, 0.0
    %1378 = vadd.xlane.f32.xlu0 %v1377
    %v1379 = vpop.xlane.xlu0 %1378
    %v1380 = vsel %vm673, %v1376, 0.0
    %1381 = vadd.xlane.f32.xlu0 %v1380
    %v1382 = vpop.xlane.xlu0 %1381
    %v1383 = vrcp.pop %v1379
    %v1384 = vmul.f32 %v1374, %v1383
    %v1385 = vrcp.pop %v1382
    %v1386 = vmul.f32 %v1376, %v1385
    %v1387 = vpack.c.bf16 %v1384, %v1384
    %v1388 = vpack.c.bf16 %v1386, %v1386
    %1389 = vrot.lane.b32.xlu0 %v698, 80
    %v1390 = vpop.permute.xlu0 %1389
    %v1392 = vsel %vm673, %v1387, 0
    %v1395 = vsel %vm703, %v1390, 0
    %1397 = vmatprep.subr.bf16.mxu0 0
    %1398 = vmatpush1.bf16.msra.mxu0 %v1395
    %1399 = vmatprep.subr.bf16.mxu0 0
    %1400 = vmatpush1.bf16.msra.mxu0 0
    %1401 = vmatprep.subr.bf16.mxu0 0
    %1402 = vmatpush1.bf16.msra.mxu0 0
    %1403 = vmatprep.subr.bf16.mxu0 0
    %1404 = vmatpush1.bf16.msra.mxu0 0
    %1405 = vmatprep.subr.bf16.mxu0 0
    %1406 = vmatpush1.bf16.msra.mxu0 0
    %1407 = vmatprep.subr.bf16.mxu0 0
    %1408 = vmatpush1.bf16.msra.mxu0 0
    %1409 = vmatprep.subr.bf16.mxu0 0
    %1410 = vmatpush1.bf16.msra.mxu0 0
    %1411 = vmatprep.subr.bf16.mxu0 0
    %1412 = vmatpush1.bf16.msra.mxu0 0
    %1413 = vmatprep.subr.bf16.mxu0 0
    %1414 = vmatpush1.bf16.msra.mxu0 0
    %1415 = vmatprep.subr.bf16.mxu0 0
    %1416 = vmatpush1.bf16.msra.mxu0 0
    %1417 = vmatprep.subr.bf16.mxu0 0
    %1418 = vmatpush1.bf16.msra.mxu0 0
    %1419 = vmatprep.subr.bf16.mxu0 0
    %1420 = vmatpush1.bf16.msra.mxu0 0
    %1421 = vmatprep.subr.bf16.mxu0 0
    %1422 = vmatpush1.bf16.msra.mxu0 0
    %1423 = vmatprep.subr.bf16.mxu0 0
    %1424 = vmatpush1.bf16.msra.mxu0 0
    %1425 = vmatprep.subr.bf16.mxu0 0
    %1426 = vmatpush1.bf16.msra.mxu0 0
    %1427 = vmatprep.subr.bf16.mxu0 0
    %1428 = vmatpush1.bf16.msra.mxu0 0
    %1429 = vmatprep.mubr.bf16.mxu0 0
    %1430 = vmatmul.mubr.bf16.gmra.mrb[0].mxu0 %v1392
    %v1431 = vpop.f32.mrb[0].mxu0
    %v1432 = vadd.f32 0.0, %v1431
    %v1433 = vpop.f32.mrb[0].mxu0
    %v1434 = vpop.f32.mrb[0].mxu0
    %v1435 = vpop.f32.mrb[0].mxu0
    %1436 = vdwg.mxu0
    %1437 = vrot.lane.b32.xlu0 %v699, 80
    %v1438 = vpop.permute.xlu0 %1437
    %v1440 = vsel %vm673, %v1388, 0
    %v1443 = vsel %vm703, %v1438, 0
    %1445 = vmatprep.subr.bf16.mxu0 0
    %1446 = vmatpush1.bf16.msra.mxu0 %v1443
    %1447 = vmatprep.subr.bf16.mxu0 0
    %1448 = vmatpush1.bf16.msra.mxu0 0
    %1449 = vmatprep.subr.bf16.mxu0 0
    %1450 = vmatpush1.bf16.msra.mxu0 0
    %1451 = vmatprep.subr.bf16.mxu0 0
    %1452 = vmatpush1.bf16.msra.mxu0 0
    %1453 = vmatprep.subr.bf16.mxu0 0
    %1454 = vmatpush1.bf16.msra.mxu0 0
    %1455 = vmatprep.subr.bf16.mxu0 0
    %1456 = vmatpush1.bf16.msra.mxu0 0
    %1457 = vmatprep.subr.bf16.mxu0 0
    %1458 = vmatpush1.bf16.msra.mxu0 0
    %1459 = vmatprep.subr.bf16.mxu0 0
    %1460 = vmatpush1.bf16.msra.mxu0 0
    %1461 = vmatprep.subr.bf16.mxu0 0
    %1462 = vmatpush1.bf16.msra.mxu0 0
    %1463 = vmatprep.subr.bf16.mxu0 0
    %1464 = vmatpush1.bf16.msra.mxu0 0
    %1465 = vmatprep.subr.bf16.mxu0 0
    %1466 = vmatpush1.bf16.msra.mxu0 0
    %1467 = vmatprep.subr.bf16.mxu0 0
    %1468 = vmatpush1.bf16.msra.mxu0 0
    %1469 = vmatprep.subr.bf16.mxu0 0
    %1470 = vmatpush1.bf16.msra.mxu0 0
    %1471 = vmatprep.subr.bf16.mxu0 0
    %1472 = vmatpush1.bf16.msra.mxu0 0
    %1473 = vmatprep.subr.bf16.mxu0 0
    %1474 = vmatpush1.bf16.msra.mxu0 0
    %1475 = vmatprep.subr.bf16.mxu0 0
    %1476 = vmatpush1.bf16.msra.mxu0 0
    %1477 = vmatprep.mubr.bf16.mxu0 0
    %1478 = vmatmul.mubr.bf16.gmra.mrb[0].mxu0 %v1440
    %v1479 = vpop.f32.mrb[0].mxu0
    %v1480 = vadd.f32 0.0, %v1479
    %v1481 = vpop.f32.mrb[0].mxu0
    %v1482 = vpop.f32.mrb[0].mxu0
    %v1483 = vpop.f32.mrb[0].mxu0
    %1484 = vdwg.mxu0
    %1487 = vrot.lane.b32.xlu0 %v1432, 48
    %v1488 = vpop.permute.xlu0 %1487
    %1489 = vrot.lane.b32.xlu0 %v1480, 48
    %v1490 = vpop.permute.xlu0 %1489
    %vm1493 = vcmask 523648
    %1494 = vst.msk [vmem:[#allocation2] sm:$0xff] %vm1493, %v1488
    %1495 = vst.msk [vmem:[#allocation2 + $0x8] sm:$0xff] %vm1493, %v1490
    %v1496 = vld [vmem:[#allocation2] sm:$0xff]
    %v1497 = vld [vmem:[#allocation2 + $0x8] sm:$0xff]
    %v1498 = vld [vmem:[%s12] sm:$0xf]
    %v1499 = vld [vmem:[%s12 + $0x4] sm:$0xf]
    %v1500 = vld [vmem:[%s12 + $0x8] sm:$0xf]
    %v1501 = vld [vmem:[%s12 + $0xc] sm:$0xf]
    %v1502 = vld [vmem:[%s12 + $0x10] sm:$0xf]
    %v1503 = vld [vmem:[%s12 + $0x14] sm:$0xf]
    %v1504 = vld [vmem:[%s12 + $0x18] sm:$0xf]
    %v1505 = vld [vmem:[%s12 + $0x1c] sm:$0xf]
    %v1506 = vpack.c.bf16 %v1497, %v1496
    %v1507 = vld [vmem:[%s13] sm:$0x1]
    %v1508 = vlaneseq
    %v1509 = vshrl.u32 %v1508, 7
    %v1510 = vsub.s32 0, %v1509
    %v1511 = vrot.slane %v1507, %v1510
    %v1520 = vunpack.c.l.b16 %v1498
    %v1521 = vunpack.c.l.b16 %v1499
    %v1522 = vunpack.c.l.b16 %v1500
    %v1523 = vunpack.c.l.b16 %v1501
    %v1524 = vunpack.c.l.b16 %v1502
    %v1525 = vunpack.c.l.b16 %v1503
    %v1526 = vunpack.c.l.b16 %v1504
    %v1527 = vunpack.c.l.b16 %v1505
    %v1528 = vpack.c.b16 %v1521, %v1520
    %v1529 = vpack.c.b16 %v1523, %v1522
    %v1530 = vpack.c.b16 %v1525, %v1524
    %v1531 = vpack.c.b16 %v1527, %v1526
    %v1537 = vsel %vm155, %v1506, 0
    %1539 = vmatprep.subr.bf16.mxu0 0
    %1540 = vmatpush1.bf16.msra.mxu0 %v1528
    %1541 = vmatprep.subr.bf16.mxu0 0
    %1542 = vmatpush1.bf16.msra.mxu0 %v1529
    %1543 = vmatprep.subr.bf16.mxu0 0
    %1544 = vmatpush1.bf16.msra.mxu0 %v1530
    %1545 = vmatprep.subr.bf16.mxu0 0
    %1546 = vmatpush1.bf16.msra.mxu0 %v1531
    %1547 = vmatprep.subr.bf16.mxu0 0
    %1548 = vmatpush1.bf16.msra.mxu0 0
    %1549 = vmatprep.subr.bf16.mxu0 0
    %1550 = vmatpush1.bf16.msra.mxu0 0
    %1551 = vmatprep.subr.bf16.mxu0 0
    %1552 = vmatpush1.bf16.msra.mxu0 0
    %1553 = vmatprep.subr.bf16.mxu0 0
    %1554 = vmatpush1.bf16.msra.mxu0 0
    %1555 = vmatprep.subr.bf16.mxu0 0
    %1556 = vmatpush1.bf16.msra.mxu0 0
    %1557 = vmatprep.subr.bf16.mxu0 0
    %1558 = vmatpush1.bf16.msra.mxu0 0
    %1559 = vmatprep.subr.bf16.mxu0 0
    %1560 = vmatpush1.bf16.msra.mxu0 0
    %1561 = vmatprep.subr.bf16.mxu0 0
    %1562 = vmatpush1.bf16.msra.mxu0 0
    %1563 = vmatprep.subr.bf16.mxu0 0
    %1564 = vmatpush1.bf16.msra.mxu0 0
    %1565 = vmatprep.subr.bf16.mxu0 0
    %1566 = vmatpush1.bf16.msra.mxu0 0
    %1567 = vmatprep.subr.bf16.mxu0 0
    %1568 = vmatpush1.bf16.msra.mxu0 0
    %1569 = vmatprep.subr.bf16.mxu0 0
    %1570 = vmatpush1.bf16.msra.mxu0 0
    %1571 = vmatprep.mubr.bf16.mxu0 0
    %1572 = vmatmul.mubr.bf16.gmra.mrb[0].mxu0 %v1537
    %v1573 = vpop.f32.mrb[0].mxu0
    %v1574 = vadd.f32 %v1511, %v1573
    %v1575 = vpop.f32.mrb[0].mxu0
    %v1576 = vpop.f32.mrb[0].mxu0
    %v1577 = vadd.f32 %v1511, %v1576
    %v1578 = vpop.f32.mrb[0].mxu0
    %1579 = vdwg.mxu0
    %v1580 = vadd.f32 %v430, %v1574
    %v1581 = vadd.f32 %v431, %v1577
    %v1582 = vld [vmem:[%s14] sm:$0x1]
    %v1583 = vld [vmem:[%s15] sm:$0x1]
    %v1584 = vsel %vm155, %v1580, 0.0
    %1585 = vadd.xlane.f32.xlu0 %v1584
    %v1586 = vpop.xlane.xlu0 %1585
    %v1587 = vsel %vm155, %v1581, 0.0
    %1588 = vadd.xlane.f32.xlu0 %v1587
    %v1589 = vpop.xlane.xlu0 %1588
    %v1590 = vmul.f32 %v1586, %v380
    %v1591 = vmul.f32 %v1589, %v380
    %v1592 = vsub.f32 %v1580, %v1590
    %v1593 = vsub.f32 %v1581, %v1591
    %v1594 = vmul.f32 %v1592, %v1592
    %v1595 = vmul.f32 %v1593, %v1593
    %v1596 = vsel %vm155, %v1594, 0.0
    %1597 = vadd.xlane.f32.xlu0 %v1596
    %v1598 = vpop.xlane.xlu0 %1597
    %v1599 = vsel %vm155, %v1595, 0.0
    %1600 = vadd.xlane.f32.xlu0 %v1599
    %v1601 = vpop.xlane.xlu0 %1600
    %v1602 = vmul.f32 %v1598, %v380
    %v1603 = vmul.f32 %v1601, %v380
    %v1604 = vadd.f32 %v1602, 1e-05
    %v1605 = vadd.f32 %v1603, 1e-05
    %v1606 = vrsqrt.pop %v1604
    %v1607 = vrsqrt.pop %v1605
    %v1608 = vmul.f32 %v1592, %v1606
    %v1609 = vmul.f32 %v1593, %v1607
    %v1610 = vlaneseq
    %v1611 = vshrl.u32 %v1610, 7
    %v1612 = vsub.s32 0, %v1611
    %v1613 = vrot.slane %v1582, %v1612
    %v1614 = vmul.f32 %v1608, %v1613
    %v1615 = vmul.f32 %v1609, %v1613
    %v1616 = vlaneseq
    %v1617 = vshrl.u32 %v1616, 7
    %v1618 = vsub.s32 0, %v1617
    %v1619 = vrot.slane %v1583, %v1618
    %v1620 = vadd.f32 %v1614, %v1619
    %v1621 = vadd.f32 %v1615, %v1619
    %v1622 = vld [vmem:[%s16] sm:$0xf]
    %v1623 = vld [vmem:[%s16 + $0x4] sm:$0xf]
    %v1624 = vld [vmem:[%s16 + $0x8] sm:$0xf]
    %v1625 = vld [vmem:[%s16 + $0xc] sm:$0xf]
    %v1626 = vld [vmem:[%s16 + $0x10] sm:$0xf]
    %v1627 = vld [vmem:[%s16 + $0x14] sm:$0xf]
    %v1628 = vld [vmem:[%s16 + $0x18] sm:$0xf]
    %v1629 = vld [vmem:[%s16 + $0x1c] sm:$0xf]
    %v1630 = vpack.c.bf16 %v1621, %v1620
    %v1631 = vld [vmem:[%s17] sm:$0x1]
    %v1632 = vlaneseq
    %v1633 = vshrl.u32 %v1632, 7
    %v1634 = vsub.s32 0, %v1633
    %v1635 = vrot.slane %v1631, %v1634
    %v1644 = vunpack.c.l.b16 %v1622
    %v1645 = vunpack.c.l.b16 %v1623
    %v1646 = vunpack.c.l.b16 %v1624
    %v1647 = vunpack.c.l.b16 %v1625
    %v1648 = vunpack.c.l.b16 %v1626
    %v1649 = vunpack.c.l.b16 %v1627
    %v1650 = vunpack.c.l.b16 %v1628
    %v1651 = vunpack.c.l.b16 %v1629
    %v1652 = vpack.c.b16 %v1645, %v1644
    %v1653 = vpack.c.b16 %v1647, %v1646
    %v1654 = vpack.c.b16 %v1649, %v1648
    %v1655 = vpack.c.b16 %v1651, %v1650
    %v1661 = vsel %vm155, %v1630, 0
    %1663 = vmatprep.subr.bf16.mxu0 0
    %1664 = vmatpush1.bf16.msra.mxu0 %v1652
    %1665 = vmatprep.subr.bf16.mxu0 0
    %1666 = vmatpush1.bf16.msra.mxu0 %v1653
    %1667 = vmatprep.subr.bf16.mxu0 0
    %1668 = vmatpush1.bf16.msra.mxu0 %v1654
    %1669 = vmatprep.subr.bf16.mxu0 0
    %1670 = vmatpush1.bf16.msra.mxu0 %v1655
    %1671 = vmatprep.subr.bf16.mxu0 0
    %1672 = vmatpush1.bf16.msra.mxu0 0
    %1673 = vmatprep.subr.bf16.mxu0 0
    %1674 = vmatpush1.bf16.msra.mxu0 0
    %1675 = vmatprep.subr.bf16.mxu0 0
    %1676 = vmatpush1.bf16.msra.mxu0 0
    %1677 = vmatprep.subr.bf16.mxu0 0
    %1678 = vmatpush1.bf16.msra.mxu0 0
    %1679 = vmatprep.subr.bf16.mxu0 0
    %1680 = vmatpush1.bf16.msra.mxu0 0
    %1681 = vmatprep.subr.bf16.mxu0 0
    %1682 = vmatpush1.bf16.msra.mxu0 0
    %1683 = vmatprep.subr.bf16.mxu0 0
    %1684 = vmatpush1.bf16.msra.mxu0 0
    %1685 = vmatprep.subr.bf16.mxu0 0
    %1686 = vmatpush1.bf16.msra.mxu0 0
    %1687 = vmatprep.subr.bf16.mxu0 0
    %1688 = vmatpush1.bf16.msra.mxu0 0
    %1689 = vmatprep.subr.bf16.mxu0 0
    %1690 = vmatpush1.bf16.msra.mxu0 0
    %1691 = vmatprep.subr.bf16.mxu0 0
    %1692 = vmatpush1.bf16.msra.mxu0 0
    %1693 = vmatprep.subr.bf16.mxu0 0
    %1694 = vmatpush1.bf16.msra.mxu0 0
    %1695 = vmatprep.mubr.bf16.mxu0 0
    %1696 = vmatmul.mubr.bf16.gmra.mrb[0].mxu0 %v1661
    %v1697 = vpop.f32.mrb[0].mxu0
    %v1698 = vadd.f32 %v1635, %v1697
    %v1699 = vpop.f32.mrb[0].mxu0
    %v1700 = vpop.f32.mrb[0].mxu0
    %v1701 = vadd.f32 %v1635, %v1700
    %v1702 = vpop.f32.mrb[0].mxu0
    %1703 = vdwg.mxu0
    %v1704 = vmul.f32 %v1698, 0.5
    %v1705 = vmul.f32 %v1701, 0.5
    %v1706 = vmul.f32 %v1698, 0.70710677
    %v1707 = vmul.f32 %v1701, 0.70710677
    %vm1708 = vcmp.ge.f32.partialorder %v1706, 0.0
    %vm1709 = vcmp.ge.f32.partialorder %v1707, 0.0
    %v1710 = vsel %vm1708, 1.0, -1.0
    %v1711 = vsel %vm1709, 1.0, -1.0
    %v1712 = vand.u32 2147483647, %v1706
    %v1713 = vand.u32 2147483647, %v1707
    %v1714 = vmul.f32 %v1712, 0.3275911
    %v1715 = vmul.f32 %v1713, 0.3275911
    %v1716 = vadd.f32 %v1714, 1.0
    %v1717 = vadd.f32 %v1715, 1.0
    %v1718 = vrcp.pop %v1716
    %v1719 = vrcp.pop %v1717
    %v1720 = vmul.f32 %v1718, 1.0614054
    %v1721 = vmul.f32 %v1719, 1.0614054
    %v1722 = vadd.f32 %v1720, -1.4531521
    %v1723 = vadd.f32 %v1721, -1.4531521
    %v1724 = vmul.f32 %v1722, %v1718
    %v1725 = vmul.f32 %v1723, %v1719
    %v1726 = vadd.f32 %v1724, 1.4214138
    %v1727 = vadd.f32 %v1725, 1.4214138
    %v1728 = vmul.f32 %v1726, %v1718
    %v1729 = vmul.f32 %v1727, %v1719
    %v1730 = vadd.f32 %v1728, -0.28449672
    %v1731 = vadd.f32 %v1729, -0.28449672
    %v1732 = vmul.f32 %v1730, %v1718
    %v1733 = vmul.f32 %v1731, %v1719
    %v1734 = vadd.f32 %v1732, 0.2548296
    %v1735 = vadd.f32 %v1733, 0.2548296
    %v1736 = vmul.f32 %v1734, %v1718
    %v1737 = vmul.f32 %v1735, %v1719
    %v1738 = vsub.f32 0.0, %v1712
    %v1739 = vsub.f32 0.0, %v1713
    %v1740 = vmul.f32 %v1738, %v1712
    %v1741 = vmul.f32 %v1739, %v1713
    %v1742 = vmul.f32 %v1740, 1.442695
    %v1743 = vpow.pop %v1742
    %v1744 = vmul.f32 %v1741, 1.442695
    %v1745 = vpow.pop %v1744
    %v1746 = vmul.f32 %v1736, %v1743
    %v1747 = vmul.f32 %v1737, %v1745
    %v1748 = vsub.f32 1.0, %v1746
    %v1749 = vsub.f32 1.0, %v1747
    %v1750 = vmul.f32 %v1710, %v1748
    %v1751 = vmul.f32 %v1711, %v1749
    %v1752 = vadd.f32 %v1750, 1.0
    %v1753 = vadd.f32 %v1751, 1.0
    %v1754 = vmul.f32 %v1704, %v1752
    %v1755 = vmul.f32 %v1705, %v1753
    %v1756 = vld [vmem:[%s18] sm:$0xf]
    %v1757 = vld [vmem:[%s18 + $0x4] sm:$0xf]
    %v1758 = vld [vmem:[%s18 + $0x8] sm:$0xf]
    %v1759 = vld [vmem:[%s18 + $0xc] sm:$0xf]
    %v1760 = vld [vmem:[%s18 + $0x10] sm:$0xf]
    %v1761 = vld [vmem:[%s18 + $0x14] sm:$0xf]
    %v1762 = vld [vmem:[%s18 + $0x18] sm:$0xf]
    %v1763 = vld [vmem:[%s18 + $0x1c] sm:$0xf]
    %v1764 = vld [vmem:[%s18 + $0x20] sm:$0xf]
    %v1765 = vld [vmem:[%s18 + $0x24] sm:$0xf]
    %v1766 = vld [vmem:[%s18 + $0x28] sm:$0xf]
    %v1767 = vld [vmem:[%s18 + $0x2c] sm:$0xf]
    %v1768 = vld [vmem:[%s18 + $0x30] sm:$0xf]
    %v1769 = vld [vmem:[%s18 + $0x34] sm:$0xf]
    %v1770 = vld [vmem:[%s18 + $0x38] sm:$0xf]
    %v1771 = vld [vmem:[%s18 + $0x3c] sm:$0xf]
    %v1772 = vpack.c.bf16 %v1755, %v1754
    %v1773 = vld [vmem:[%s19] sm:$0x1]
    %v1774 = vlaneseq
    %v1775 = vshrl.u32 %v1774, 7
    %v1776 = vsub.s32 0, %v1775
    %v1777 = vrot.slane %v1773, %v1776
    %v1794 = vunpack.c.l.b16 %v1756
    %v1795 = vunpack.c.l.b16 %v1757
    %v1796 = vunpack.c.l.b16 %v1758
    %v1797 = vunpack.c.l.b16 %v1759
    %v1798 = vunpack.c.l.b16 %v1760
    %v1799 = vunpack.c.l.b16 %v1761
    %v1800 = vunpack.c.l.b16 %v1762
    %v1801 = vunpack.c.l.b16 %v1763
    %v1802 = vunpack.c.l.b16 %v1764
    %v1803 = vunpack.c.l.b16 %v1765
    %v1804 = vunpack.c.l.b16 %v1766
    %v1805 = vunpack.c.l.b16 %v1767
    %v1806 = vunpack.c.l.b16 %v1768
    %v1807 = vunpack.c.l.b16 %v1769
    %v1808 = vunpack.c.l.b16 %v1770
    %v1809 = vunpack.c.l.b16 %v1771
    %v1810 = vpack.c.b16 %v1795, %v1794
    %v1811 = vpack.c.b16 %v1797, %v1796
    %v1812 = vpack.c.b16 %v1799, %v1798
    %v1813 = vpack.c.b16 %v1801, %v1800
    %v1814 = vpack.c.b16 %v1803, %v1802
    %v1815 = vpack.c.b16 %v1805, %v1804
    %v1816 = vpack.c.b16 %v1807, %v1806
    %v1817 = vpack.c.b16 %v1809, %v1808
    %1826 = vmatprep.subr.bf16.mxu0 0
    %1827 = vmatpush1.bf16.msra.mxu0 %v1810
    %1828 = vmatprep.subr.bf16.mxu0 0
    %1829 = vmatpush1.bf16.msra.mxu0 %v1811
    %1830 = vmatprep.subr.bf16.mxu0 0
    %1831 = vmatpush1.bf16.msra.mxu0 %v1812
    %1832 = vmatprep.subr.bf16.mxu0 0
    %1833 = vmatpush1.bf16.msra.mxu0 %v1813
    %1834 = vmatprep.subr.bf16.mxu0 0
    %1835 = vmatpush1.bf16.msra.mxu0 %v1814
    %1836 = vmatprep.subr.bf16.mxu0 0
    %1837 = vmatpush1.bf16.msra.mxu0 %v1815
    %1838 = vmatprep.subr.bf16.mxu0 0
    %1839 = vmatpush1.bf16.msra.mxu0 %v1816
    %1840 = vmatprep.subr.bf16.mxu0 0
    %1841 = vmatpush1.bf16.msra.mxu0 %v1817
    %1842 = vmatprep.subr.bf16.mxu0 0
    %1843 = vmatpush1.bf16.msra.mxu0 0
    %1844 = vmatprep.subr.bf16.mxu0 0
    %1845 = vmatpush1.bf16.msra.mxu0 0
    %1846 = vmatprep.subr.bf16.mxu0 0
    %1847 = vmatpush1.bf16.msra.mxu0 0
    %1848 = vmatprep.subr.bf16.mxu0 0
    %1849 = vmatpush1.bf16.msra.mxu0 0
    %1850 = vmatprep.subr.bf16.mxu0 0
    %1851 = vmatpush1.bf16.msra.mxu0 0
    %1852 = vmatprep.subr.bf16.mxu0 0
    %1853 = vmatpush1.bf16.msra.mxu0 0
    %1854 = vmatprep.subr.bf16.mxu0 0
    %1855 = vmatpush1.bf16.msra.mxu0 0
    %1856 = vmatprep.subr.bf16.mxu0 0
    %1857 = vmatpush1.bf16.msra.mxu0 0
    %1858 = vmatprep.mubr.bf16.mxu0 0
    %1859 = vmatmul.mubr.bf16.gmra.mrb[0].mxu0 %v1772
    %v1860 = vpop.f32.mrb[0].mxu0
    %v1861 = vadd.f32 %v1777, %v1860
    %v1862 = vpop.f32.mrb[0].mxu0
    %v1863 = vpop.f32.mrb[0].mxu0
    %v1864 = vadd.f32 %v1777, %v1863
    %v1865 = vpop.f32.mrb[0].mxu0
    %1866 = vdwg.mxu0
    %v1867 = vadd.f32 %v1580, %v1861
    %v1868 = vadd.f32 %v1581, %v1864
    %v1869 = vld [vmem:[#allocation11 + $0x1] sm:$0x1]
    %v1870 = vld [vmem:[#allocation12 + $0x1] sm:$0x1]
    %v1871 = vsel %vm155, %v1867, 0.0
    %1872 = vadd.xlane.f32.xlu0 %v1871
    %v1873 = vpop.xlane.xlu0 %1872
    %v1874 = vsel %vm155, %v1868, 0.0
    %1875 = vadd.xlane.f32.xlu0 %v1874
    %v1876 = vpop.xlane.xlu0 %1875
    %v1877 = vmul.f32 %v1873, %v380
    %v1878 = vmul.f32 %v1876, %v380
    %v1879 = vsub.f32 %v1867, %v1877
    %v1880 = vsub.f32 %v1868, %v1878
    %v1881 = vmul.f32 %v1879, %v1879
    %v1882 = vmul.f32 %v1880, %v1880
    %v1883 = vsel %vm155, %v1881, 0.0
    %1884 = vadd.xlane.f32.xlu0 %v1883
    %v1885 = vpop.xlane.xlu0 %1884
    %v1886 = vsel %vm155, %v1882, 0.0
    %1887 = vadd.xlane.f32.xlu0 %v1886
    %v1888 = vpop.xlane.xlu0 %1887
    %v1889 = vmul.f32 %v1885, %v380
    %v1890 = vmul.f32 %v1888, %v380
    %v1891 = vadd.f32 %v1889, 1e-05
    %v1892 = vadd.f32 %v1890, 1e-05
    %v1893 = vrsqrt.pop %v1891
    %v1894 = vrsqrt.pop %v1892
    %v1895 = vmul.f32 %v1879, %v1893
    %v1896 = vmul.f32 %v1880, %v1894
    %v1897 = vlaneseq
    %v1898 = vshrl.u32 %v1897, 7
    %v1899 = vsub.s32 0, %v1898
    %v1900 = vrot.slane %v1869, %v1899
    %v1901 = vmul.f32 %v1895, %v1900
    %v1902 = vmul.f32 %v1896, %v1900
    %v1903 = vlaneseq
    %v1904 = vshrl.u32 %v1903, 7
    %v1905 = vsub.s32 0, %v1904
    %v1906 = vrot.slane %v1870, %v1905
    %v1907 = vadd.f32 %v1901, %v1906
    %v1908 = vadd.f32 %v1902, %v1906
    %s1909 = scalar_lea.vmem %s11, 64
    %v1910 = vld [vmem:[%s1909] sm:$0xff]
    %v1911 = vld [vmem:[%s1909 + $0x8] sm:$0xff]
    %v1912 = vld [vmem:[%s1909 + $0x10] sm:$0xff]
    %v1913 = vld [vmem:[%s1909 + $0x18] sm:$0xff]
    %v1914 = vld [vmem:[%s1909 + $0x20] sm:$0xff]
    %v1915 = vld [vmem:[%s1909 + $0x28] sm:$0xff]
    %v1916 = vld [vmem:[%s1909 + $0x30] sm:$0xff]
    %v1917 = vld [vmem:[%s1909 + $0x38] sm:$0xff]
    %v1918 = vpack.c.bf16 %v1908, %v1907
    %v1927 = vunpack.c.l.b16 %v1910
    %v1928 = vunpack.c.h.b16 %v1910
    %v1929 = vunpack.c.l.b16 %v1911
    %v1930 = vunpack.c.h.b16 %v1911
    %v1931 = vunpack.c.l.b16 %v1912
    %v1932 = vunpack.c.h.b16 %v1912
    %v1933 = vunpack.c.l.b16 %v1913
    %v1934 = vunpack.c.h.b16 %v1913
    %v1935 = vunpack.c.l.b16 %v1914
    %v1936 = vunpack.c.h.b16 %v1914
    %v1937 = vunpack.c.l.b16 %v1915
    %v1938 = vunpack.c.h.b16 %v1915
    %v1939 = vunpack.c.l.b16 %v1916
    %v1940 = vunpack.c.h.b16 %v1916
    %v1941 = vunpack.c.l.b16 %v1917
    %v1942 = vunpack.c.h.b16 %v1917
    %v1943 = vpack.c.b16 %v1929, %v1927
    %v1944 = vpack.c.b16 %v1930, %v1928
    %v1945 = vpack.c.b16 %v1933, %v1931
    %v1946 = vpack.c.b16 %v1934, %v1932
    %v1947 = vpack.c.b16 %v1937, %v1935
    %v1948 = vpack.c.b16 %v1938, %v1936
    %v1949 = vpack.c.b16 %v1941, %v1939
    %v1950 = vpack.c.b16 %v1942, %v1940
    %v1960 = vsel %vm155, %v1918, 0
    %1962 = vmatprep.subr.bf16.mxu0 %v1944
    %1963 = vmatpush1.bf16.msra.mxu0 %v1943
    %1964 = vmatprep.subr.bf16.mxu0 %v1946
    %1965 = vmatpush1.bf16.msra.mxu0 %v1945
    %1966 = vmatprep.subr.bf16.mxu0 %v1948
    %1967 = vmatpush1.bf16.msra.mxu0 %v1947
    %1968 = vmatprep.subr.bf16.mxu0 %v1950
    %1969 = vmatpush1.bf16.msra.mxu0 %v1949
    %1970 = vmatprep.subr.bf16.mxu0 0
    %1971 = vmatpush1.bf16.msra.mxu0 0
    %1972 = vmatprep.subr.bf16.mxu0 0
    %1973 = vmatpush1.bf16.msra.mxu0 0
    %1974 = vmatprep.subr.bf16.mxu0 0
    %1975 = vmatpush1.bf16.msra.mxu0 0
    %1976 = vmatprep.subr.bf16.mxu0 0
    %1977 = vmatpush1.bf16.msra.mxu0 0
    %1978 = vmatprep.subr.bf16.mxu0 0
    %1979 = vmatpush1.bf16.msra.mxu0 0
    %1980 = vmatprep.subr.bf16.mxu0 0
    %1981 = vmatpush1.bf16.msra.mxu0 0
    %1982 = vmatprep.subr.bf16.mxu0 0
    %1983 = vmatpush1.bf16.msra.mxu0 0
    %1984 = vmatprep.subr.bf16.mxu0 0
    %1985 = vmatpush1.bf16.msra.mxu0 0
    %1986 = vmatprep.subr.bf16.mxu0 0
    %1987 = vmatpush1.bf16.msra.mxu0 0
    %1988 = vmatprep.subr.bf16.mxu0 0
    %1989 = vmatpush1.bf16.msra.mxu0 0
    %1990 = vmatprep.subr.bf16.mxu0 0
    %1991 = vmatpush1.bf16.msra.mxu0 0
    %1992 = vmatprep.subr.bf16.mxu0 0
    %1993 = vmatpush1.bf16.msra.mxu0 0
    %1994 = vmatprep.mubr.bf16.mxu0 0
    %1995 = vmatmul.mubr.bf16.gmra.mrb[0].mxu0 %v1960
    %v1996 = vpop.f32.mrb[0].mxu0
    %v1997 = vadd.f32 0.0, %v1996
    %v1998 = vpop.f32.mrb[0].mxu0
    %v1999 = vadd.f32 0.0, %v1998
    %v2000 = vpop.f32.mrb[0].mxu0
    %v2001 = vadd.f32 0.0, %v2000
    %v2002 = vpop.f32.mrb[0].mxu0
    %v2003 = vadd.f32 0.0, %v2002
    %2004 = vdwg.mxu0
    %v2005 = vpack.c.bf16 %v1997, %v1997
    %v2006 = vpack.c.bf16 %v2001, %v2001
    %2008 = vrot.lane.b32.xlu0 %v2005, 64
    %v2009 = vpop.permute.xlu0 %2008
    %v2011 = vsel %vm575, %v2005, 0
    %v2014 = vsel %vm575, %v2009, 0
    %2016 = vmatprep.subr.bf16.mxu0 0
    %2017 = vmatpush1.bf16.xpose.msra.mxu0 %v2014
    %2018 = vmatprep.subr.bf16.mxu0 0
    %2019 = vmatpush1.bf16.xpose.msra.mxu0 0
    %2020 = vmatprep.subr.bf16.mxu0 0
    %2021 = vmatpush1.bf16.xpose.msra.mxu0 0
    %2022 = vmatprep.subr.bf16.mxu0 0
    %2023 = vmatpush1.bf16.xpose.msra.mxu0 0
    %2024 = vmatprep.subr.bf16.mxu0 0
    %2025 = vmatpush1.bf16.xpose.msra.mxu0 0
    %2026 = vmatprep.subr.bf16.mxu0 0
    %2027 = vmatpush1.bf16.xpose.msra.mxu0 0
    %2028 = vmatprep.subr.bf16.mxu0 0
    %2029 = vmatpush1.bf16.xpose.msra.mxu0 0
    %2030 = vmatprep.subr.bf16.mxu0 0
    %2031 = vmatpush1.bf16.xpose.msra.mxu0 0
    %2032 = vmatprep.subr.bf16.mxu0 0
    %2033 = vmatpush1.bf16.xpose.msra.mxu0 0
    %2034 = vmatprep.subr.bf16.mxu0 0
    %2035 = vmatpush1.bf16.xpose.msra.mxu0 0
    %2036 = vmatprep.subr.bf16.mxu0 0
    %2037 = vmatpush1.bf16.xpose.msra.mxu0 0
    %2038 = vmatprep.subr.bf16.mxu0 0
    %2039 = vmatpush1.bf16.xpose.msra.mxu0 0
    %2040 = vmatprep.subr.bf16.mxu0 0
    %2041 = vmatpush1.bf16.xpose.msra.mxu0 0
    %2042 = vmatprep.subr.bf16.mxu0 0
    %2043 = vmatpush1.bf16.xpose.msra.mxu0 0
    %2044 = vmatprep.subr.bf16.mxu0 0
    %2045 = vmatpush1.bf16.xpose.msra.mxu0 0
    %2046 = vmatprep.subr.bf16.mxu0 0
    %2047 = vmatpush1.bf16.xpose.msra.mxu0 0
    %2048 = vmatprep.mubr.bf16.mxu0 0
    %2049 = vmatmul.mubr.bf16.gmra.mrb[0].mxu0 %v2011
    %v2050 = vpop.f32.mrb[0].mxu0
    %v2051 = vadd.f32 0.0, %v2050
    %v2052 = vpop.f32.mrb[0].mxu0
    %v2053 = vpop.f32.mrb[0].mxu0
    %v2054 = vpop.f32.mrb[0].mxu0
    %2055 = vdwg.mxu0
    %2057 = vrot.lane.b32.xlu0 %v2006, 64
    %v2058 = vpop.permute.xlu0 %2057
    %v2060 = vsel %vm575, %v2006, 0
    %v2063 = vsel %vm575, %v2058, 0
    %2065 = vmatprep.subr.bf16.mxu0 0
    %2066 = vmatpush1.bf16.xpose.msra.mxu0 %v2063
    %2067 = vmatprep.subr.bf16.mxu0 0
    %2068 = vmatpush1.bf16.xpose.msra.mxu0 0
    %2069 = vmatprep.subr.bf16.mxu0 0
    %2070 = vmatpush1.bf16.xpose.msra.mxu0 0
    %2071 = vmatprep.subr.bf16.mxu0 0
    %2072 = vmatpush1.bf16.xpose.msra.mxu0 0
    %2073 = vmatprep.subr.bf16.mxu0 0
    %2074 = vmatpush1.bf16.xpose.msra.mxu0 0
    %2075 = vmatprep.subr.bf16.mxu0 0
    %2076 = vmatpush1.bf16.xpose.msra.mxu0 0
    %2077 = vmatprep.subr.bf16.mxu0 0
    %2078 = vmatpush1.bf16.xpose.msra.mxu0 0
    %2079 = vmatprep.subr.bf16.mxu0 0
    %2080 = vmatpush1.bf16.xpose.msra.mxu0 0
    %2081 = vmatprep.subr.bf16.mxu0 0
    %2082 = vmatpush1.bf16.xpose.msra.mxu0 0
    %2083 = vmatprep.subr.bf16.mxu0 0
    %2084 = vmatpush1.bf16.xpose.msra.mxu0 0
    %2085 = vmatprep.subr.bf16.mxu0 0
    %2086 = vmatpush1.bf16.xpose.msra.mxu0 0
    %2087 = vmatprep.subr.bf16.mxu0 0
    %2088 = vmatpush1.bf16.xpose.msra.mxu0 0
    %2089 = vmatprep.subr.bf16.mxu0 0
    %2090 = vmatpush1.bf16.xpose.msra.mxu0 0
    %2091 = vmatprep.subr.bf16.mxu0 0
    %2092 = vmatpush1.bf16.xpose.msra.mxu0 0
    %2093 = vmatprep.subr.bf16.mxu0 0
    %2094 = vmatpush1.bf16.xpose.msra.mxu0 0
    %2095 = vmatprep.subr.bf16.mxu0 0
    %2096 = vmatpush1.bf16.xpose.msra.mxu0 0
    %2097 = vmatprep.mubr.bf16.mxu0 0
    %2098 = vmatmul.mubr.bf16.gmra.mrb[0].mxu0 %v2060
    %v2099 = vpop.f32.mrb[0].mxu0
    %v2100 = vadd.f32 0.0, %v2099
    %v2101 = vpop.f32.mrb[0].mxu0
    %v2102 = vpop.f32.mrb[0].mxu0
    %v2103 = vpop.f32.mrb[0].mxu0
    %2104 = vdwg.mxu0
    %v2105 = vsel %vm434, %v2051, -1e+30
    %v2106 = vsel %vm434, %v2100, -1e+30
    %v2107 = vsel %vm673, %v2105, -inf
    %2108 = vmax.xlane.f32.xlu0 %v2107
    %v2109 = vpop.xlane.xlu0 %2108
    %v2110 = vsel %vm673, %v2106, -inf
    %2111 = vmax.xlane.f32.xlu0 %v2110
    %v2112 = vpop.xlane.xlu0 %2111
    %v2113 = vsub.f32 %v2105, %v2109
    %v2114 = vsub.f32 %v2106, %v2112
    %v2115 = vmul.f32 %v2113, 1.442695
    %v2116 = vpow.pop %v2115
    %v2117 = vmul.f32 %v2114, 1.442695
    %v2118 = vpow.pop %v2117
    %v2119 = vsel %vm673, %v2116, 0.0
    %2120 = vadd.xlane.f32.xlu0 %v2119
    %v2121 = vpop.xlane.xlu0 %2120
    %v2122 = vsel %vm673, %v2118, 0.0
    %2123 = vadd.xlane.f32.xlu0 %v2122
    %v2124 = vpop.xlane.xlu0 %2123
    %v2125 = vrcp.pop %v2121
    %v2126 = vmul.f32 %v2116, %v2125
    %v2127 = vrcp.pop %v2124
    %v2128 = vmul.f32 %v2118, %v2127
    %v2129 = vpack.c.bf16 %v2126, %v2126
    %v2130 = vpack.c.bf16 %v2128, %v2128
    %v2131 = vpack.c.bf16 %v1999, %v1999
    %v2132 = vpack.c.bf16 %v2003, %v2003
    %v2134 = vsel %vm673, %v2129, 0
    %v2137 = vsel %vm703, %v2131, 0
    %2139 = vmatprep.subr.bf16.mxu0 0
    %2140 = vmatpush1.bf16.msra.mxu0 %v2137
    %2141 = vmatprep.subr.bf16.mxu0 0
    %2142 = vmatpush1.bf16.msra.mxu0 0
    %2143 = vmatprep.subr.bf16.mxu0 0
    %2144 = vmatpush1.bf16.msra.mxu0 0
    %2145 = vmatprep.subr.bf16.mxu0 0
    %2146 = vmatpush1.bf16.msra.mxu0 0
    %2147 = vmatprep.subr.bf16.mxu0 0
    %2148 = vmatpush1.bf16.msra.mxu0 0
    %2149 = vmatprep.subr.bf16.mxu0 0
    %2150 = vmatpush1.bf16.msra.mxu0 0
    %2151 = vmatprep.subr.bf16.mxu0 0
    %2152 = vmatpush1.bf16.msra.mxu0 0
    %2153 = vmatprep.subr.bf16.mxu0 0
    %2154 = vmatpush1.bf16.msra.mxu0 0
    %2155 = vmatprep.subr.bf16.mxu0 0
    %2156 = vmatpush1.bf16.msra.mxu0 0
    %2157 = vmatprep.subr.bf16.mxu0 0
    %2158 = vmatpush1.bf16.msra.mxu0 0
    %2159 = vmatprep.subr.bf16.mxu0 0
    %2160 = vmatpush1.bf16.msra.mxu0 0
    %2161 = vmatprep.subr.bf16.mxu0 0
    %2162 = vmatpush1.bf16.msra.mxu0 0
    %2163 = vmatprep.subr.bf16.mxu0 0
    %2164 = vmatpush1.bf16.msra.mxu0 0
    %2165 = vmatprep.subr.bf16.mxu0 0
    %2166 = vmatpush1.bf16.msra.mxu0 0
    %2167 = vmatprep.subr.bf16.mxu0 0
    %2168 = vmatpush1.bf16.msra.mxu0 0
    %2169 = vmatprep.subr.bf16.mxu0 0
    %2170 = vmatpush1.bf16.msra.mxu0 0
    %2171 = vmatprep.mubr.bf16.mxu0 0
    %2172 = vmatmul.mubr.bf16.gmra.mrb[0].mxu0 %v2134
    %v2173 = vpop.f32.mrb[0].mxu0
    %v2174 = vadd.f32 0.0, %v2173
    %v2175 = vpop.f32.mrb[0].mxu0
    %v2176 = vpop.f32.mrb[0].mxu0
    %v2177 = vpop.f32.mrb[0].mxu0
    %2178 = vdwg.mxu0
    %v2180 = vsel %vm673, %v2130, 0
    %v2183 = vsel %vm703, %v2132, 0
    %2185 = vmatprep.subr.bf16.mxu0 0
    %2186 = vmatpush1.bf16.msra.mxu0 %v2183
    %2187 = vmatprep.subr.bf16.mxu0 0
    %2188 = vmatpush1.bf16.msra.mxu0 0
    %2189 = vmatprep.subr.bf16.mxu0 0
    %2190 = vmatpush1.bf16.msra.mxu0 0
    %2191 = vmatprep.subr.bf16.mxu0 0
    %2192 = vmatpush1.bf16.msra.mxu0 0
    %2193 = vmatprep.subr.bf16.mxu0 0
    %2194 = vmatpush1.bf16.msra.mxu0 0
    %2195 = vmatprep.subr.bf16.mxu0 0
    %2196 = vmatpush1.bf16.msra.mxu0 0
    %2197 = vmatprep.subr.bf16.mxu0 0
    %2198 = vmatpush1.bf16.msra.mxu0 0
    %2199 = vmatprep.subr.bf16.mxu0 0
    %2200 = vmatpush1.bf16.msra.mxu0 0
    %2201 = vmatprep.subr.bf16.mxu0 0
    %2202 = vmatpush1.bf16.msra.mxu0 0
    %2203 = vmatprep.subr.bf16.mxu0 0
    %2204 = vmatpush1.bf16.msra.mxu0 0
    %2205 = vmatprep.subr.bf16.mxu0 0
    %2206 = vmatpush1.bf16.msra.mxu0 0
    %2207 = vmatprep.subr.bf16.mxu0 0
    %2208 = vmatpush1.bf16.msra.mxu0 0
    %2209 = vmatprep.subr.bf16.mxu0 0
    %2210 = vmatpush1.bf16.msra.mxu0 0
    %2211 = vmatprep.subr.bf16.mxu0 0
    %2212 = vmatpush1.bf16.msra.mxu0 0
    %2213 = vmatprep.subr.bf16.mxu0 0
    %2214 = vmatpush1.bf16.msra.mxu0 0
    %2215 = vmatprep.subr.bf16.mxu0 0
    %2216 = vmatpush1.bf16.msra.mxu0 0
    %2217 = vmatprep.mubr.bf16.mxu0 0
    %2218 = vmatmul.mubr.bf16.gmra.mrb[0].mxu0 %v2180
    %v2219 = vpop.f32.mrb[0].mxu0
    %v2220 = vadd.f32 0.0, %v2219
    %v2221 = vpop.f32.mrb[0].mxu0
    %v2222 = vpop.f32.mrb[0].mxu0
    %v2223 = vpop.f32.mrb[0].mxu0
    %2224 = vdwg.mxu0
    %2225 = vst.msk [vmem:[#allocation2] sm:$0xff] %vm575, %v2174
    %2226 = vst.msk [vmem:[#allocation2 + $0x8] sm:$0xff] %vm575, %v2220
    %2227 = vrot.lane.b32.xlu0 %v2005, 112
    %v2228 = vpop.permute.xlu0 %2227
    %2229 = vrot.lane.b32.xlu0 %v2005, 48
    %v2230 = vpop.permute.xlu0 %2229
    %v2232 = vsel %vm575, %v2228, 0
    %v2235 = vsel %vm575, %v2230, 0
    %2237 = vmatprep.subr.bf16.mxu0 0
    %2238 = vmatpush1.bf16.xpose.msra.mxu0 %v2235
    %2239 = vmatprep.subr.bf16.mxu0 0
    %2240 = vmatpush1.bf16.xpose.msra.mxu0 0
    %2241 = vmatprep.subr.bf16.mxu0 0
    %2242 = vmatpush1.bf16.xpose.msra.mxu0 0
    %2243 = vmatprep.subr.bf16.mxu0 0
    %2244 = vmatpush1.bf16.xpose.msra.mxu0 0
    %2245 = vmatprep.subr.bf16.mxu0 0
    %2246 = vmatpush1.bf16.xpose.msra.mxu0 0
    %2247 = vmatprep.subr.bf16.mxu0 0
    %2248 = vmatpush1.bf16.xpose.msra.mxu0 0
    %2249 = vmatprep.subr.bf16.mxu0 0
    %2250 = vmatpush1.bf16.xpose.msra.mxu0 0
    %2251 = vmatprep.subr.bf16.mxu0 0
    %2252 = vmatpush1.bf16.xpose.msra.mxu0 0
    %2253 = vmatprep.subr.bf16.mxu0 0
    %2254 = vmatpush1.bf16.xpose.msra.mxu0 0
    %2255 = vmatprep.subr.bf16.mxu0 0
    %2256 = vmatpush1.bf16.xpose.msra.mxu0 0
    %2257 = vmatprep.subr.bf16.mxu0 0
    %2258 = vmatpush1.bf16.xpose.msra.mxu0 0
    %2259 = vmatprep.subr.bf16.mxu0 0
    %2260 = vmatpush1.bf16.xpose.msra.mxu0 0
    %2261 = vmatprep.subr.bf16.mxu0 0
    %2262 = vmatpush1.bf16.xpose.msra.mxu0 0
    %2263 = vmatprep.subr.bf16.mxu0 0
    %2264 = vmatpush1.bf16.xpose.msra.mxu0 0
    %2265 = vmatprep.subr.bf16.mxu0 0
    %2266 = vmatpush1.bf16.xpose.msra.mxu0 0
    %2267 = vmatprep.subr.bf16.mxu0 0
    %2268 = vmatpush1.bf16.xpose.msra.mxu0 0
    %2269 = vmatprep.mubr.bf16.mxu0 0
    %2270 = vmatmul.mubr.bf16.gmra.mrb[0].mxu0 %v2232
    %v2271 = vpop.f32.mrb[0].mxu0
    %v2272 = vadd.f32 0.0, %v2271
    %v2273 = vpop.f32.mrb[0].mxu0
    %v2274 = vpop.f32.mrb[0].mxu0
    %v2275 = vpop.f32.mrb[0].mxu0
    %2276 = vdwg.mxu0
    %2277 = vrot.lane.b32.xlu0 %v2006, 112
    %v2278 = vpop.permute.xlu0 %2277
    %2279 = vrot.lane.b32.xlu0 %v2006, 48
    %v2280 = vpop.permute.xlu0 %2279
    %v2282 = vsel %vm575, %v2278, 0
    %v2285 = vsel %vm575, %v2280, 0
    %2287 = vmatprep.subr.bf16.mxu0 0
    %2288 = vmatpush1.bf16.xpose.msra.mxu0 %v2285
    %2289 = vmatprep.subr.bf16.mxu0 0
    %2290 = vmatpush1.bf16.xpose.msra.mxu0 0
    %2291 = vmatprep.subr.bf16.mxu0 0
    %2292 = vmatpush1.bf16.xpose.msra.mxu0 0
    %2293 = vmatprep.subr.bf16.mxu0 0
    %2294 = vmatpush1.bf16.xpose.msra.mxu0 0
    %2295 = vmatprep.subr.bf16.mxu0 0
    %2296 = vmatpush1.bf16.xpose.msra.mxu0 0
    %2297 = vmatprep.subr.bf16.mxu0 0
    %2298 = vmatpush1.bf16.xpose.msra.mxu0 0
    %2299 = vmatprep.subr.bf16.mxu0 0
    %2300 = vmatpush1.bf16.xpose.msra.mxu0 0
    %2301 = vmatprep.subr.bf16.mxu0 0
    %2302 = vmatpush1.bf16.xpose.msra.mxu0 0
    %2303 = vmatprep.subr.bf16.mxu0 0
    %2304 = vmatpush1.bf16.xpose.msra.mxu0 0
    %2305 = vmatprep.subr.bf16.mxu0 0
    %2306 = vmatpush1.bf16.xpose.msra.mxu0 0
    %2307 = vmatprep.subr.bf16.mxu0 0
    %2308 = vmatpush1.bf16.xpose.msra.mxu0 0
    %2309 = vmatprep.subr.bf16.mxu0 0
    %2310 = vmatpush1.bf16.xpose.msra.mxu0 0
    %2311 = vmatprep.subr.bf16.mxu0 0
    %2312 = vmatpush1.bf16.xpose.msra.mxu0 0
    %2313 = vmatprep.subr.bf16.mxu0 0
    %2314 = vmatpush1.bf16.xpose.msra.mxu0 0
    %2315 = vmatprep.subr.bf16.mxu0 0
    %2316 = vmatpush1.bf16.xpose.msra.mxu0 0
    %2317 = vmatprep.subr.bf16.mxu0 0
    %2318 = vmatpush1.bf16.xpose.msra.mxu0 0
    %2319 = vmatprep.mubr.bf16.mxu0 0
    %2320 = vmatmul.mubr.bf16.gmra.mrb[0].mxu0 %v2282
    %v2321 = vpop.f32.mrb[0].mxu0
    %v2322 = vadd.f32 0.0, %v2321
    %v2323 = vpop.f32.mrb[0].mxu0
    %v2324 = vpop.f32.mrb[0].mxu0
    %v2325 = vpop.f32.mrb[0].mxu0
    %2326 = vdwg.mxu0
    %v2327 = vsel %vm434, %v2272, -1e+30
    %v2328 = vsel %vm434, %v2322, -1e+30
    %v2329 = vsel %vm673, %v2327, -inf
    %2330 = vmax.xlane.f32.xlu0 %v2329
    %v2331 = vpop.xlane.xlu0 %2330
    %v2332 = vsel %vm673, %v2328, -inf
    %2333 = vmax.xlane.f32.xlu0 %v2332
    %v2334 = vpop.xlane.xlu0 %2333
    %v2335 = vsub.f32 %v2327, %v2331
    %v2336 = vsub.f32 %v2328, %v2334
    %v2337 = vmul.f32 %v2335, 1.442695
    %v2338 = vpow.pop %v2337
    %v2339 = vmul.f32 %v2336, 1.442695
    %v2340 = vpow.pop %v2339
    %v2341 = vsel %vm673, %v2338, 0.0
    %2342 = vadd.xlane.f32.xlu0 %v2341
    %v2343 = vpop.xlane.xlu0 %2342
    %v2344 = vsel %vm673, %v2340, 0.0
    %2345 = vadd.xlane.f32.xlu0 %v2344
    %v2346 = vpop.xlane.xlu0 %2345
    %v2347 = vrcp.pop %v2343
    %v2348 = vmul.f32 %v2338, %v2347
    %v2349 = vrcp.pop %v2346
    %v2350 = vmul.f32 %v2340, %v2349
    %v2351 = vpack.c.bf16 %v2348, %v2348
    %v2352 = vpack.c.bf16 %v2350, %v2350
    %2354 = vrot.lane.b32.xlu0 %v2131, 112
    %v2355 = vpop.permute.xlu0 %2354
    %v2357 = vsel %vm673, %v2351, 0
    %v2360 = vsel %vm703, %v2355, 0
    %2362 = vmatprep.subr.bf16.mxu0 0
    %2363 = vmatpush1.bf16.msra.mxu0 %v2360
    %2364 = vmatprep.subr.bf16.mxu0 0
    %2365 = vmatpush1.bf16.msra.mxu0 0
    %2366 = vmatprep.subr.bf16.mxu0 0
    %2367 = vmatpush1.bf16.msra.mxu0 0
    %2368 = vmatprep.subr.bf16.mxu0 0
    %2369 = vmatpush1.bf16.msra.mxu0 0
    %2370 = vmatprep.subr.bf16.mxu0 0
    %2371 = vmatpush1.bf16.msra.mxu0 0
    %2372 = vmatprep.subr.bf16.mxu0 0
    %2373 = vmatpush1.bf16.msra.mxu0 0
    %2374 = vmatprep.subr.bf16.mxu0 0
    %2375 = vmatpush1.bf16.msra.mxu0 0
    %2376 = vmatprep.subr.bf16.mxu0 0
    %2377 = vmatpush1.bf16.msra.mxu0 0
    %2378 = vmatprep.subr.bf16.mxu0 0
    %2379 = vmatpush1.bf16.msra.mxu0 0
    %2380 = vmatprep.subr.bf16.mxu0 0
    %2381 = vmatpush1.bf16.msra.mxu0 0
    %2382 = vmatprep.subr.bf16.mxu0 0
    %2383 = vmatpush1.bf16.msra.mxu0 0
    %2384 = vmatprep.subr.bf16.mxu0 0
    %2385 = vmatpush1.bf16.msra.mxu0 0
    %2386 = vmatprep.subr.bf16.mxu0 0
    %2387 = vmatpush1.bf16.msra.mxu0 0
    %2388 = vmatprep.subr.bf16.mxu0 0
    %2389 = vmatpush1.bf16.msra.mxu0 0
    %2390 = vmatprep.subr.bf16.mxu0 0
    %2391 = vmatpush1.bf16.msra.mxu0 0
    %2392 = vmatprep.subr.bf16.mxu0 0
    %2393 = vmatpush1.bf16.msra.mxu0 0
    %2394 = vmatprep.mubr.bf16.mxu0 0
    %2395 = vmatmul.mubr.bf16.gmra.mrb[0].mxu0 %v2357
    %v2396 = vpop.f32.mrb[0].mxu0
    %v2397 = vadd.f32 0.0, %v2396
    %v2398 = vpop.f32.mrb[0].mxu0
    %v2399 = vpop.f32.mrb[0].mxu0
    %v2400 = vpop.f32.mrb[0].mxu0
    %2401 = vdwg.mxu0
    %2403 = vrot.lane.b32.xlu0 %v2132, 112
    %v2404 = vpop.permute.xlu0 %2403
    %v2406 = vsel %vm673, %v2352, 0
    %v2409 = vsel %vm703, %v2404, 0
    %2411 = vmatprep.subr.bf16.mxu0 0
    %2412 = vmatpush1.bf16.msra.mxu0 %v2409
    %2413 = vmatprep.subr.bf16.mxu0 0
    %2414 = vmatpush1.bf16.msra.mxu0 0
    %2415 = vmatprep.subr.bf16.mxu0 0
    %2416 = vmatpush1.bf16.msra.mxu0 0
    %2417 = vmatprep.subr.bf16.mxu0 0
    %2418 = vmatpush1.bf16.msra.mxu0 0
    %2419 = vmatprep.subr.bf16.mxu0 0
    %2420 = vmatpush1.bf16.msra.mxu0 0
    %2421 = vmatprep.subr.bf16.mxu0 0
    %2422 = vmatpush1.bf16.msra.mxu0 0
    %2423 = vmatprep.subr.bf16.mxu0 0
    %2424 = vmatpush1.bf16.msra.mxu0 0
    %2425 = vmatprep.subr.bf16.mxu0 0
    %2426 = vmatpush1.bf16.msra.mxu0 0
    %2427 = vmatprep.subr.bf16.mxu0 0
    %2428 = vmatpush1.bf16.msra.mxu0 0
    %2429 = vmatprep.subr.bf16.mxu0 0
    %2430 = vmatpush1.bf16.msra.mxu0 0
    %2431 = vmatprep.subr.bf16.mxu0 0
    %2432 = vmatpush1.bf16.msra.mxu0 0
    %2433 = vmatprep.subr.bf16.mxu0 0
    %2434 = vmatpush1.bf16.msra.mxu0 0
    %2435 = vmatprep.subr.bf16.mxu0 0
    %2436 = vmatpush1.bf16.msra.mxu0 0
    %2437 = vmatprep.subr.bf16.mxu0 0
    %2438 = vmatpush1.bf16.msra.mxu0 0
    %2439 = vmatprep.subr.bf16.mxu0 0
    %2440 = vmatpush1.bf16.msra.mxu0 0
    %2441 = vmatprep.subr.bf16.mxu0 0
    %2442 = vmatpush1.bf16.msra.mxu0 0
    %2443 = vmatprep.mubr.bf16.mxu0 0
    %2444 = vmatmul.mubr.bf16.gmra.mrb[0].mxu0 %v2406
    %v2445 = vpop.f32.mrb[0].mxu0
    %v2446 = vadd.f32 0.0, %v2445
    %v2447 = vpop.f32.mrb[0].mxu0
    %v2448 = vpop.f32.mrb[0].mxu0
    %v2449 = vpop.f32.mrb[0].mxu0
    %2450 = vdwg.mxu0
    %2453 = vrot.lane.b32.xlu0 %v2397, 16
    %v2454 = vpop.permute.xlu0 %2453
    %2455 = vrot.lane.b32.xlu0 %v2446, 16
    %v2456 = vpop.permute.xlu0 %2455
    %2459 = vst.msk [vmem:[#allocation2] sm:$0xff] %vm1027, %v2454
    %2460 = vst.msk [vmem:[#allocation2 + $0x8] sm:$0xff] %vm1027, %v2456
    %2461 = vrot.lane.b32.xlu0 %v2005, 96
    %v2462 = vpop.permute.xlu0 %2461
    %2463 = vrot.lane.b32.xlu0 %v2005, 32
    %v2464 = vpop.permute.xlu0 %2463
    %v2466 = vsel %vm575, %v2462, 0
    %v2469 = vsel %vm575, %v2464, 0
    %2471 = vmatprep.subr.bf16.mxu0 0
    %2472 = vmatpush1.bf16.xpose.msra.mxu0 %v2469
    %2473 = vmatprep.subr.bf16.mxu0 0
    %2474 = vmatpush1.bf16.xpose.msra.mxu0 0
    %2475 = vmatprep.subr.bf16.mxu0 0
    %2476 = vmatpush1.bf16.xpose.msra.mxu0 0
    %2477 = vmatprep.subr.bf16.mxu0 0
    %2478 = vmatpush1.bf16.xpose.msra.mxu0 0
    %2479 = vmatprep.subr.bf16.mxu0 0
    %2480 = vmatpush1.bf16.xpose.msra.mxu0 0
    %2481 = vmatprep.subr.bf16.mxu0 0
    %2482 = vmatpush1.bf16.xpose.msra.mxu0 0
    %2483 = vmatprep.subr.bf16.mxu0 0
    %2484 = vmatpush1.bf16.xpose.msra.mxu0 0
    %2485 = vmatprep.subr.bf16.mxu0 0
    %2486 = vmatpush1.bf16.xpose.msra.mxu0 0
    %2487 = vmatprep.subr.bf16.mxu0 0
    %2488 = vmatpush1.bf16.xpose.msra.mxu0 0
    %2489 = vmatprep.subr.bf16.mxu0 0
    %2490 = vmatpush1.bf16.xpose.msra.mxu0 0
    %2491 = vmatprep.subr.bf16.mxu0 0
    %2492 = vmatpush1.bf16.xpose.msra.mxu0 0
    %2493 = vmatprep.subr.bf16.mxu0 0
    %2494 = vmatpush1.bf16.xpose.msra.mxu0 0
    %2495 = vmatprep.subr.bf16.mxu0 0
    %2496 = vmatpush1.bf16.xpose.msra.mxu0 0
    %2497 = vmatprep.subr.bf16.mxu0 0
    %2498 = vmatpush1.bf16.xpose.msra.mxu0 0
    %2499 = vmatprep.subr.bf16.mxu0 0
    %2500 = vmatpush1.bf16.xpose.msra.mxu0 0
    %2501 = vmatprep.subr.bf16.mxu0 0
    %2502 = vmatpush1.bf16.xpose.msra.mxu0 0
    %2503 = vmatprep.mubr.bf16.mxu0 0
    %2504 = vmatmul.mubr.bf16.gmra.mrb[0].mxu0 %v2466
    %v2505 = vpop.f32.mrb[0].mxu0
    %v2506 = vadd.f32 0.0, %v2505
    %v2507 = vpop.f32.mrb[0].mxu0
    %v2508 = vpop.f32.mrb[0].mxu0
    %v2509 = vpop.f32.mrb[0].mxu0
    %2510 = vdwg.mxu0
    %2511 = vrot.lane.b32.xlu0 %v2006, 96
    %v2512 = vpop.permute.xlu0 %2511
    %2513 = vrot.lane.b32.xlu0 %v2006, 32
    %v2514 = vpop.permute.xlu0 %2513
    %v2516 = vsel %vm575, %v2512, 0
    %v2519 = vsel %vm575, %v2514, 0
    %2521 = vmatprep.subr.bf16.mxu0 0
    %2522 = vmatpush1.bf16.xpose.msra.mxu0 %v2519
    %2523 = vmatprep.subr.bf16.mxu0 0
    %2524 = vmatpush1.bf16.xpose.msra.mxu0 0
    %2525 = vmatprep.subr.bf16.mxu0 0
    %2526 = vmatpush1.bf16.xpose.msra.mxu0 0
    %2527 = vmatprep.subr.bf16.mxu0 0
    %2528 = vmatpush1.bf16.xpose.msra.mxu0 0
    %2529 = vmatprep.subr.bf16.mxu0 0
    %2530 = vmatpush1.bf16.xpose.msra.mxu0 0
    %2531 = vmatprep.subr.bf16.mxu0 0
    %2532 = vmatpush1.bf16.xpose.msra.mxu0 0
    %2533 = vmatprep.subr.bf16.mxu0 0
    %2534 = vmatpush1.bf16.xpose.msra.mxu0 0
    %2535 = vmatprep.subr.bf16.mxu0 0
    %2536 = vmatpush1.bf16.xpose.msra.mxu0 0
    %2537 = vmatprep.subr.bf16.mxu0 0
    %2538 = vmatpush1.bf16.xpose.msra.mxu0 0
    %2539 = vmatprep.subr.bf16.mxu0 0
    %2540 = vmatpush1.bf16.xpose.msra.mxu0 0
    %2541 = vmatprep.subr.bf16.mxu0 0
    %2542 = vmatpush1.bf16.xpose.msra.mxu0 0
    %2543 = vmatprep.subr.bf16.mxu0 0
    %2544 = vmatpush1.bf16.xpose.msra.mxu0 0
    %2545 = vmatprep.subr.bf16.mxu0 0
    %2546 = vmatpush1.bf16.xpose.msra.mxu0 0
    %2547 = vmatprep.subr.bf16.mxu0 0
    %2548 = vmatpush1.bf16.xpose.msra.mxu0 0
    %2549 = vmatprep.subr.bf16.mxu0 0
    %2550 = vmatpush1.bf16.xpose.msra.mxu0 0
    %2551 = vmatprep.subr.bf16.mxu0 0
    %2552 = vmatpush1.bf16.xpose.msra.mxu0 0
    %2553 = vmatprep.mubr.bf16.mxu0 0
    %2554 = vmatmul.mubr.bf16.gmra.mrb[0].mxu0 %v2516
    %v2555 = vpop.f32.mrb[0].mxu0
    %v2556 = vadd.f32 0.0, %v2555
    %v2557 = vpop.f32.mrb[0].mxu0
    %v2558 = vpop.f32.mrb[0].mxu0
    %v2559 = vpop.f32.mrb[0].mxu0
    %2560 = vdwg.mxu0
    %v2561 = vsel %vm434, %v2506, -1e+30
    %v2562 = vsel %vm434, %v2556, -1e+30
    %v2563 = vsel %vm673, %v2561, -inf
    %2564 = vmax.xlane.f32.xlu0 %v2563
    %v2565 = vpop.xlane.xlu0 %2564
    %v2566 = vsel %vm673, %v2562, -inf
    %2567 = vmax.xlane.f32.xlu0 %v2566
    %v2568 = vpop.xlane.xlu0 %2567
    %v2569 = vsub.f32 %v2561, %v2565
    %v2570 = vsub.f32 %v2562, %v2568
    %v2571 = vmul.f32 %v2569, 1.442695
    %v2572 = vpow.pop %v2571
    %v2573 = vmul.f32 %v2570, 1.442695
    %v2574 = vpow.pop %v2573
    %v2575 = vsel %vm673, %v2572, 0.0
    %2576 = vadd.xlane.f32.xlu0 %v2575
    %v2577 = vpop.xlane.xlu0 %2576
    %v2578 = vsel %vm673, %v2574, 0.0
    %2579 = vadd.xlane.f32.xlu0 %v2578
    %v2580 = vpop.xlane.xlu0 %2579
    %v2581 = vrcp.pop %v2577
    %v2582 = vmul.f32 %v2572, %v2581
    %v2583 = vrcp.pop %v2580
    %v2584 = vmul.f32 %v2574, %v2583
    %v2585 = vpack.c.bf16 %v2582, %v2582
    %v2586 = vpack.c.bf16 %v2584, %v2584
    %2587 = vrot.lane.b32.xlu0 %v2131, 96
    %v2588 = vpop.permute.xlu0 %2587
    %v2590 = vsel %vm673, %v2585, 0
    %v2593 = vsel %vm703, %v2588, 0
    %2595 = vmatprep.subr.bf16.mxu0 0
    %2596 = vmatpush1.bf16.msra.mxu0 %v2593
    %2597 = vmatprep.subr.bf16.mxu0 0
    %2598 = vmatpush1.bf16.msra.mxu0 0
    %2599 = vmatprep.subr.bf16.mxu0 0
    %2600 = vmatpush1.bf16.msra.mxu0 0
    %2601 = vmatprep.subr.bf16.mxu0 0
    %2602 = vmatpush1.bf16.msra.mxu0 0
    %2603 = vmatprep.subr.bf16.mxu0 0
    %2604 = vmatpush1.bf16.msra.mxu0 0
    %2605 = vmatprep.subr.bf16.mxu0 0
    %2606 = vmatpush1.bf16.msra.mxu0 0
    %2607 = vmatprep.subr.bf16.mxu0 0
    %2608 = vmatpush1.bf16.msra.mxu0 0
    %2609 = vmatprep.subr.bf16.mxu0 0
    %2610 = vmatpush1.bf16.msra.mxu0 0
    %2611 = vmatprep.subr.bf16.mxu0 0
    %2612 = vmatpush1.bf16.msra.mxu0 0
    %2613 = vmatprep.subr.bf16.mxu0 0
    %2614 = vmatpush1.bf16.msra.mxu0 0
    %2615 = vmatprep.subr.bf16.mxu0 0
    %2616 = vmatpush1.bf16.msra.mxu0 0
    %2617 = vmatprep.subr.bf16.mxu0 0
    %2618 = vmatpush1.bf16.msra.mxu0 0
    %2619 = vmatprep.subr.bf16.mxu0 0
    %2620 = vmatpush1.bf16.msra.mxu0 0
    %2621 = vmatprep.subr.bf16.mxu0 0
    %2622 = vmatpush1.bf16.msra.mxu0 0
    %2623 = vmatprep.subr.bf16.mxu0 0
    %2624 = vmatpush1.bf16.msra.mxu0 0
    %2625 = vmatprep.subr.bf16.mxu0 0
    %2626 = vmatpush1.bf16.msra.mxu0 0
    %2627 = vmatprep.mubr.bf16.mxu0 0
    %2628 = vmatmul.mubr.bf16.gmra.mrb[0].mxu0 %v2590
    %v2629 = vpop.f32.mrb[0].mxu0
    %v2630 = vadd.f32 0.0, %v2629
    %v2631 = vpop.f32.mrb[0].mxu0
    %v2632 = vpop.f32.mrb[0].mxu0
    %v2633 = vpop.f32.mrb[0].mxu0
    %2634 = vdwg.mxu0
    %2635 = vrot.lane.b32.xlu0 %v2132, 96
    %v2636 = vpop.permute.xlu0 %2635
    %v2638 = vsel %vm673, %v2586, 0
    %v2641 = vsel %vm703, %v2636, 0
    %2643 = vmatprep.subr.bf16.mxu0 0
    %2644 = vmatpush1.bf16.msra.mxu0 %v2641
    %2645 = vmatprep.subr.bf16.mxu0 0
    %2646 = vmatpush1.bf16.msra.mxu0 0
    %2647 = vmatprep.subr.bf16.mxu0 0
    %2648 = vmatpush1.bf16.msra.mxu0 0
    %2649 = vmatprep.subr.bf16.mxu0 0
    %2650 = vmatpush1.bf16.msra.mxu0 0
    %2651 = vmatprep.subr.bf16.mxu0 0
    %2652 = vmatpush1.bf16.msra.mxu0 0
    %2653 = vmatprep.subr.bf16.mxu0 0
    %2654 = vmatpush1.bf16.msra.mxu0 0
    %2655 = vmatprep.subr.bf16.mxu0 0
    %2656 = vmatpush1.bf16.msra.mxu0 0
    %2657 = vmatprep.subr.bf16.mxu0 0
    %2658 = vmatpush1.bf16.msra.mxu0 0
    %2659 = vmatprep.subr.bf16.mxu0 0
    %2660 = vmatpush1.bf16.msra.mxu0 0
    %2661 = vmatprep.subr.bf16.mxu0 0
    %2662 = vmatpush1.bf16.msra.mxu0 0
    %2663 = vmatprep.subr.bf16.mxu0 0
    %2664 = vmatpush1.bf16.msra.mxu0 0
    %2665 = vmatprep.subr.bf16.mxu0 0
    %2666 = vmatpush1.bf16.msra.mxu0 0
    %2667 = vmatprep.subr.bf16.mxu0 0
    %2668 = vmatpush1.bf16.msra.mxu0 0
    %2669 = vmatprep.subr.bf16.mxu0 0
    %2670 = vmatpush1.bf16.msra.mxu0 0
    %2671 = vmatprep.subr.bf16.mxu0 0
    %2672 = vmatpush1.bf16.msra.mxu0 0
    %2673 = vmatprep.subr.bf16.mxu0 0
    %2674 = vmatpush1.bf16.msra.mxu0 0
    %2675 = vmatprep.mubr.bf16.mxu0 0
    %2676 = vmatmul.mubr.bf16.gmra.mrb[0].mxu0 %v2638
    %v2677 = vpop.f32.mrb[0].mxu0
    %v2678 = vadd.f32 0.0, %v2677
    %v2679 = vpop.f32.mrb[0].mxu0
    %v2680 = vpop.f32.mrb[0].mxu0
    %v2681 = vpop.f32.mrb[0].mxu0
    %2682 = vdwg.mxu0
    %2685 = vrot.lane.b32.xlu0 %v2630, 32
    %v2686 = vpop.permute.xlu0 %2685
    %2687 = vrot.lane.b32.xlu0 %v2678, 32
    %v2688 = vpop.permute.xlu0 %2687
    %2691 = vst.msk [vmem:[#allocation2] sm:$0xff] %vm1260, %v2686
    %2692 = vst.msk [vmem:[#allocation2 + $0x8] sm:$0xff] %vm1260, %v2688
    %2693 = vrot.lane.b32.xlu0 %v2005, 80
    %v2694 = vpop.permute.xlu0 %2693
    %2695 = vrot.lane.b32.xlu0 %v2005, 16
    %v2696 = vpop.permute.xlu0 %2695
    %v2698 = vsel %vm575, %v2694, 0
    %v2701 = vsel %vm575, %v2696, 0
    %2703 = vmatprep.subr.bf16.mxu0 0
    %2704 = vmatpush1.bf16.xpose.msra.mxu0 %v2701
    %2705 = vmatprep.subr.bf16.mxu0 0
    %2706 = vmatpush1.bf16.xpose.msra.mxu0 0
    %2707 = vmatprep.subr.bf16.mxu0 0
    %2708 = vmatpush1.bf16.xpose.msra.mxu0 0
    %2709 = vmatprep.subr.bf16.mxu0 0
    %2710 = vmatpush1.bf16.xpose.msra.mxu0 0
    %2711 = vmatprep.subr.bf16.mxu0 0
    %2712 = vmatpush1.bf16.xpose.msra.mxu0 0
    %2713 = vmatprep.subr.bf16.mxu0 0
    %2714 = vmatpush1.bf16.xpose.msra.mxu0 0
    %2715 = vmatprep.subr.bf16.mxu0 0
    %2716 = vmatpush1.bf16.xpose.msra.mxu0 0
    %2717 = vmatprep.subr.bf16.mxu0 0
    %2718 = vmatpush1.bf16.xpose.msra.mxu0 0
    %2719 = vmatprep.subr.bf16.mxu0 0
    %2720 = vmatpush1.bf16.xpose.msra.mxu0 0
    %2721 = vmatprep.subr.bf16.mxu0 0
    %2722 = vmatpush1.bf16.xpose.msra.mxu0 0
    %2723 = vmatprep.subr.bf16.mxu0 0
    %2724 = vmatpush1.bf16.xpose.msra.mxu0 0
    %2725 = vmatprep.subr.bf16.mxu0 0
    %2726 = vmatpush1.bf16.xpose.msra.mxu0 0
    %2727 = vmatprep.subr.bf16.mxu0 0
    %2728 = vmatpush1.bf16.xpose.msra.mxu0 0
    %2729 = vmatprep.subr.bf16.mxu0 0
    %2730 = vmatpush1.bf16.xpose.msra.mxu0 0
    %2731 = vmatprep.subr.bf16.mxu0 0
    %2732 = vmatpush1.bf16.xpose.msra.mxu0 0
    %2733 = vmatprep.subr.bf16.mxu0 0
    %2734 = vmatpush1.bf16.xpose.msra.mxu0 0
    %2735 = vmatprep.mubr.bf16.mxu0 0
    %2736 = vmatmul.mubr.bf16.gmra.mrb[0].mxu0 %v2698
    %v2737 = vpop.f32.mrb[0].mxu0
    %v2738 = vadd.f32 0.0, %v2737
    %v2739 = vpop.f32.mrb[0].mxu0
    %v2740 = vpop.f32.mrb[0].mxu0
    %v2741 = vpop.f32.mrb[0].mxu0
    %2742 = vdwg.mxu0
    %2743 = vrot.lane.b32.xlu0 %v2006, 80
    %v2744 = vpop.permute.xlu0 %2743
    %2745 = vrot.lane.b32.xlu0 %v2006, 16
    %v2746 = vpop.permute.xlu0 %2745
    %v2748 = vsel %vm575, %v2744, 0
    %v2751 = vsel %vm575, %v2746, 0
    %2753 = vmatprep.subr.bf16.mxu0 0
    %2754 = vmatpush1.bf16.xpose.msra.mxu0 %v2751
    %2755 = vmatprep.subr.bf16.mxu0 0
    %2756 = vmatpush1.bf16.xpose.msra.mxu0 0
    %2757 = vmatprep.subr.bf16.mxu0 0
    %2758 = vmatpush1.bf16.xpose.msra.mxu0 0
    %2759 = vmatprep.subr.bf16.mxu0 0
    %2760 = vmatpush1.bf16.xpose.msra.mxu0 0
    %2761 = vmatprep.subr.bf16.mxu0 0
    %2762 = vmatpush1.bf16.xpose.msra.mxu0 0
    %2763 = vmatprep.subr.bf16.mxu0 0
    %2764 = vmatpush1.bf16.xpose.msra.mxu0 0
    %2765 = vmatprep.subr.bf16.mxu0 0
    %2766 = vmatpush1.bf16.xpose.msra.mxu0 0
    %2767 = vmatprep.subr.bf16.mxu0 0
    %2768 = vmatpush1.bf16.xpose.msra.mxu0 0
    %2769 = vmatprep.subr.bf16.mxu0 0
    %2770 = vmatpush1.bf16.xpose.msra.mxu0 0
    %2771 = vmatprep.subr.bf16.mxu0 0
    %2772 = vmatpush1.bf16.xpose.msra.mxu0 0
    %2773 = vmatprep.subr.bf16.mxu0 0
    %2774 = vmatpush1.bf16.xpose.msra.mxu0 0
    %2775 = vmatprep.subr.bf16.mxu0 0
    %2776 = vmatpush1.bf16.xpose.msra.mxu0 0
    %2777 = vmatprep.subr.bf16.mxu0 0
    %2778 = vmatpush1.bf16.xpose.msra.mxu0 0
    %2779 = vmatprep.subr.bf16.mxu0 0
    %2780 = vmatpush1.bf16.xpose.msra.mxu0 0
    %2781 = vmatprep.subr.bf16.mxu0 0
    %2782 = vmatpush1.bf16.xpose.msra.mxu0 0
    %2783 = vmatprep.subr.bf16.mxu0 0
    %2784 = vmatpush1.bf16.xpose.msra.mxu0 0
    %2785 = vmatprep.mubr.bf16.mxu0 0
    %2786 = vmatmul.mubr.bf16.gmra.mrb[0].mxu0 %v2748
    %v2787 = vpop.f32.mrb[0].mxu0
    %v2788 = vadd.f32 0.0, %v2787
    %v2789 = vpop.f32.mrb[0].mxu0
    %v2790 = vpop.f32.mrb[0].mxu0
    %v2791 = vpop.f32.mrb[0].mxu0
    %2792 = vdwg.mxu0
    %v2793 = vsel %vm434, %v2738, -1e+30
    %v2794 = vsel %vm434, %v2788, -1e+30
    %v2795 = vsel %vm673, %v2793, -inf
    %2796 = vmax.xlane.f32.xlu0 %v2795
    %v2797 = vpop.xlane.xlu0 %2796
    %v2798 = vsel %vm673, %v2794, -inf
    %2799 = vmax.xlane.f32.xlu0 %v2798
    %v2800 = vpop.xlane.xlu0 %2799
    %v2801 = vsub.f32 %v2793, %v2797
    %v2802 = vsub.f32 %v2794, %v2800
    %v2803 = vmul.f32 %v2801, 1.442695
    %v2804 = vpow.pop %v2803
    %v2805 = vmul.f32 %v2802, 1.442695
    %v2806 = vpow.pop %v2805
    %v2807 = vsel %vm673, %v2804, 0.0
    %2808 = vadd.xlane.f32.xlu0 %v2807
    %v2809 = vpop.xlane.xlu0 %2808
    %v2810 = vsel %vm673, %v2806, 0.0
    %2811 = vadd.xlane.f32.xlu0 %v2810
    %v2812 = vpop.xlane.xlu0 %2811
    %v2813 = vrcp.pop %v2809
    %v2814 = vmul.f32 %v2804, %v2813
    %v2815 = vrcp.pop %v2812
    %v2816 = vmul.f32 %v2806, %v2815
    %v2817 = vpack.c.bf16 %v2814, %v2814
    %v2818 = vpack.c.bf16 %v2816, %v2816
    %2819 = vrot.lane.b32.xlu0 %v2131, 80
    %v2820 = vpop.permute.xlu0 %2819
    %v2822 = vsel %vm673, %v2817, 0
    %v2825 = vsel %vm703, %v2820, 0
    %2827 = vmatprep.subr.bf16.mxu0 0
    %2828 = vmatpush1.bf16.msra.mxu0 %v2825
    %2829 = vmatprep.subr.bf16.mxu0 0
    %2830 = vmatpush1.bf16.msra.mxu0 0
    %2831 = vmatprep.subr.bf16.mxu0 0
    %2832 = vmatpush1.bf16.msra.mxu0 0
    %2833 = vmatprep.subr.bf16.mxu0 0
    %2834 = vmatpush1.bf16.msra.mxu0 0
    %2835 = vmatprep.subr.bf16.mxu0 0
    %2836 = vmatpush1.bf16.msra.mxu0 0
    %2837 = vmatprep.subr.bf16.mxu0 0
    %2838 = vmatpush1.bf16.msra.mxu0 0
    %2839 = vmatprep.subr.bf16.mxu0 0
    %2840 = vmatpush1.bf16.msra.mxu0 0
    %2841 = vmatprep.subr.bf16.mxu0 0
    %2842 = vmatpush1.bf16.msra.mxu0 0
    %2843 = vmatprep.subr.bf16.mxu0 0
    %2844 = vmatpush1.bf16.msra.mxu0 0
    %2845 = vmatprep.subr.bf16.mxu0 0
    %2846 = vmatpush1.bf16.msra.mxu0 0
    %2847 = vmatprep.subr.bf16.mxu0 0
    %2848 = vmatpush1.bf16.msra.mxu0 0
    %2849 = vmatprep.subr.bf16.mxu0 0
    %2850 = vmatpush1.bf16.msra.mxu0 0
    %2851 = vmatprep.subr.bf16.mxu0 0
    %2852 = vmatpush1.bf16.msra.mxu0 0
    %2853 = vmatprep.subr.bf16.mxu0 0
    %2854 = vmatpush1.bf16.msra.mxu0 0
    %2855 = vmatprep.subr.bf16.mxu0 0
    %2856 = vmatpush1.bf16.msra.mxu0 0
    %2857 = vmatprep.subr.bf16.mxu0 0
    %2858 = vmatpush1.bf16.msra.mxu0 0
    %2859 = vmatprep.mubr.bf16.mxu0 0
    %2860 = vmatmul.mubr.bf16.gmra.mrb[0].mxu0 %v2822
    %v2861 = vpop.f32.mrb[0].mxu0
    %v2862 = vadd.f32 0.0, %v2861
    %v2863 = vpop.f32.mrb[0].mxu0
    %v2864 = vpop.f32.mrb[0].mxu0
    %v2865 = vpop.f32.mrb[0].mxu0
    %2866 = vdwg.mxu0
    %2867 = vrot.lane.b32.xlu0 %v2132, 80
    %v2868 = vpop.permute.xlu0 %2867
    %v2870 = vsel %vm673, %v2818, 0
    %v2873 = vsel %vm703, %v2868, 0
    %2875 = vmatprep.subr.bf16.mxu0 0
    %2876 = vmatpush1.bf16.msra.mxu0 %v2873
    %2877 = vmatprep.subr.bf16.mxu0 0
    %2878 = vmatpush1.bf16.msra.mxu0 0
    %2879 = vmatprep.subr.bf16.mxu0 0
    %2880 = vmatpush1.bf16.msra.mxu0 0
    %2881 = vmatprep.subr.bf16.mxu0 0
    %2882 = vmatpush1.bf16.msra.mxu0 0
    %2883 = vmatprep.subr.bf16.mxu0 0
    %2884 = vmatpush1.bf16.msra.mxu0 0
    %2885 = vmatprep.subr.bf16.mxu0 0
    %2886 = vmatpush1.bf16.msra.mxu0 0
    %2887 = vmatprep.subr.bf16.mxu0 0
    %2888 = vmatpush1.bf16.msra.mxu0 0
    %2889 = vmatprep.subr.bf16.mxu0 0
    %2890 = vmatpush1.bf16.msra.mxu0 0
    %2891 = vmatprep.subr.bf16.mxu0 0
    %2892 = vmatpush1.bf16.msra.mxu0 0
    %2893 = vmatprep.subr.bf16.mxu0 0
    %2894 = vmatpush1.bf16.msra.mxu0 0
    %2895 = vmatprep.subr.bf16.mxu0 0
    %2896 = vmatpush1.bf16.msra.mxu0 0
    %2897 = vmatprep.subr.bf16.mxu0 0
    %2898 = vmatpush1.bf16.msra.mxu0 0
    %2899 = vmatprep.subr.bf16.mxu0 0
    %2900 = vmatpush1.bf16.msra.mxu0 0
    %2901 = vmatprep.subr.bf16.mxu0 0
    %2902 = vmatpush1.bf16.msra.mxu0 0
    %2903 = vmatprep.subr.bf16.mxu0 0
    %2904 = vmatpush1.bf16.msra.mxu0 0
    %2905 = vmatprep.subr.bf16.mxu0 0
    %2906 = vmatpush1.bf16.msra.mxu0 0
    %2907 = vmatprep.mubr.bf16.mxu0 0
    %2908 = vmatmul.mubr.bf16.gmra.mrb[0].mxu0 %v2870
    %v2909 = vpop.f32.mrb[0].mxu0
    %v2910 = vadd.f32 0.0, %v2909
    %v2911 = vpop.f32.mrb[0].mxu0
    %v2912 = vpop.f32.mrb[0].mxu0
    %v2913 = vpop.f32.mrb[0].mxu0
    %2914 = vdwg.mxu0
    %2917 = vrot.lane.b32.xlu0 %v2862, 48
    %v2918 = vpop.permute.xlu0 %2917
    %2919 = vrot.lane.b32.xlu0 %v2910, 48
    %v2920 = vpop.permute.xlu0 %2919
    %2923 = vst.msk [vmem:[#allocation2] sm:$0xff] %vm1493, %v2918
    %2924 = vst.msk [vmem:[#allocation2 + $0x8] sm:$0xff] %vm1493, %v2920
    %v2925 = vld [vmem:[#allocation2] sm:$0xff]
    %v2926 = vld [vmem:[#allocation2 + $0x8] sm:$0xff]
    %s2927 = scalar_lea.vmem %s12, 32
    %v2928 = vld [vmem:[%s2927] sm:$0xf]
    %v2929 = vld [vmem:[%s2927 + $0x4] sm:$0xf]
    %v2930 = vld [vmem:[%s2927 + $0x8] sm:$0xf]
    %v2931 = vld [vmem:[%s2927 + $0xc] sm:$0xf]
    %v2932 = vld [vmem:[%s2927 + $0x10] sm:$0xf]
    %v2933 = vld [vmem:[%s2927 + $0x14] sm:$0xf]
    %v2934 = vld [vmem:[%s2927 + $0x18] sm:$0xf]
    %v2935 = vld [vmem:[%s2927 + $0x1c] sm:$0xf]
    %v2936 = vpack.c.bf16 %v2926, %v2925
    %v2937 = vld [vmem:[%s13 + $0x1] sm:$0x1]
    %v2938 = vlaneseq
    %v2939 = vshrl.u32 %v2938, 7
    %v2940 = vsub.s32 0, %v2939
    %v2941 = vrot.slane %v2937, %v2940
    %v2950 = vunpack.c.l.b16 %v2928
    %v2951 = vunpack.c.l.b16 %v2929
    %v2952 = vunpack.c.l.b16 %v2930
    %v2953 = vunpack.c.l.b16 %v2931
    %v2954 = vunpack.c.l.b16 %v2932
    %v2955 = vunpack.c.l.b16 %v2933
    %v2956 = vunpack.c.l.b16 %v2934
    %v2957 = vunpack.c.l.b16 %v2935
    %v2958 = vpack.c.b16 %v2951, %v2950
    %v2959 = vpack.c.b16 %v2953, %v2952
    %v2960 = vpack.c.b16 %v2955, %v2954
    %v2961 = vpack.c.b16 %v2957, %v2956
    %v2967 = vsel %vm155, %v2936, 0
    %2969 = vmatprep.subr.bf16.mxu0 0
    %2970 = vmatpush1.bf16.msra.mxu0 %v2958
    %2971 = vmatprep.subr.bf16.mxu0 0
    %2972 = vmatpush1.bf16.msra.mxu0 %v2959
    %2973 = vmatprep.subr.bf16.mxu0 0
    %2974 = vmatpush1.bf16.msra.mxu0 %v2960
    %2975 = vmatprep.subr.bf16.mxu0 0
    %2976 = vmatpush1.bf16.msra.mxu0 %v2961
    %2977 = vmatprep.subr.bf16.mxu0 0
    %2978 = vmatpush1.bf16.msra.mxu0 0
    %2979 = vmatprep.subr.bf16.mxu0 0
    %2980 = vmatpush1.bf16.msra.mxu0 0
    %2981 = vmatprep.subr.bf16.mxu0 0
    %2982 = vmatpush1.bf16.msra.mxu0 0
    %2983 = vmatprep.subr.bf16.mxu0 0
    %2984 = vmatpush1.bf16.msra.mxu0 0
    %2985 = vmatprep.subr.bf16.mxu0 0
    %2986 = vmatpush1.bf16.msra.mxu0 0
    %2987 = vmatprep.subr.bf16.mxu0 0
    %2988 = vmatpush1.bf16.msra.mxu0 0
    %2989 = vmatprep.subr.bf16.mxu0 0
    %2990 = vmatpush1.bf16.msra.mxu0 0
    %2991 = vmatprep.subr.bf16.mxu0 0
    %2992 = vmatpush1.bf16.msra.mxu0 0
    %2993 = vmatprep.subr.bf16.mxu0 0
    %2994 = vmatpush1.bf16.msra.mxu0 0
    %2995 = vmatprep.subr.bf16.mxu0 0
    %2996 = vmatpush1.bf16.msra.mxu0 0
    %2997 = vmatprep.subr.bf16.mxu0 0
    %2998 = vmatpush1.bf16.msra.mxu0 0
    %2999 = vmatprep.subr.bf16.mxu0 0
    %3000 = vmatpush1.bf16.msra.mxu0 0
    %3001 = vmatprep.mubr.bf16.mxu0 0
    %3002 = vmatmul.mubr.bf16.gmra.mrb[0].mxu0 %v2967
    %v3003 = vpop.f32.mrb[0].mxu0
    %v3004 = vadd.f32 %v2941, %v3003
    %v3005 = vpop.f32.mrb[0].mxu0
    %v3006 = vpop.f32.mrb[0].mxu0
    %v3007 = vadd.f32 %v2941, %v3006
    %v3008 = vpop.f32.mrb[0].mxu0
    %3009 = vdwg.mxu0
    %v3010 = vadd.f32 %v1867, %v3004
    %v3011 = vadd.f32 %v1868, %v3007
    %v3012 = vld [vmem:[%s14 + $0x1] sm:$0x1]
    %v3013 = vld [vmem:[%s15 + $0x1] sm:$0x1]
    %v3014 = vsel %vm155, %v3010, 0.0
    %3015 = vadd.xlane.f32.xlu0 %v3014
    %v3016 = vpop.xlane.xlu0 %3015
    %v3017 = vsel %vm155, %v3011, 0.0
    %3018 = vadd.xlane.f32.xlu0 %v3017
    %v3019 = vpop.xlane.xlu0 %3018
    %v3020 = vmul.f32 %v3016, %v380
    %v3021 = vmul.f32 %v3019, %v380
    %v3022 = vsub.f32 %v3010, %v3020
    %v3023 = vsub.f32 %v3011, %v3021
    %v3024 = vmul.f32 %v3022, %v3022
    %v3025 = vmul.f32 %v3023, %v3023
    %v3026 = vsel %vm155, %v3024, 0.0
    %3027 = vadd.xlane.f32.xlu0 %v3026
    %v3028 = vpop.xlane.xlu0 %3027
    %v3029 = vsel %vm155, %v3025, 0.0
    %3030 = vadd.xlane.f32.xlu0 %v3029
    %v3031 = vpop.xlane.xlu0 %3030
    %v3032 = vmul.f32 %v3028, %v380
    %v3033 = vmul.f32 %v3031, %v380
    %v3034 = vadd.f32 %v3032, 1e-05
    %v3035 = vadd.f32 %v3033, 1e-05
    %v3036 = vrsqrt.pop %v3034
    %v3037 = vrsqrt.pop %v3035
    %v3038 = vmul.f32 %v3022, %v3036
    %v3039 = vmul.f32 %v3023, %v3037
    %v3040 = vlaneseq
    %v3041 = vshrl.u32 %v3040, 7
    %v3042 = vsub.s32 0, %v3041
    %v3043 = vrot.slane %v3012, %v3042
    %v3044 = vmul.f32 %v3038, %v3043
    %v3045 = vmul.f32 %v3039, %v3043
    %v3046 = vlaneseq
    %v3047 = vshrl.u32 %v3046, 7
    %v3048 = vsub.s32 0, %v3047
    %v3049 = vrot.slane %v3013, %v3048
    %v3050 = vadd.f32 %v3044, %v3049
    %v3051 = vadd.f32 %v3045, %v3049
    %s3052 = scalar_lea.vmem %s16, 32
    %v3053 = vld [vmem:[%s3052] sm:$0xf]
    %v3054 = vld [vmem:[%s3052 + $0x4] sm:$0xf]
    %v3055 = vld [vmem:[%s3052 + $0x8] sm:$0xf]
    %v3056 = vld [vmem:[%s3052 + $0xc] sm:$0xf]
    %v3057 = vld [vmem:[%s3052 + $0x10] sm:$0xf]
    %v3058 = vld [vmem:[%s3052 + $0x14] sm:$0xf]
    %v3059 = vld [vmem:[%s3052 + $0x18] sm:$0xf]
    %v3060 = vld [vmem:[%s3052 + $0x1c] sm:$0xf]
    %v3061 = vpack.c.bf16 %v3051, %v3050
    %v3062 = vld [vmem:[%s17 + $0x1] sm:$0x1]
    %v3063 = vlaneseq
    %v3064 = vshrl.u32 %v3063, 7
    %v3065 = vsub.s32 0, %v3064
    %v3066 = vrot.slane %v3062, %v3065
    %v3075 = vunpack.c.l.b16 %v3053
    %v3076 = vunpack.c.l.b16 %v3054
    %v3077 = vunpack.c.l.b16 %v3055
    %v3078 = vunpack.c.l.b16 %v3056
    %v3079 = vunpack.c.l.b16 %v3057
    %v3080 = vunpack.c.l.b16 %v3058
    %v3081 = vunpack.c.l.b16 %v3059
    %v3082 = vunpack.c.l.b16 %v3060
    %v3083 = vpack.c.b16 %v3076, %v3075
    %v3084 = vpack.c.b16 %v3078, %v3077
    %v3085 = vpack.c.b16 %v3080, %v3079
    %v3086 = vpack.c.b16 %v3082, %v3081
    %v3092 = vsel %vm155, %v3061, 0
    %3094 = vmatprep.subr.bf16.mxu0 0
    %3095 = vmatpush1.bf16.msra.mxu0 %v3083
    %3096 = vmatprep.subr.bf16.mxu0 0
    %3097 = vmatpush1.bf16.msra.mxu0 %v3084
    %3098 = vmatprep.subr.bf16.mxu0 0
    %3099 = vmatpush1.bf16.msra.mxu0 %v3085
    %3100 = vmatprep.subr.bf16.mxu0 0
    %3101 = vmatpush1.bf16.msra.mxu0 %v3086
    %3102 = vmatprep.subr.bf16.mxu0 0
    %3103 = vmatpush1.bf16.msra.mxu0 0
    %3104 = vmatprep.subr.bf16.mxu0 0
    %3105 = vmatpush1.bf16.msra.mxu0 0
    %3106 = vmatprep.subr.bf16.mxu0 0
    %3107 = vmatpush1.bf16.msra.mxu0 0
    %3108 = vmatprep.subr.bf16.mxu0 0
    %3109 = vmatpush1.bf16.msra.mxu0 0
    %3110 = vmatprep.subr.bf16.mxu0 0
    %3111 = vmatpush1.bf16.msra.mxu0 0
    %3112 = vmatprep.subr.bf16.mxu0 0
    %3113 = vmatpush1.bf16.msra.mxu0 0
    %3114 = vmatprep.subr.bf16.mxu0 0
    %3115 = vmatpush1.bf16.msra.mxu0 0
    %3116 = vmatprep.subr.bf16.mxu0 0
    %3117 = vmatpush1.bf16.msra.mxu0 0
    %3118 = vmatprep.subr.bf16.mxu0 0
    %3119 = vmatpush1.bf16.msra.mxu0 0
    %3120 = vmatprep.subr.bf16.mxu0 0
    %3121 = vmatpush1.bf16.msra.mxu0 0
    %3122 = vmatprep.subr.bf16.mxu0 0
    %3123 = vmatpush1.bf16.msra.mxu0 0
    %3124 = vmatprep.subr.bf16.mxu0 0
    %3125 = vmatpush1.bf16.msra.mxu0 0
    %3126 = vmatprep.mubr.bf16.mxu0 0
    %3127 = vmatmul.mubr.bf16.gmra.mrb[0].mxu0 %v3092
    %v3128 = vpop.f32.mrb[0].mxu0
    %v3129 = vadd.f32 %v3066, %v3128
    %v3130 = vpop.f32.mrb[0].mxu0
    %v3131 = vpop.f32.mrb[0].mxu0
    %v3132 = vadd.f32 %v3066, %v3131
    %v3133 = vpop.f32.mrb[0].mxu0
    %3134 = vdwg.mxu0
    %v3135 = vmul.f32 %v3129, 0.5
    %v3136 = vmul.f32 %v3132, 0.5
    %v3137 = vmul.f32 %v3129, 0.70710677
    %v3138 = vmul.f32 %v3132, 0.70710677
    %vm3139 = vcmp.ge.f32.partialorder %v3137, 0.0
    %vm3140 = vcmp.ge.f32.partialorder %v3138, 0.0
    %v3141 = vsel %vm3139, 1.0, -1.0
    %v3142 = vsel %vm3140, 1.0, -1.0
    %v3143 = vand.u32 2147483647, %v3137
    %v3144 = vand.u32 2147483647, %v3138
    %v3145 = vmul.f32 %v3143, 0.3275911
    %v3146 = vmul.f32 %v3144, 0.3275911
    %v3147 = vadd.f32 %v3145, 1.0
    %v3148 = vadd.f32 %v3146, 1.0
    %v3149 = vrcp.pop %v3147
    %v3150 = vrcp.pop %v3148
    %v3151 = vmul.f32 %v3149, 1.0614054
    %v3152 = vmul.f32 %v3150, 1.0614054
    %v3153 = vadd.f32 %v3151, -1.4531521
    %v3154 = vadd.f32 %v3152, -1.4531521
    %v3155 = vmul.f32 %v3153, %v3149
    %v3156 = vmul.f32 %v3154, %v3150
    %v3157 = vadd.f32 %v3155, 1.4214138
    %v3158 = vadd.f32 %v3156, 1.4214138
    %v3159 = vmul.f32 %v3157, %v3149
    %v3160 = vmul.f32 %v3158, %v3150
    %v3161 = vadd.f32 %v3159, -0.28449672
    %v3162 = vadd.f32 %v3160, -0.28449672
    %v3163 = vmul.f32 %v3161, %v3149
    %v3164 = vmul.f32 %v3162, %v3150
    %v3165 = vadd.f32 %v3163, 0.2548296
    %v3166 = vadd.f32 %v3164, 0.2548296
    %v3167 = vmul.f32 %v3165, %v3149
    %v3168 = vmul.f32 %v3166, %v3150
    %v3169 = vsub.f32 0.0, %v3143
    %v3170 = vsub.f32 0.0, %v3144
    %v3171 = vmul.f32 %v3169, %v3143
    %v3172 = vmul.f32 %v3170, %v3144
    %v3173 = vmul.f32 %v3171, 1.442695
    %v3174 = vpow.pop %v3173
    %v3175 = vmul.f32 %v3172, 1.442695
    %v3176 = vpow.pop %v3175
    %v3177 = vmul.f32 %v3167, %v3174
    %v3178 = vmul.f32 %v3168, %v3176
    %v3179 = vsub.f32 1.0, %v3177
    %v3180 = vsub.f32 1.0, %v3178
    %v3181 = vmul.f32 %v3141, %v3179
    %v3182 = vmul.f32 %v3142, %v3180
    %v3183 = vadd.f32 %v3181, 1.0
    %v3184 = vadd.f32 %v3182, 1.0
    %v3185 = vmul.f32 %v3135, %v3183
    %v3186 = vmul.f32 %v3136, %v3184
    %s3187 = scalar_lea.vmem %s18, 64
    %v3188 = vld [vmem:[%s3187] sm:$0xf]
    %v3189 = vld [vmem:[%s3187 + $0x4] sm:$0xf]
    %v3190 = vld [vmem:[%s3187 + $0x8] sm:$0xf]
    %v3191 = vld [vmem:[%s3187 + $0xc] sm:$0xf]
    %v3192 = vld [vmem:[%s3187 + $0x10] sm:$0xf]
    %v3193 = vld [vmem:[%s3187 + $0x14] sm:$0xf]
    %v3194 = vld [vmem:[%s3187 + $0x18] sm:$0xf]
    %v3195 = vld [vmem:[%s3187 + $0x1c] sm:$0xf]
    %v3196 = vld [vmem:[%s3187 + $0x20] sm:$0xf]
    %v3197 = vld [vmem:[%s3187 + $0x24] sm:$0xf]
    %v3198 = vld [vmem:[%s3187 + $0x28] sm:$0xf]
    %v3199 = vld [vmem:[%s3187 + $0x2c] sm:$0xf]
    %v3200 = vld [vmem:[%s3187 + $0x30] sm:$0xf]
    %v3201 = vld [vmem:[%s3187 + $0x34] sm:$0xf]
    %v3202 = vld [vmem:[%s3187 + $0x38] sm:$0xf]
    %v3203 = vld [vmem:[%s3187 + $0x3c] sm:$0xf]
    %v3204 = vpack.c.bf16 %v3186, %v3185
    %v3205 = vld [vmem:[%s19 + $0x1] sm:$0x1]
    %v3206 = vlaneseq
    %v3207 = vshrl.u32 %v3206, 7
    %v3208 = vsub.s32 0, %v3207
    %v3209 = vrot.slane %v3205, %v3208
    %v3226 = vunpack.c.l.b16 %v3188
    %v3227 = vunpack.c.l.b16 %v3189
    %v3228 = vunpack.c.l.b16 %v3190
    %v3229 = vunpack.c.l.b16 %v3191
    %v3230 = vunpack.c.l.b16 %v3192
    %v3231 = vunpack.c.l.b16 %v3193
    %v3232 = vunpack.c.l.b16 %v3194
    %v3233 = vunpack.c.l.b16 %v3195
    %v3234 = vunpack.c.l.b16 %v3196
    %v3235 = vunpack.c.l.b16 %v3197
    %v3236 = vunpack.c.l.b16 %v3198
    %v3237 = vunpack.c.l.b16 %v3199
    %v3238 = vunpack.c.l.b16 %v3200
    %v3239 = vunpack.c.l.b16 %v3201
    %v3240 = vunpack.c.l.b16 %v3202
    %v3241 = vunpack.c.l.b16 %v3203
    %v3242 = vpack.c.b16 %v3227, %v3226
    %v3243 = vpack.c.b16 %v3229, %v3228
    %v3244 = vpack.c.b16 %v3231, %v3230
    %v3245 = vpack.c.b16 %v3233, %v3232
    %v3246 = vpack.c.b16 %v3235, %v3234
    %v3247 = vpack.c.b16 %v3237, %v3236
    %v3248 = vpack.c.b16 %v3239, %v3238
    %v3249 = vpack.c.b16 %v3241, %v3240
    %3258 = vmatprep.subr.bf16.mxu0 0
    %3259 = vmatpush1.bf16.msra.mxu0 %v3242
    %3260 = vmatprep.subr.bf16.mxu0 0
    %3261 = vmatpush1.bf16.msra.mxu0 %v3243
    %3262 = vmatprep.subr.bf16.mxu0 0
    %3263 = vmatpush1.bf16.msra.mxu0 %v3244
    %3264 = vmatprep.subr.bf16.mxu0 0
    %3265 = vmatpush1.bf16.msra.mxu0 %v3245
    %3266 = vmatprep.subr.bf16.mxu0 0
    %3267 = vmatpush1.bf16.msra.mxu0 %v3246
    %3268 = vmatprep.subr.bf16.mxu0 0
    %3269 = vmatpush1.bf16.msra.mxu0 %v3247
    %3270 = vmatprep.subr.bf16.mxu0 0
    %3271 = vmatpush1.bf16.msra.mxu0 %v3248
    %3272 = vmatprep.subr.bf16.mxu0 0
    %3273 = vmatpush1.bf16.msra.mxu0 %v3249
    %3274 = vmatprep.subr.bf16.mxu0 0
    %3275 = vmatpush1.bf16.msra.mxu0 0
    %3276 = vmatprep.subr.bf16.mxu0 0
    %3277 = vmatpush1.bf16.msra.mxu0 0
    %3278 = vmatprep.subr.bf16.mxu0 0
    %3279 = vmatpush1.bf16.msra.mxu0 0
    %3280 = vmatprep.subr.bf16.mxu0 0
    %3281 = vmatpush1.bf16.msra.mxu0 0
    %3282 = vmatprep.subr.bf16.mxu0 0
    %3283 = vmatpush1.bf16.msra.mxu0 0
    %3284 = vmatprep.subr.bf16.mxu0 0
    %3285 = vmatpush1.bf16.msra.mxu0 0
    %3286 = vmatprep.subr.bf16.mxu0 0
    %3287 = vmatpush1.bf16.msra.mxu0 0
    %3288 = vmatprep.subr.bf16.mxu0 0
    %3289 = vmatpush1.bf16.msra.mxu0 0
    %3290 = vmatprep.mubr.bf16.mxu0 0
    %3291 = vmatmul.mubr.bf16.gmra.mrb[0].mxu0 %v3204
    %v3292 = vpop.f32.mrb[0].mxu0
    %v3293 = vadd.f32 %v3209, %v3292
    %v3294 = vpop.f32.mrb[0].mxu0
    %v3295 = vpop.f32.mrb[0].mxu0
    %v3296 = vadd.f32 %v3209, %v3295
    %v3297 = vpop.f32.mrb[0].mxu0
    %3298 = vdwg.mxu0
    %v3299 = vadd.f32 %v3010, %v3293
    %v3300 = vadd.f32 %v3011, %v3296
    %v3301 = vld [vmem:[%s20] sm:$0x1]
    %v3302 = vld [vmem:[%s21] sm:$0x1]
    %v3303 = vsel %vm155, %v3299, 0.0
    %3304 = vadd.xlane.f32.xlu0 %v3303
    %v3305 = vpop.xlane.xlu0 %3304
    %v3306 = vsel %vm155, %v3300, 0.0
    %3307 = vadd.xlane.f32.xlu0 %v3306
    %v3308 = vpop.xlane.xlu0 %3307
    %v3309 = vmul.f32 %v3305, %v380
    %v3310 = vmul.f32 %v3308, %v380
    %v3311 = vsub.f32 %v3299, %v3309
    %v3312 = vsub.f32 %v3300, %v3310
    %v3313 = vmul.f32 %v3311, %v3311
    %v3314 = vmul.f32 %v3312, %v3312
    %v3315 = vsel %vm155, %v3313, 0.0
    %3316 = vadd.xlane.f32.xlu0 %v3315
    %v3317 = vpop.xlane.xlu0 %3316
    %v3318 = vsel %vm155, %v3314, 0.0
    %3319 = vadd.xlane.f32.xlu0 %v3318
    %v3320 = vpop.xlane.xlu0 %3319
    %v3321 = vmul.f32 %v3317, %v380
    %v3322 = vmul.f32 %v3320, %v380
    %v3323 = vadd.f32 %v3321, 1e-05
    %v3324 = vadd.f32 %v3322, 1e-05
    %v3325 = vrsqrt.pop %v3323
    %v3326 = vrsqrt.pop %v3324
    %v3327 = vmul.f32 %v3311, %v3325
    %v3328 = vmul.f32 %v3312, %v3326
    %v3330 = vlaneseq
    %v3331 = vshrl.u32 %v3330, 7
    %v3332 = vsub.s32 0, %v3331
    %v3333 = vrot.slane %v3301, %v3332
    %v3335 = vmul.f32 %v3327, %v3333
    %v3336 = vmul.f32 %v3328, %v3333
    %v3338 = vlaneseq
    %v3339 = vshrl.u32 %v3338, 7
    %v3340 = vsub.s32 0, %v3339
    %v3341 = vrot.slane %v3302, %v3340
    %v3343 = vadd.f32 %v3335, %v3341
    %v3344 = vadd.f32 %v3336, %v3341
    %v3345 = vld [vmem:[%s22] sm:$0xf]
    %v3346 = vld [vmem:[%s22 + $0x4] sm:$0xf]
    %v3347 = vld [vmem:[%s22 + $0x8] sm:$0xf]
    %v3348 = vld [vmem:[%s22 + $0xc] sm:$0xf]
    %v3349 = vld [vmem:[%s22 + $0x10] sm:$0xf]
    %v3350 = vld [vmem:[%s22 + $0x14] sm:$0xf]
    %v3351 = vld [vmem:[%s22 + $0x18] sm:$0xf]
    %v3352 = vld [vmem:[%s22 + $0x1c] sm:$0xf]
    %v3353 = vpack.c.bf16 %v3344, %v3343
    %v3354 = vld [vmem:[%s23] sm:$0x1]
    %v3356 = vlaneseq
    %v3357 = vshrl.u32 %v3356, 7
    %v3358 = vsub.s32 0, %v3357
    %v3359 = vrot.slane %v3354, %v3358
    %v3369 = vunpack.c.l.b16 %v3345
    %v3370 = vunpack.c.l.b16 %v3346
    %v3371 = vunpack.c.l.b16 %v3347
    %v3372 = vunpack.c.l.b16 %v3348
    %v3373 = vunpack.c.l.b16 %v3349
    %v3374 = vunpack.c.l.b16 %v3350
    %v3375 = vunpack.c.l.b16 %v3351
    %v3376 = vunpack.c.l.b16 %v3352
    %v3377 = vpack.c.b16 %v3370, %v3369
    %v3378 = vpack.c.b16 %v3372, %v3371
    %v3379 = vpack.c.b16 %v3374, %v3373
    %v3380 = vpack.c.b16 %v3376, %v3375
    %v3386 = vsel %vm155, %v3353, 0
    %3388 = vmatprep.subr.bf16.mxu0 0
    %3389 = vmatpush1.bf16.msra.mxu0 %v3377
    %3390 = vmatprep.subr.bf16.mxu0 0
    %3391 = vmatpush1.bf16.msra.mxu0 %v3378
    %3392 = vmatprep.subr.bf16.mxu0 0
    %3393 = vmatpush1.bf16.msra.mxu0 %v3379
    %3394 = vmatprep.subr.bf16.mxu0 0
    %3395 = vmatpush1.bf16.msra.mxu0 %v3380
    %3396 = vmatprep.subr.bf16.mxu0 0
    %3397 = vmatpush1.bf16.msra.mxu0 0
    %3398 = vmatprep.subr.bf16.mxu0 0
    %3399 = vmatpush1.bf16.msra.mxu0 0
    %3400 = vmatprep.subr.bf16.mxu0 0
    %3401 = vmatpush1.bf16.msra.mxu0 0
    %3402 = vmatprep.subr.bf16.mxu0 0
    %3403 = vmatpush1.bf16.msra.mxu0 0
    %3404 = vmatprep.subr.bf16.mxu0 0
    %3405 = vmatpush1.bf16.msra.mxu0 0
    %3406 = vmatprep.subr.bf16.mxu0 0
    %3407 = vmatpush1.bf16.msra.mxu0 0
    %3408 = vmatprep.subr.bf16.mxu0 0
    %3409 = vmatpush1.bf16.msra.mxu0 0
    %3410 = vmatprep.subr.bf16.mxu0 0
    %3411 = vmatpush1.bf16.msra.mxu0 0
    %3412 = vmatprep.subr.bf16.mxu0 0
    %3413 = vmatpush1.bf16.msra.mxu0 0
    %3414 = vmatprep.subr.bf16.mxu0 0
    %3415 = vmatpush1.bf16.msra.mxu0 0
    %3416 = vmatprep.subr.bf16.mxu0 0
    %3417 = vmatpush1.bf16.msra.mxu0 0
    %3418 = vmatprep.subr.bf16.mxu0 0
    %3419 = vmatpush1.bf16.msra.mxu0 0
    %3420 = vmatprep.mubr.bf16.mxu0 0
    %3421 = vmatmul.mubr.bf16.gmra.mrb[0].mxu0 %v3386
    %v3422 = vpop.f32.mrb[0].mxu0
    %v3423 = vadd.f32 %v3359, %v3422
    %v3424 = vpop.f32.mrb[0].mxu0
    %v3425 = vpop.f32.mrb[0].mxu0
    %v3426 = vadd.f32 %v3359, %v3425
    %v3427 = vpop.f32.mrb[0].mxu0
    %3428 = vdwg.mxu0
    %3429 = vst [vmem:[#allocation14] sm:$0xff] %v3423
    %3430 = vst [vmem:[#allocation14 + $0x8] sm:$0xff] %v3426
    // Predicated region
    $region122: #{tpu_custom_call.1} parent=1 // pred_check
      _
    $region123: #{tpu_custom_call.1} parent=1 // pred_check_branch
      %3432 = sbr.rel (0) target = $region125
    $region124: #{tpu_custom_call.1} parent=1 // pred_region
      %s3434 = ssub.s32 256, 256
      %3435 = vsyncadd [#allocation5], %s3434
      %s3436 = sshll.u32 [#allocation14], 4
      %s3437 = int_to_ptr.vmem [resolvable:$true] %s3436
      %3442 = dma.vmem_to_hbm [thread:$0]  %s3437, 256, %s24, [#allocation5], 128, 128, 8
    $region125: #{tpu_custom_call.1} parent=1 // pred_fallthru
      _
    // Predicated region
    $region126: #{tpu_custom_call.1} parent=1 // pred_check
      _
    $region127: #{tpu_custom_call.1} parent=1 // pred_check_branch
      %3444 = sbr.rel (0) target = $region129
    $region128: #{tpu_custom_call.1} parent=1 // pred_region
      %3445 = dma.done [#allocation5], 256
    $region129: #{tpu_custom_call.1} parent=1 // pred_fallthru
      _
    %3446 = vsyncpa [#allocation4], 1
    %3447 = vsyncpa [#allocation7], 1
    %3448 = vsyncpa [#allocation10], 1
    %3449 = vsyncpa [#allocation13], 1
    %3450 = vsyncpa [#allocation5], 1

</llo_original>
